<compile_context>
chip_gen: v7x
topology: tpu7x:2x2x1
jax: 0.10.0
libtpu: 0.0.40
codegen_flags: <defaults>
</compile_context>

<pallas_src>
import functools

import jax
import jax.numpy as jnp
from jax.experimental import pallas as pl
from jax.experimental.pallas import tpu as pltpu


# ---------------------------------------------------------------------------
# Fused Pallas kernel: one batch image per grid step.
# ---------------------------------------------------------------------------
def _basicblock_kernel(x_ref, w1_ref, b1_ref, w2_ref, b2_ref, o_ref,
                       xpad, y1pad, *, H, W):
    M = H * W
    base = 2 * W                       # data rows nominally live at [base, base+M)
    Cin = x_ref.shape[2]
    Cmid = w1_ref.shape[2]
    Cout = w2_ref.shape[2]

    # Per-row column index (over the M output pixels) for edge masking.
    col = jax.lax.broadcasted_iota(jnp.int32, (M, 1), 0) % W
    m_not_last = (col != (W - 1)).astype(jnp.float32)   # pre-mask for dx = -1 group
    m_not_first = (col != 0).astype(jnp.float32)        # pre-mask for dx = +1 group

    def fill_slab(pad_ref, val, C):
        """Write 3 row-shifted, edge-pre-masked copies of `val` (M, C) into a
        (rows, 3C) slab so that the 3 horizontal taps of a 3x3 conv become a
        single contiguous (M, 3C) read per dy.  Only halo rows are zeroed."""
        z = jnp.zeros((W + 1, 3 * C), jnp.float32)
        pad_ref[pl.ds(base - W, W + 1), :] = z               # top halo
        pad_ref[pl.ds(base + M - 1, W + 1), :] = z           # bottom halo
        # group 0 <-> dx = -1 : stored one row lower, masked where src col == W-1
        pad_ref[pl.ds(base + 1, M), :C] = val * m_not_last
        # group 1 <-> dx =  0 : stored in place, no mask
        pad_ref[pl.ds(base, M), C:2 * C] = val
        # group 2 <-> dx = +1 : stored one row higher, masked where src col == 0
        pad_ref[pl.ds(base - 1, M), 2 * C:3 * C] = val * m_not_first

    def conv3x3(pad_ref, w_ref, n_out):
        """3x3 conv (pad=1, stride=1): 3 merged matmuls (one per dy)."""
        acc = jnp.zeros((M, n_out), jnp.float32)
        for t, dy in enumerate((-1, 0, 1)):
            tap = pad_ref[pl.ds(base + dy * W, M), :]        # (M, 3C), static slice
            acc = acc + jnp.dot(tap, w_ref[t],
                                preferred_element_type=jnp.float32)
        return acc

    x = x_ref[0].astype(jnp.float32)                          # (M, Cin)

    # conv1 + bn1 + relu   (BN scale already folded into w1; only shift here)
    fill_slab(xpad, x, Cin)
    y1 = jnp.maximum(conv3x3(xpad, w1_ref, Cmid) + b1_ref[...], 0.0)

    # conv2 + bn2 + residual add + relu  (conv1 activation never leaves VMEM)
    fill_slab(y1pad, y1, Cmid)
    out = conv3x3(y1pad, w2_ref, Cout) + b2_ref[...] + x
    o_ref[0] = jnp.maximum(out, 0.0).astype(o_ref.dtype)


# ---------------------------------------------------------------------------
# Wrapper
# ---------------------------------------------------------------------------
def _fold_bn(gamma, beta, mean, var, eps=1e-5):
    scale = gamma / jnp.sqrt(var + eps)
    shift = beta - mean * scale
    return scale, shift


def basicblock_forward(x_nchw, p, stride=1):
    """Fused BasicBlock forward (downsample=None -> identity path)."""
    assert stride == 1, "only the downsample=None / identity path is supported"
    N, Cin, H, W = x_nchw.shape
    Cmid = p["w1"].shape[0]
    Cout = p["w2"].shape[0]
    assert Cout == Cin, "identity residual requires planes == inplanes"
    M = H * W

    # NCHW -> (N, H*W, C): channels on the fast (lane) axis.
    x_flat = jnp.transpose(x_nchw, (0, 2, 3, 1)).reshape(N, M, Cin)

    # Fold inference-mode BN scale into the conv weights; keep only shifts.
    s1, b1 = _fold_bn(p["g1"], p["be1"], p["m1"], p["v1"])
    s2, b2 = _fold_bn(p["g2"], p["be2"], p["m2"], p["v2"])
    # (O, I, kh, kw) -> (kh, kw, I, O) -> (kh, kw*I, O): kw-major flattening
    # matches the [dx=-1 | dx=0 | dx=+1] column groups built in the kernel.
    w1 = jnp.transpose(p["w1"], (2, 3, 1, 0)).reshape(3, 3 * Cin, Cmid)
    w2 = jnp.transpose(p["w2"], (2, 3, 1, 0)).reshape(3, 3 * Cmid, Cout)
    w1 = (w1 * s1[None, None, :]).astype(jnp.float32)
    w2 = (w2 * s2[None, None, :]).astype(jnp.float32)
    b1 = b1.reshape(1, Cmid).astype(jnp.float32)
    b2 = b2.reshape(1, Cout).astype(jnp.float32)

    pad_rows = (H + 4) * W
    kernel = functools.partial(_basicblock_kernel, H=H, W=W)

    out_flat = pl.pallas_call(
        kernel,
        out_shape=jax.ShapeDtypeStruct((N, M, Cout), x_nchw.dtype),
        grid_spec=pltpu.PrefetchScalarGridSpec(
            num_scalar_prefetch=0,
            grid=(N,),
            in_specs=[
                pl.BlockSpec((1, M, Cin), lambda n: (n, 0, 0)),
                pl.BlockSpec((3, 3 * Cin, Cmid), lambda n: (0, 0, 0)),
                pl.BlockSpec((1, Cmid), lambda n: (0, 0)),
                pl.BlockSpec((3, 3 * Cmid, Cout), lambda n: (0, 0, 0)),
                pl.BlockSpec((1, Cout), lambda n: (0, 0)),
            ],
            out_specs=pl.BlockSpec((1, M, Cout), lambda n: (n, 0, 0)),
            scratch_shapes=[
                pltpu.VMEM((pad_rows, 3 * Cin), jnp.float32),   # padded input slab
                pltpu.VMEM((pad_rows, 3 * Cmid), jnp.float32),  # padded conv1 slab
            ],
        ),
        compiler_params=pltpu.CompilerParams(
            dimension_semantics=("parallel",)),
    )(x_flat, w1, b1, w2, b2)

    return jnp.transpose(out_flat.reshape(N, H, W, Cout), (0, 3, 1, 2))


# ---------------------------------------------------------------------------
# Pure-JAX reference (lax conv) for the correctness check
# ---------------------------------------------------------------------------
def basicblock_ref(x, p, stride=1, eps=1e-5):
    def conv(x, w, stride=1):
        return jax.lax.conv_general_dilated(
            x, w, (stride, stride), [(1, 1), (1, 1)],
            dimension_numbers=("NCHW", "OIHW", "NCHW"))

    def bn(x, g, b, m, v):
        s = g / jnp.sqrt(v + eps)
        return x * s[None, :, None, None] + (b - m * s)[None, :, None, None]

    out = jnp.maximum(bn(conv(x, p["w1"], stride),
                         p["g1"], p["be1"], p["m1"], p["v1"]), 0.0)
    out = bn(conv(out, p["w2"]), p["g2"], p["be2"], p["m2"], p["v2"])
    return jnp.maximum(out + x, 0.0)


# ---------------------------------------------------------------------------
if __name__ == "__main__":
    # BasicBlock(inplanes=16, planes=16), stride=1, downsample=None.
    inplanes = planes = 16
    N, H, W = 2, 16, 16

    key = jax.random.PRNGKey(0)
    ks = jax.random.split(key, 12)
    f32 = jnp.float32
    params = {
        "w1": 0.1 * jax.random.normal(ks[0], (planes, inplanes, 3, 3), f32),
        "w2": 0.1 * jax.random.normal(ks[1], (planes, planes, 3, 3), f32),
        "g1": 1.0 + 0.05 * jax.random.normal(ks[2], (planes,), f32),
        "be1": 0.05 * jax.random.normal(ks[3], (planes,), f32),
        "m1": 0.05 * jax.random.normal(ks[4], (planes,), f32),
        "v1": 1.0 + 0.1 * jnp.abs(jax.random.normal(ks[5], (planes,), f32)),
        "g2": 1.0 + 0.05 * jax.random.normal(ks[6], (planes,), f32),
        "be2": 0.05 * jax.random.normal(ks[7], (planes,), f32),
        "m2": 0.05 * jax.random.normal(ks[8], (planes,), f32),
        "v2": 1.0 + 0.1 * jnp.abs(jax.random.normal(ks[9], (planes,), f32)),
    }
    x = jax.random.normal(ks[10], (N, inplanes, H, W), f32)

    out = jax.block_until_ready(basicblock_forward(x, params, stride=1))
    ref = jax.block_until_ready(basicblock_ref(x, params))

    assert out.shape == (N, planes, H, W)
    max_err = float(jnp.max(jnp.abs(out - ref)))
    assert jnp.allclose(out, ref, atol=5e-4, rtol=5e-4), max_err

    print("KERNEL_OK")
</pallas_src>

<mosaic_0001>
module attributes {stable_mosaic.version = 11 : i64} {
  func.func @_basicblock_kernel(%arg0: i32, %arg1: memref<1x256x16xf32, #tpu.memory_space<vmem>>, %arg2: memref<3x48x16xf32, #tpu.memory_space<vmem>>, %arg3: memref<1x16xf32, #tpu.memory_space<vmem>>, %arg4: memref<3x48x16xf32, #tpu.memory_space<vmem>>, %arg5: memref<1x16xf32, #tpu.memory_space<vmem>>, %arg6: memref<1x256x16xf32, #tpu.memory_space<vmem>>, %arg7: memref<320x48xf32, #tpu.memory_space<vmem>>, %arg8: memref<320x48xf32, #tpu.memory_space<vmem>>) attributes {dimension_semantics = [#tpu.dimension_semantics<parallel>], iteration_bounds = array<i64: 2>, scalar_prefetch = 0 : i64, scratch_operands = 2 : i64, tpu.core_type = #tpu.core_type<tc>, window_params = [{transform_indices = @transform_0, window_bounds = array<i64: 1, 256, 16>}, {pipeline_mode = #tpu.pipeline_mode<synchronous>, transform_indices = @transform_1, window_bounds = array<i64: 3, 48, 16>}, {pipeline_mode = #tpu.pipeline_mode<synchronous>, transform_indices = @transform_2, window_bounds = array<i64: 1, 16>}, {pipeline_mode = #tpu.pipeline_mode<synchronous>, transform_indices = @transform_3, window_bounds = array<i64: 3, 48, 16>}, {pipeline_mode = #tpu.pipeline_mode<synchronous>, transform_indices = @transform_4, window_bounds = array<i64: 1, 16>}, {transform_indices = @transform_5, window_bounds = array<i64: 1, 256, 16>}]} {
    %0 = tpu.iota {dimensions = array<i32: 0>} : vector<256x1xi32>
    %c16_i32 = arith.constant 16 : i32
    %c0_i32 = arith.constant 0 : i32
    %1 = arith.cmpi eq, %c16_i32, %c0_i32 : i32
    %c1_i32 = arith.constant 1 : i32
    %2 = arith.select %1, %c1_i32, %c16_i32 : i32
    %3 = vector.broadcast %2 : i32 to vector<256x1xi32>
    %4 = arith.remsi %0, %3 : vector<256x1xi32>
    %c0_i32_0 = arith.constant 0 : i32
    %5 = vector.broadcast %c0_i32_0 : i32 to vector<256x1xi32>
    %6 = arith.cmpi ne, %4, %5 : vector<256x1xi32>
    %c0_i32_1 = arith.constant 0 : i32
    %7 = vector.broadcast %c0_i32_1 : i32 to vector<256x1xi32>
    %8 = arith.cmpi slt, %4, %7 : vector<256x1xi32>
    %c0_i32_2 = arith.constant 0 : i32
    %9 = arith.cmpi slt, %2, %c0_i32_2 : i32
    %10 = vector.broadcast %9 : i1 to vector<256x1xi1>
    %11 = vector.broadcast %10 : vector<256x1xi1> to vector<256x1xi1>
    %12 = arith.xori %8, %11 : vector<256x1xi1>
    %13 = arith.andi %12, %6 : vector<256x1xi1>
    %14 = vector.broadcast %2 : i32 to vector<256x1xi32>
    %15 = arith.addi %4, %14 : vector<256x1xi32>
    %16 = arith.select %13, %15, %4 : vector<256x1xi1>, vector<256x1xi32>
    %c15_i32 = arith.constant 15 : i32
    %17 = vector.broadcast %c15_i32 : i32 to vector<256x1xi32>
    %18 = arith.cmpi ne, %16, %17 : vector<256x1xi32>
    %19 = arith.extui %18 : vector<256x1xi1> to vector<256x1xi32>
    %20 = arith.sitofp %19 : vector<256x1xi32> to vector<256x1xf32>
    %c0_i32_3 = arith.constant 0 : i32
    %21 = vector.broadcast %c0_i32_3 : i32 to vector<256x1xi32>
    %22 = arith.cmpi ne, %16, %21 : vector<256x1xi32>
    %23 = arith.extui %22 : vector<256x1xi1> to vector<256x1xi32>
    %24 = arith.sitofp %23 : vector<256x1xi32> to vector<256x1xf32>
    %c0 = arith.constant 0 : index
    %c0_4 = arith.constant 0 : index
    %c0_5 = arith.constant 0 : index
    %25 = vector.load %arg1[%c0, %c0_4, %c0_5] : memref<1x256x16xf32, #tpu.memory_space<vmem>>, vector<1x256x16xf32>
    %26 = vector.shape_cast %25 : vector<1x256x16xf32> to vector<256x16xf32>
    %cst = arith.constant 0.000000e+00 : f32
    %27 = vector.broadcast %cst : f32 to vector<17x48xf32>
    %c16 = arith.constant 16 : index
    %c0_6 = arith.constant 0 : index
    %28 = vector.load %arg7[%c16, %c0_6] : memref<320x48xf32, #tpu.memory_space<vmem>>, vector<17x48xf32>
    tpu.vector_store %arg7[%c16, %c0_6], %27 {strides = array<i32>} : memref<320x48xf32, #tpu.memory_space<vmem>>, vector<17x48xf32>,
    %c287 = arith.constant 287 : index
    %c0_7 = arith.constant 0 : index
    %29 = vector.load %arg7[%c287, %c0_7] : memref<320x48xf32, #tpu.memory_space<vmem>>, vector<17x48xf32>
    tpu.vector_store %arg7[%c287, %c0_7], %27 {strides = array<i32>} : memref<320x48xf32, #tpu.memory_space<vmem>>, vector<17x48xf32>,
    %30 = vector.broadcast %20 : vector<256x1xf32> to vector<256x16xf32>
    %31 = arith.mulf %26, %30 : vector<256x16xf32>
    %c33 = arith.constant 33 : index
    %c0_8 = arith.constant 0 : index
    %32 = vector.load %arg7[%c33, %c0_8] : memref<320x48xf32, #tpu.memory_space<vmem>>, vector<256x16xf32>
    tpu.vector_store %arg7[%c33, %c0_8], %31 {strides = array<i32>} : memref<320x48xf32, #tpu.memory_space<vmem>>, vector<256x16xf32>,
    %c32 = arith.constant 32 : index
    %c16_9 = arith.constant 16 : index
    %33 = vector.load %arg7[%c32, %c16_9] : memref<320x48xf32, #tpu.memory_space<vmem>>, vector<256x16xf32>
    tpu.vector_store %arg7[%c32, %c16_9], %26 {strides = array<i32>} : memref<320x48xf32, #tpu.memory_space<vmem>>, vector<256x16xf32>,
    %34 = vector.broadcast %24 : vector<256x1xf32> to vector<256x16xf32>
    %35 = arith.mulf %26, %34 : vector<256x16xf32>
    %c31 = arith.constant 31 : index
    %c32_10 = arith.constant 32 : index
    %36 = vector.load %arg7[%c31, %c32_10] : memref<320x48xf32, #tpu.memory_space<vmem>>, vector<256x16xf32>
    tpu.vector_store %arg7[%c31, %c32_10], %35 {strides = array<i32>} : memref<320x48xf32, #tpu.memory_space<vmem>>, vector<256x16xf32>,
    %cst_11 = arith.constant 0.000000e+00 : f32
    %37 = vector.broadcast %cst_11 : f32 to vector<256x16xf32>
    %c16_12 = arith.constant 16 : index
    %c0_13 = arith.constant 0 : index
    %38 = vector.load %arg7[%c16_12, %c0_13] : memref<320x48xf32, #tpu.memory_space<vmem>>, vector<256x48xf32>
    %c0_14 = arith.constant 0 : index
    %c0_15 = arith.constant 0 : index
    %c0_16 = arith.constant 0 : index
    %39 = vector.load %arg2[%c0_14, %c0_15, %c0_16] : memref<3x48x16xf32, #tpu.memory_space<vmem>>, vector<1x48x16xf32>
    %40 = vector.shape_cast %39 : vector<1x48x16xf32> to vector<48x16xf32>
    %cst_17 = arith.constant dense<0.000000e+00> : vector<256x16xf32>
    %41 = tpu.matmul %38, %40, %cst_17 {dimension_numbers = #tpu.dot_dimension_numbers<[1], [0], [0], [1], [0, 0, 1, 1], [], []>} : vector<256x48xf32>, vector<48x16xf32>, vector<256x16xf32> -> vector<256x16xf32>
    %42 = arith.addf %37, %41 : vector<256x16xf32>
    %c32_18 = arith.constant 32 : index
    %c0_19 = arith.constant 0 : index
    %43 = vector.load %arg7[%c32_18, %c0_19] : memref<320x48xf32, #tpu.memory_space<vmem>>, vector<256x48xf32>
    %c1 = arith.constant 1 : index
    %c0_20 = arith.constant 0 : index
    %c0_21 = arith.constant 0 : index
    %44 = vector.load %arg2[%c1, %c0_20, %c0_21] : memref<3x48x16xf32, #tpu.memory_space<vmem>>, vector<1x48x16xf32>
    %45 = vector.shape_cast %44 : vector<1x48x16xf32> to vector<48x16xf32>
    %cst_22 = arith.constant dense<0.000000e+00> : vector<256x16xf32>
    %46 = tpu.matmul %43, %45, %cst_22 {dimension_numbers = #tpu.dot_dimension_numbers<[1], [0], [0], [1], [0, 0, 1, 1], [], []>} : vector<256x48xf32>, vector<48x16xf32>, vector<256x16xf32> -> vector<256x16xf32>
    %47 = arith.addf %42, %46 : vector<256x16xf32>
    %c48 = arith.constant 48 : index
    %c0_23 = arith.constant 0 : index
    %48 = vector.load %arg7[%c48, %c0_23] : memref<320x48xf32, #tpu.memory_space<vmem>>, vector<256x48xf32>
    %c2 = arith.constant 2 : index
    %c0_24 = arith.constant 0 : index
    %c0_25 = arith.constant 0 : index
    %49 = vector.load %arg2[%c2, %c0_24, %c0_25] : memref<3x48x16xf32, #tpu.memory_space<vmem>>, vector<1x48x16xf32>
    %50 = vector.shape_cast %49 : vector<1x48x16xf32> to vector<48x16xf32>
    %cst_26 = arith.constant dense<0.000000e+00> : vector<256x16xf32>
    %51 = tpu.matmul %48, %50, %cst_26 {dimension_numbers = #tpu.dot_dimension_numbers<[1], [0], [0], [1], [0, 0, 1, 1], [], []>} : vector<256x48xf32>, vector<48x16xf32>, vector<256x16xf32> -> vector<256x16xf32>
    %52 = arith.addf %47, %51 : vector<256x16xf32>
    %c0_27 = arith.constant 0 : index
    %c0_28 = arith.constant 0 : index
    %53 = vector.load %arg3[%c0_27, %c0_28] : memref<1x16xf32, #tpu.memory_space<vmem>>, vector<1x16xf32>
    %54 = vector.broadcast %53 : vector<1x16xf32> to vector<256x16xf32>
    %55 = arith.addf %52, %54 : vector<256x16xf32>
    %cst_29 = arith.constant 0.000000e+00 : f32
    %56 = vector.broadcast %cst_29 : f32 to vector<256x16xf32>
    %57 = arith.maximumf %55, %56 : vector<256x16xf32>
    %cst_30 = arith.constant 0.000000e+00 : f32
    %58 = vector.broadcast %cst_30 : f32 to vector<17x48xf32>
    %c16_31 = arith.constant 16 : index
    %c0_32 = arith.constant 0 : index
    %59 = vector.load %arg8[%c16_31, %c0_32] : memref<320x48xf32, #tpu.memory_space<vmem>>, vector<17x48xf32>
    tpu.vector_store %arg8[%c16_31, %c0_32], %58 {strides = array<i32>} : memref<320x48xf32, #tpu.memory_space<vmem>>, vector<17x48xf32>,
    %c287_33 = arith.constant 287 : index
    %c0_34 = arith.constant 0 : index
    %60 = vector.load %arg8[%c287_33, %c0_34] : memref<320x48xf32, #tpu.memory_space<vmem>>, vector<17x48xf32>
    tpu.vector_store %arg8[%c287_33, %c0_34], %58 {strides = array<i32>} : memref<320x48xf32, #tpu.memory_space<vmem>>, vector<17x48xf32>,
    %61 = vector.broadcast %20 : vector<256x1xf32> to vector<256x16xf32>
    %62 = arith.mulf %57, %61 : vector<256x16xf32>
    %c33_35 = arith.constant 33 : index
    %c0_36 = arith.constant 0 : index
    %63 = vector.load %arg8[%c33_35, %c0_36] : memref<320x48xf32, #tpu.memory_space<vmem>>, vector<256x16xf32>
    tpu.vector_store %arg8[%c33_35, %c0_36], %62 {strides = array<i32>} : memref<320x48xf32, #tpu.memory_space<vmem>>, vector<256x16xf32>,
    %c32_37 = arith.constant 32 : index
    %c16_38 = arith.constant 16 : index
    %64 = vector.load %arg8[%c32_37, %c16_38] : memref<320x48xf32, #tpu.memory_space<vmem>>, vector<256x16xf32>
    tpu.vector_store %arg8[%c32_37, %c16_38], %57 {strides = array<i32>} : memref<320x48xf32, #tpu.memory_space<vmem>>, vector<256x16xf32>,
    %65 = vector.broadcast %24 : vector<256x1xf32> to vector<256x16xf32>
    %66 = arith.mulf %57, %65 : vector<256x16xf32>
    %c31_39 = arith.constant 31 : index
    %c32_40 = arith.constant 32 : index
    %67 = vector.load %arg8[%c31_39, %c32_40] : memref<320x48xf32, #tpu.memory_space<vmem>>, vector<256x16xf32>
    tpu.vector_store %arg8[%c31_39, %c32_40], %66 {strides = array<i32>} : memref<320x48xf32, #tpu.memory_space<vmem>>, vector<256x16xf32>,
    %cst_41 = arith.constant 0.000000e+00 : f32
    %68 = vector.broadcast %cst_41 : f32 to vector<256x16xf32>
    %c16_42 = arith.constant 16 : index
    %c0_43 = arith.constant 0 : index
    %69 = vector.load %arg8[%c16_42, %c0_43] : memref<320x48xf32, #tpu.memory_space<vmem>>, vector<256x48xf32>
    %c0_44 = arith.constant 0 : index
    %c0_45 = arith.constant 0 : index
    %c0_46 = arith.constant 0 : index
    %70 = vector.load %arg4[%c0_44, %c0_45, %c0_46] : memref<3x48x16xf32, #tpu.memory_space<vmem>>, vector<1x48x16xf32>
    %71 = vector.shape_cast %70 : vector<1x48x16xf32> to vector<48x16xf32>
    %cst_47 = arith.constant dense<0.000000e+00> : vector<256x16xf32>
    %72 = tpu.matmul %69, %71, %cst_47 {dimension_numbers = #tpu.dot_dimension_numbers<[1], [0], [0], [1], [0, 0, 1, 1], [], []>} : vector<256x48xf32>, vector<48x16xf32>, vector<256x16xf32> -> vector<256x16xf32>
    %73 = arith.addf %68, %72 : vector<256x16xf32>
    %c32_48 = arith.constant 32 : index
    %c0_49 = arith.constant 0 : index
    %74 = vector.load %arg8[%c32_48, %c0_49] : memref<320x48xf32, #tpu.memory_space<vmem>>, vector<256x48xf32>
    %c1_50 = arith.constant 1 : index
    %c0_51 = arith.constant 0 : index
    %c0_52 = arith.constant 0 : index
    %75 = vector.load %arg4[%c1_50, %c0_51, %c0_52] : memref<3x48x16xf32, #tpu.memory_space<vmem>>, vector<1x48x16xf32>
    %76 = vector.shape_cast %75 : vector<1x48x16xf32> to vector<48x16xf32>
    %cst_53 = arith.constant dense<0.000000e+00> : vector<256x16xf32>
    %77 = tpu.matmul %74, %76, %cst_53 {dimension_numbers = #tpu.dot_dimension_numbers<[1], [0], [0], [1], [0, 0, 1, 1], [], []>} : vector<256x48xf32>, vector<48x16xf32>, vector<256x16xf32> -> vector<256x16xf32>
    %78 = arith.addf %73, %77 : vector<256x16xf32>
    %c48_54 = arith.constant 48 : index
    %c0_55 = arith.constant 0 : index
    %79 = vector.load %arg8[%c48_54, %c0_55] : memref<320x48xf32, #tpu.memory_space<vmem>>, vector<256x48xf32>
    %c2_56 = arith.constant 2 : index
    %c0_57 = arith.constant 0 : index
    %c0_58 = arith.constant 0 : index
    %80 = vector.load %arg4[%c2_56, %c0_57, %c0_58] : memref<3x48x16xf32, #tpu.memory_space<vmem>>, vector<1x48x16xf32>
    %81 = vector.shape_cast %80 : vector<1x48x16xf32> to vector<48x16xf32>
    %cst_59 = arith.constant dense<0.000000e+00> : vector<256x16xf32>
    %82 = tpu.matmul %79, %81, %cst_59 {dimension_numbers = #tpu.dot_dimension_numbers<[1], [0], [0], [1], [0, 0, 1, 1], [], []>} : vector<256x48xf32>, vector<48x16xf32>, vector<256x16xf32> -> vector<256x16xf32>
    %83 = arith.addf %78, %82 : vector<256x16xf32>
    %c0_60 = arith.constant 0 : index
    %c0_61 = arith.constant 0 : index
    %84 = vector.load %arg5[%c0_60, %c0_61] : memref<1x16xf32, #tpu.memory_space<vmem>>, vector<1x16xf32>
    %85 = vector.broadcast %84 : vector<1x16xf32> to vector<256x16xf32>
    %86 = arith.addf %83, %85 : vector<256x16xf32>
    %87 = arith.addf %86, %26 : vector<256x16xf32>
    %cst_62 = arith.constant 0.000000e+00 : f32
    %88 = vector.broadcast %cst_62 : f32 to vector<256x16xf32>
    %89 = arith.maximumf %87, %88 : vector<256x16xf32>
    %c0_63 = arith.constant 0 : index
    %c0_64 = arith.constant 0 : index
    %c0_65 = arith.constant 0 : index
    %90 = vector.load %arg6[%c0_63, %c0_64, %c0_65] : memref<1x256x16xf32, #tpu.memory_space<vmem>>, vector<1x256x16xf32>
    %91 = vector.shape_cast %90 : vector<1x256x16xf32> to vector<256x16xf32>
    %92 = vector.shape_cast %89 : vector<256x16xf32> to vector<1x256x16xf32>
    tpu.vector_store %arg6[%c0_63, %c0_64, %c0_65], %92 {strides = array<i32>} : memref<1x256x16xf32, #tpu.memory_space<vmem>>, vector<1x256x16xf32>,
    return
  }
  func.func @transform_0(%arg0: i32) -> (i32, i32, i32) {
    %c0_i32 = arith.constant 0 : i32
    %c0_i32_0 = arith.constant 0 : i32
    %c0_i32_1 = arith.constant 0 : i32
    return %arg0, %c0_i32, %c0_i32_0 : i32, i32, i32
  }
  func.func @transform_1(%arg0: i32) -> (i32, i32, i32) {
    %c0_i32 = arith.constant 0 : i32
    %c0_i32_0 = arith.constant 0 : i32
    %c0_i32_1 = arith.constant 0 : i32
    %c0_i32_2 = arith.constant 0 : i32
    return %c0_i32, %c0_i32_0, %c0_i32_1 : i32, i32, i32
  }
  func.func @transform_2(%arg0: i32) -> (i32, i32) {
    %c0_i32 = arith.constant 0 : i32
    %c0_i32_0 = arith.constant 0 : i32
    %c0_i32_1 = arith.constant 0 : i32
    return %c0_i32, %c0_i32_0 : i32, i32
  }
  func.func @transform_3(%arg0: i32) -> (i32, i32, i32) {
    %c0_i32 = arith.constant 0 : i32
    %c0_i32_0 = arith.constant 0 : i32
    %c0_i32_1 = arith.constant 0 : i32
    %c0_i32_2 = arith.constant 0 : i32
    return %c0_i32, %c0_i32_0, %c0_i32_1 : i32, i32, i32
  }
  func.func @transform_4(%arg0: i32) -> (i32, i32) {
    %c0_i32 = arith.constant 0 : i32
    %c0_i32_0 = arith.constant 0 : i32
    %c0_i32_1 = arith.constant 0 : i32
    return %c0_i32, %c0_i32_0 : i32, i32
  }
  func.func @transform_5(%arg0: i32) -> (i32, i32, i32) {
    %c0_i32 = arith.constant 0 : i32
    %c0_i32_0 = arith.constant 0 : i32
    %c0_i32_1 = arith.constant 0 : i32
    return %arg0, %c0_i32, %c0_i32_0 : i32, i32, i32
  }
}

</mosaic_0001>

<llo_original>
// kernel: tpu_custom_call.1
$region0: #{tpu_custom_call.1}
  #allocation0 [shape = 'u32[]', space=smem, size = 0x4, offset = 0x4, fixed_abs, tag = 'smem constant byte address 0x4 - core index']
  #allocation1 [shape = 'u32[144,128]{1,0:T(1,128)}', space=vmem, size = 0x12000, scoped, tag = 'internal scratch']
  #allocation2 [shape = 'f32[320,48]{1,0:T(8,128)}', space=vmem, size = 0x28000, scoped, tag = 'scratch operand']
  #allocation3 [shape = 'f32[320,48]{1,0:T(8,128)}', space=vmem, size = 0x28000, scoped, tag = 'scratch operand']
  %s0 = inlined_call_operand.vmem [shape: f32[2,256,16], index: 0, kind: input, shape index: {}]
  %s1 = inlined_call_operand.vmem [shape: f32[3,48,16], index: 1, kind: input, shape index: {}]
  %s2 = inlined_call_operand.vmem [shape: f32[1,16], index: 2, kind: input, shape index: {}]
  %s3 = inlined_call_operand.vmem [shape: f32[3,48,16], index: 3, kind: input, shape index: {}]
  %s4 = inlined_call_operand.vmem [shape: f32[1,16], index: 4, kind: input, shape index: {}]
  %s5 = inlined_call_operand.vmem [shape: f32[2,256,16], index: 5, kind: output, shape index: {}]
  %s6 = sld [smem:[#allocation0]]
  $region53: #{tpu_custom_call.1} parent=0
    _
  %s8 = ssub.s32 1, %s6
  %s9 = scalar_select 0, %s8, %s6
  loop: start=0, step=1, limit=4
  $region2: #{tpu_custom_call.1} parent=0 // loop_pre_header
    _
  $region3: #{tpu_custom_call.1} parent=0 // loop_header
    %s11 = sphi 0, %s15
    %p12 = scmp.ge.s32.totalorder %s11, 4
    %s21 = sphi 0, %s23
    %s24 = sphi 0, %s21
    %s25 = sphi 0, %s24
    %s41 = sphi 0, %s25
    %s45 = sphi 0, %s45
    %s47 = sphi 0, %s45
    %s48 = sphi 0, %s47
    %s62 = sphi 0, %s48
    %s66 = sphi 0, %s66
    %s68 = sphi 0, %s66
    %s69 = sphi 0, %s68
    %s83 = sphi 0, %s69
    %s87 = sphi 0, %s87
    %s89 = sphi 0, %s87
    %s90 = sphi 0, %s89
    %s104 = sphi 0, %s90
    %s108 = sphi 0, %s108
    %s110 = sphi 0, %s108
    %s111 = sphi 0, %s110
    %s125 = sphi 0, %s111
    %s131 = sphi 0, %s133
    %s134 = sphi 0, %s131
    %s135 = sphi 0, %s134
    %s151 = sphi 0, %s135
  $region4: #{tpu_custom_call.1} parent=0 // loop_header_branch
    %14 = sbr.rel (%p12) target = $region8
  $region5: #{tpu_custom_call.1} parent=0 // loop_body
    %s16 = ssub.s32 %s11, 1
    %s17 = ssub.s32 %s11, 2
    %s18 = sadd.s32 %s11, 1
    %s19 = ssub.s32 %s11, %s18
    %p20 = scmp.eq.s32.totalorder %s19, 0
    %s22 = sadd.s32 %s21, 1
    %s23 = scalar_select %p20, %s21, %s22
    %p26 = pneg %p20
    %p27 = scmp.eq.s32.totalorder %s11, 1
    %p28 = por %p26, %p27
    %p29 = scmp.ne.s32.totalorder %s21, %s24
    %p30 = scmp.eq.s32.totalorder %s11, 0
    %p31 = por %p29, %p30
    %p32 = scmp.ne.s32.totalorder %s21, %s24
    %p33 = scmp.eq.s32.totalorder %s16, 1
    %p34 = por %p32, %p33
    %p35 = scmp.ne.s32.totalorder %s24, %s25
    %p36 = scmp.eq.s32.totalorder %s16, 0
    %p37 = por %p35, %p36
    %p38 = scmp.ne.s32.totalorder %s24, %s25
    %p39 = scmp.eq.s32.totalorder %s17, 1
    %p40 = por %p38, %p39
    %p42 = scmp.ne.s32.totalorder %s25, %s41
    %p43 = scmp.eq.s32.totalorder %s17, 0
    %p44 = por %p42, %p43
    %s46 = sadd.s32 %s45, 1
    %p49 = scmp.eq.s32.totalorder %s11, 1
    %p50 = scmp.ne.s32.totalorder %s45, %s47
    %p51 = scmp.eq.s32.totalorder %s11, 0
    %p52 = por %p50, %p51
    %p53 = scmp.ne.s32.totalorder %s45, %s47
    %p54 = scmp.eq.s32.totalorder %s16, 1
    %p55 = por %p53, %p54
    %p56 = scmp.ne.s32.totalorder %s47, %s48
    %p57 = scmp.eq.s32.totalorder %s16, 0
    %p58 = por %p56, %p57
    %p59 = scmp.ne.s32.totalorder %s47, %s48
    %p60 = scmp.eq.s32.totalorder %s17, 1
    %p61 = por %p59, %p60
    %p63 = scmp.ne.s32.totalorder %s48, %s62
    %p64 = scmp.eq.s32.totalorder %s17, 0
    %p65 = por %p63, %p64
    %s67 = sadd.s32 %s66, 1
    %p70 = scmp.eq.s32.totalorder %s11, 1
    %p71 = scmp.ne.s32.totalorder %s66, %s68
    %p72 = scmp.eq.s32.totalorder %s11, 0
    %p73 = por %p71, %p72
    %p74 = scmp.ne.s32.totalorder %s66, %s68
    %p75 = scmp.eq.s32.totalorder %s16, 1
    %p76 = por %p74, %p75
    %p77 = scmp.ne.s32.totalorder %s68, %s69
    %p78 = scmp.eq.s32.totalorder %s16, 0
    %p79 = por %p77, %p78
    %p80 = scmp.ne.s32.totalorder %s68, %s69
    %p81 = scmp.eq.s32.totalorder %s17, 1
    %p82 = por %p80, %p81
    %p84 = scmp.ne.s32.totalorder %s69, %s83
    %p85 = scmp.eq.s32.totalorder %s17, 0
    %p86 = por %p84, %p85
    %s88 = sadd.s32 %s87, 1
    %p91 = scmp.eq.s32.totalorder %s11, 1
    %p92 = scmp.ne.s32.totalorder %s87, %s89
    %p93 = scmp.eq.s32.totalorder %s11, 0
    %p94 = por %p92, %p93
    %p95 = scmp.ne.s32.totalorder %s87, %s89
    %p96 = scmp.eq.s32.totalorder %s16, 1
    %p97 = por %p95, %p96
    %p98 = scmp.ne.s32.totalorder %s89, %s90
    %p99 = scmp.eq.s32.totalorder %s16, 0
    %p100 = por %p98, %p99
    %p101 = scmp.ne.s32.totalorder %s89, %s90
    %p102 = scmp.eq.s32.totalorder %s17, 1
    %p103 = por %p101, %p102
    %p105 = scmp.ne.s32.totalorder %s90, %s104
    %p106 = scmp.eq.s32.totalorder %s17, 0
    %p107 = por %p105, %p106
    %s109 = sadd.s32 %s108, 1
    %p112 = scmp.eq.s32.totalorder %s11, 1
    %p113 = scmp.ne.s32.totalorder %s108, %s110
    %p114 = scmp.eq.s32.totalorder %s11, 0
    %p115 = por %p113, %p114
    %p116 = scmp.ne.s32.totalorder %s108, %s110
    %p117 = scmp.eq.s32.totalorder %s16, 1
    %p118 = por %p116, %p117
    %p119 = scmp.ne.s32.totalorder %s110, %s111
    %p120 = scmp.eq.s32.totalorder %s16, 0
    %p121 = por %p119, %p120
    %p122 = scmp.ne.s32.totalorder %s110, %s111
    %p123 = scmp.eq.s32.totalorder %s17, 1
    %p124 = por %p122, %p123
    %p126 = scmp.ne.s32.totalorder %s111, %s125
    %p127 = scmp.eq.s32.totalorder %s17, 0
    %p128 = por %p126, %p127
    %s129 = ssub.s32 %s11, %s18
    %p130 = scmp.eq.s32.totalorder %s129, 0
    %s132 = sadd.s32 %s131, 1
    %s133 = scalar_select %p130, %s131, %s132
    %p136 = pneg %p130
    %p137 = scmp.eq.s32.totalorder %s11, 1
    %p138 = por %p136, %p137
    %p139 = scmp.ne.s32.totalorder %s131, %s134
    %p140 = scmp.eq.s32.totalorder %s11, 0
    %p141 = por %p139, %p140
    %p142 = scmp.ne.s32.totalorder %s131, %s134
    %p143 = scmp.eq.s32.totalorder %s16, 1
    %p144 = por %p142, %p143
    %p145 = scmp.ne.s32.totalorder %s134, %s135
    %p146 = scmp.eq.s32.totalorder %s16, 0
    %p147 = por %p145, %p146
    %p148 = scmp.ne.s32.totalorder %s134, %s135
    %p149 = scmp.eq.s32.totalorder %s17, 1
    %p150 = por %p148, %p149
    %p152 = scmp.ne.s32.totalorder %s135, %s151
    %p153 = scmp.eq.s32.totalorder %s17, 0
    %p154 = por %p152, %p153
    %p155 = scmp.le.s32.totalorder 1, %s11
    %p156 = scmp.lt.s32.totalorder %s11, 3
    %p157 = pnand %p155, %p156
    %p158 = pneg %p157
    // Predicated region
    $region9: #{tpu_custom_call.1} parent=5 // pred_check
      _
    $region10: #{tpu_custom_call.1} parent=5 // pred_check_branch
      %160 = sbr.rel (%p157) target = $region12
    $region11: #{tpu_custom_call.1} parent=5 // pred_region
      %s161 = ssub.s32 %s11, 1
      // Predicated region
      $region13: #{tpu_custom_call.1} parent=11 // pred_check
        %p162 = pneg %p58
      $region14: #{tpu_custom_call.1} parent=11 // pred_check_branch
        %164 = sbr.rel (%p162) target = $region16
      $region15: #{tpu_custom_call.1} parent=11 // pred_region
        _
      $region16: #{tpu_custom_call.1} parent=11 // pred_fallthru
        _
      // Predicated region
      $region17: #{tpu_custom_call.1} parent=11 // pred_check
        %p165 = pneg %p79
      $region18: #{tpu_custom_call.1} parent=11 // pred_check_branch
        %167 = sbr.rel (%p165) target = $region20
      $region19: #{tpu_custom_call.1} parent=11 // pred_region
        _
      $region20: #{tpu_custom_call.1} parent=11 // pred_fallthru
        _
      // Predicated region
      $region21: #{tpu_custom_call.1} parent=11 // pred_check
        %p168 = pneg %p100
      $region22: #{tpu_custom_call.1} parent=11 // pred_check_branch
        %170 = sbr.rel (%p168) target = $region24
      $region23: #{tpu_custom_call.1} parent=11 // pred_region
        _
      $region24: #{tpu_custom_call.1} parent=11 // pred_fallthru
        _
      // Predicated region
      $region25: #{tpu_custom_call.1} parent=11 // pred_check
        %p171 = pneg %p121
      $region26: #{tpu_custom_call.1} parent=11 // pred_check_branch
        %173 = sbr.rel (%p171) target = $region28
      $region27: #{tpu_custom_call.1} parent=11 // pred_region
        _
      $region28: #{tpu_custom_call.1} parent=11 // pred_fallthru
        _
    $region12: #{tpu_custom_call.1} parent=5 // pred_fallthru
      _
    %p174 = scmp.lt.s32.totalorder %s11, 2
    // Predicated region
    $region29: #{tpu_custom_call.1} parent=5 // pred_check
      %p175 = pneg %p174
    $region30: #{tpu_custom_call.1} parent=5 // pred_check_branch
      %177 = sbr.rel (%p175) target = $region32
    $region31: #{tpu_custom_call.1} parent=5 // pred_region
      // Predicated region
      $region33: #{tpu_custom_call.1} parent=31 // pred_check
        %p178 = pneg %p31
      $region34: #{tpu_custom_call.1} parent=31 // pred_check_branch
        %180 = sbr.rel (%p178) target = $region36
      $region35: #{tpu_custom_call.1} parent=31 // pred_region
        %p181 = scmp.lt.s32.totalorder %s11, 1
        %s182 = scalar_select %p181, %s11, 1
        %s183 = smul.addr %s182, 32
        %s184 = smul.addr %s183, 8
        %s185 = scalar_lea.vmem %s0, %s184
      $region36: #{tpu_custom_call.1} parent=31 // pred_fallthru
        _
    $region32: #{tpu_custom_call.1} parent=5 // pred_fallthru
      _
    %p186 = scmp.le.s32.totalorder 1, %s11
    %p187 = scmp.lt.s32.totalorder %s11, 3
    %p188 = pnand %p186, %p187
    %p189 = pneg %p188
    // Predicated region
    $region37: #{tpu_custom_call.1} parent=5 // pred_check
      _
    $region38: #{tpu_custom_call.1} parent=5 // pred_check_branch
      %191 = sbr.rel (%p188) target = $region40
    $region39: #{tpu_custom_call.1} parent=5 // pred_region
      %s192 = ssub.s32 %s11, 1
      %p193 = scmp.lt.s32.totalorder %s16, 1
      %s194 = scalar_select %p193, %s16, 1
      %s195 = smul.addr %s194, 32
      %s196 = smul.addr %s195, 8
      %s197 = scalar_lea.vmem %s0, %s196
      %p198 = pneg %p37
      %p199 = pneg %p34
      %p200 = pneg %p58
      %p201 = pneg %p55
      %p202 = pneg %p79
      %p203 = pneg %p76
      %p204 = pneg %p100
      %p205 = pneg %p97
      %p206 = pneg %p121
      %p207 = pneg %p118
      %p208 = pneg %p147
      %p209 = pneg %p144
      %p210 = scmp.lt.s32.totalorder %s16, 1
      %s211 = scalar_select %p210, %s16, 1
      %s212 = smul.addr %s211, 32
      %s213 = smul.addr %s212, 8
      %s214 = scalar_lea.vmem %s5, %s213
      %p215 = scmp.lt.s32.totalorder %s16, 1
      %s216 = scalar_select %p215, %s16, 1
      %s217 = smul.addr %s216, 32
      %s218 = smul.addr %s217, 8
      %s219 = scalar_lea.vmem %s0, %s218
      %p220 = scmp.lt.s32.totalorder %s16, 1
      %s221 = scalar_select %p220, %s16, 1
      %s222 = smul.addr %s221, 32
      %s223 = smul.addr %s222, 8
      %s224 = scalar_lea.vmem %s5, %s223
      %v225 = vlaneseq
      %v226 = vshrl.u32 %v225, 7
      %v227 = vadd.s32 %v226, 8
      %v228 = vadd.s32 %v226, 16
      %v229 = vadd.s32 %v226, 24
      %v230 = vadd.s32 %v226, 32
      %v231 = vadd.s32 %v226, 40
      %v232 = vadd.s32 %v226, 48
      %v233 = vadd.s32 %v226, 56
      %v234 = vadd.s32 %v226, 64
      %v235 = vadd.s32 %v226, 72
      %v236 = vadd.s32 %v226, 80
      %v237 = vadd.s32 %v226, 88
      %v238 = vadd.s32 %v226, 96
      %v239 = vadd.s32 %v226, 104
      %v240 = vadd.s32 %v226, 112
      %v241 = vadd.s32 %v226, 120
      %v242 = vadd.s32 %v226, 128
      %v243 = vadd.s32 %v226, 136
      %v244 = vadd.s32 %v226, 144
      %v245 = vadd.s32 %v226, 152
      %v246 = vadd.s32 %v226, 160
      %v247 = vadd.s32 %v226, 168
      %v248 = vadd.s32 %v226, 176
      %v249 = vadd.s32 %v226, 184
      %v250 = vadd.s32 %v226, 192
      %v251 = vadd.s32 %v226, 200
      %v252 = vadd.s32 %v226, 208
      %v253 = vadd.s32 %v226, 216
      %v254 = vadd.s32 %v226, 224
      %v255 = vadd.s32 %v226, 232
      %v256 = vadd.s32 %v226, 240
      %v257 = vadd.s32 %v226, 248
      %vm258 = vcmp.lt.s32.totalorder %v226, 0
      %v259 = vsub.s32 0, %v226
      %v260 = vsel %vm258, %v259, %v226
      %v261 = vshrl.u32 %v260, 4
      %v262 = vand.u32 %v260, 15
      %v263 = vsub.s32 0, %v262
      %v264 = vsel %vm258, %v263, %v262
      %vm265 = vcmp.lt.s32.totalorder %v227, 0
      %v266 = vsub.s32 0, %v227
      %v267 = vsel %vm265, %v266, %v227
      %v268 = vshrl.u32 %v267, 4
      %v269 = vand.u32 %v267, 15
      %v270 = vsub.s32 0, %v269
      %v271 = vsel %vm265, %v270, %v269
      %vm272 = vcmp.lt.s32.totalorder %v228, 0
      %v273 = vsub.s32 0, %v228
      %v274 = vsel %vm272, %v273, %v228
      %v275 = vshrl.u32 %v274, 4
      %v276 = vand.u32 %v274, 15
      %v277 = vsub.s32 0, %v276
      %v278 = vsel %vm272, %v277, %v276
      %vm279 = vcmp.lt.s32.totalorder %v229, 0
      %v280 = vsub.s32 0, %v229
      %v281 = vsel %vm279, %v280, %v229
      %v282 = vshrl.u32 %v281, 4
      %v283 = vand.u32 %v281, 15
      %v284 = vsub.s32 0, %v283
      %v285 = vsel %vm279, %v284, %v283
      %vm286 = vcmp.lt.s32.totalorder %v230, 0
      %v287 = vsub.s32 0, %v230
      %v288 = vsel %vm286, %v287, %v230
      %v289 = vshrl.u32 %v288, 4
      %v290 = vand.u32 %v288, 15
      %v291 = vsub.s32 0, %v290
      %v292 = vsel %vm286, %v291, %v290
      %vm293 = vcmp.lt.s32.totalorder %v231, 0
      %v294 = vsub.s32 0, %v231
      %v295 = vsel %vm293, %v294, %v231
      %v296 = vshrl.u32 %v295, 4
      %v297 = vand.u32 %v295, 15
      %v298 = vsub.s32 0, %v297
      %v299 = vsel %vm293, %v298, %v297
      %vm300 = vcmp.lt.s32.totalorder %v232, 0
      %v301 = vsub.s32 0, %v232
      %v302 = vsel %vm300, %v301, %v232
      %v303 = vshrl.u32 %v302, 4
      %v304 = vand.u32 %v302, 15
      %v305 = vsub.s32 0, %v304
      %v306 = vsel %vm300, %v305, %v304
      %vm307 = vcmp.lt.s32.totalorder %v233, 0
      %v308 = vsub.s32 0, %v233
      %v309 = vsel %vm307, %v308, %v233
      %v310 = vshrl.u32 %v309, 4
      %v311 = vand.u32 %v309, 15
      %v312 = vsub.s32 0, %v311
      %v313 = vsel %vm307, %v312, %v311
      %vm314 = vcmp.lt.s32.totalorder %v234, 0
      %v315 = vsub.s32 0, %v234
      %v316 = vsel %vm314, %v315, %v234
      %v317 = vshrl.u32 %v316, 4
      %v318 = vand.u32 %v316, 15
      %v319 = vsub.s32 0, %v318
      %v320 = vsel %vm314, %v319, %v318
      %vm321 = vcmp.lt.s32.totalorder %v235, 0
      %v322 = vsub.s32 0, %v235
      %v323 = vsel %vm321, %v322, %v235
      %v324 = vshrl.u32 %v323, 4
      %v325 = vand.u32 %v323, 15
      %v326 = vsub.s32 0, %v325
      %v327 = vsel %vm321, %v326, %v325
      %vm328 = vcmp.lt.s32.totalorder %v236, 0
      %v329 = vsub.s32 0, %v236
      %v330 = vsel %vm328, %v329, %v236
      %v331 = vshrl.u32 %v330, 4
      %v332 = vand.u32 %v330, 15
      %v333 = vsub.s32 0, %v332
      %v334 = vsel %vm328, %v333, %v332
      %vm335 = vcmp.lt.s32.totalorder %v237, 0
      %v336 = vsub.s32 0, %v237
      %v337 = vsel %vm335, %v336, %v237
      %v338 = vshrl.u32 %v337, 4
      %v339 = vand.u32 %v337, 15
      %v340 = vsub.s32 0, %v339
      %v341 = vsel %vm335, %v340, %v339
      %vm342 = vcmp.lt.s32.totalorder %v238, 0
      %v343 = vsub.s32 0, %v238
      %v344 = vsel %vm342, %v343, %v238
      %v345 = vshrl.u32 %v344, 4
      %v346 = vand.u32 %v344, 15
      %v347 = vsub.s32 0, %v346
      %v348 = vsel %vm342, %v347, %v346
      %vm349 = vcmp.lt.s32.totalorder %v239, 0
      %v350 = vsub.s32 0, %v239
      %v351 = vsel %vm349, %v350, %v239
      %v352 = vshrl.u32 %v351, 4
      %v353 = vand.u32 %v351, 15
      %v354 = vsub.s32 0, %v353
      %v355 = vsel %vm349, %v354, %v353
      %vm356 = vcmp.lt.s32.totalorder %v240, 0
      %v357 = vsub.s32 0, %v240
      %v358 = vsel %vm356, %v357, %v240
      %v359 = vshrl.u32 %v358, 4
      %v360 = vand.u32 %v358, 15
      %v361 = vsub.s32 0, %v360
      %v362 = vsel %vm356, %v361, %v360
      %vm363 = vcmp.lt.s32.totalorder %v241, 0
      %v364 = vsub.s32 0, %v241
      %v365 = vsel %vm363, %v364, %v241
      %v366 = vshrl.u32 %v365, 4
      %v367 = vand.u32 %v365, 15
      %v368 = vsub.s32 0, %v367
      %v369 = vsel %vm363, %v368, %v367
      %vm370 = vcmp.lt.s32.totalorder %v242, 0
      %v371 = vsub.s32 0, %v242
      %v372 = vsel %vm370, %v371, %v242
      %v373 = vshrl.u32 %v372, 4
      %v374 = vand.u32 %v372, 15
      %v375 = vsub.s32 0, %v374
      %v376 = vsel %vm370, %v375, %v374
      %vm377 = vcmp.lt.s32.totalorder %v243, 0
      %v378 = vsub.s32 0, %v243
      %v379 = vsel %vm377, %v378, %v243
      %v380 = vshrl.u32 %v379, 4
      %v381 = vand.u32 %v379, 15
      %v382 = vsub.s32 0, %v381
      %v383 = vsel %vm377, %v382, %v381
      %vm384 = vcmp.lt.s32.totalorder %v244, 0
      %v385 = vsub.s32 0, %v244
      %v386 = vsel %vm384, %v385, %v244
      %v387 = vshrl.u32 %v386, 4
      %v388 = vand.u32 %v386, 15
      %v389 = vsub.s32 0, %v388
      %v390 = vsel %vm384, %v389, %v388
      %vm391 = vcmp.lt.s32.totalorder %v245, 0
      %v392 = vsub.s32 0, %v245
      %v393 = vsel %vm391, %v392, %v245
      %v394 = vshrl.u32 %v393, 4
      %v395 = vand.u32 %v393, 15
      %v396 = vsub.s32 0, %v395
      %v397 = vsel %vm391, %v396, %v395
      %vm398 = vcmp.lt.s32.totalorder %v246, 0
      %v399 = vsub.s32 0, %v246
      %v400 = vsel %vm398, %v399, %v246
      %v401 = vshrl.u32 %v400, 4
      %v402 = vand.u32 %v400, 15
      %v403 = vsub.s32 0, %v402
      %v404 = vsel %vm398, %v403, %v402
      %vm405 = vcmp.lt.s32.totalorder %v247, 0
      %v406 = vsub.s32 0, %v247
      %v407 = vsel %vm405, %v406, %v247
      %v408 = vshrl.u32 %v407, 4
      %v409 = vand.u32 %v407, 15
      %v410 = vsub.s32 0, %v409
      %v411 = vsel %vm405, %v410, %v409
      %vm412 = vcmp.lt.s32.totalorder %v248, 0
      %v413 = vsub.s32 0, %v248
      %v414 = vsel %vm412, %v413, %v248
      %v415 = vshrl.u32 %v414, 4
      %v416 = vand.u32 %v414, 15
      %v417 = vsub.s32 0, %v416
      %v418 = vsel %vm412, %v417, %v416
      %vm419 = vcmp.lt.s32.totalorder %v249, 0
      %v420 = vsub.s32 0, %v249
      %v421 = vsel %vm419, %v420, %v249
      %v422 = vshrl.u32 %v421, 4
      %v423 = vand.u32 %v421, 15
      %v424 = vsub.s32 0, %v423
      %v425 = vsel %vm419, %v424, %v423
      %vm426 = vcmp.lt.s32.totalorder %v250, 0
      %v427 = vsub.s32 0, %v250
      %v428 = vsel %vm426, %v427, %v250
      %v429 = vshrl.u32 %v428, 4
      %v430 = vand.u32 %v428, 15
      %v431 = vsub.s32 0, %v430
      %v432 = vsel %vm426, %v431, %v430
      %vm433 = vcmp.lt.s32.totalorder %v251, 0
      %v434 = vsub.s32 0, %v251
      %v435 = vsel %vm433, %v434, %v251
      %v436 = vshrl.u32 %v435, 4
      %v437 = vand.u32 %v435, 15
      %v438 = vsub.s32 0, %v437
      %v439 = vsel %vm433, %v438, %v437
      %vm440 = vcmp.lt.s32.totalorder %v252, 0
      %v441 = vsub.s32 0, %v252
      %v442 = vsel %vm440, %v441, %v252
      %v443 = vshrl.u32 %v442, 4
      %v444 = vand.u32 %v442, 15
      %v445 = vsub.s32 0, %v444
      %v446 = vsel %vm440, %v445, %v444
      %vm447 = vcmp.lt.s32.totalorder %v253, 0
      %v448 = vsub.s32 0, %v253
      %v449 = vsel %vm447, %v448, %v253
      %v450 = vshrl.u32 %v449, 4
      %v451 = vand.u32 %v449, 15
      %v452 = vsub.s32 0, %v451
      %v453 = vsel %vm447, %v452, %v451
      %vm454 = vcmp.lt.s32.totalorder %v254, 0
      %v455 = vsub.s32 0, %v254
      %v456 = vsel %vm454, %v455, %v254
      %v457 = vshrl.u32 %v456, 4
      %v458 = vand.u32 %v456, 15
      %v459 = vsub.s32 0, %v458
      %v460 = vsel %vm454, %v459, %v458
      %vm461 = vcmp.lt.s32.totalorder %v255, 0
      %v462 = vsub.s32 0, %v255
      %v463 = vsel %vm461, %v462, %v255
      %v464 = vshrl.u32 %v463, 4
      %v465 = vand.u32 %v463, 15
      %v466 = vsub.s32 0, %v465
      %v467 = vsel %vm461, %v466, %v465
      %vm468 = vcmp.lt.s32.totalorder %v256, 0
      %v469 = vsub.s32 0, %v256
      %v470 = vsel %vm468, %v469, %v256
      %v471 = vshrl.u32 %v470, 4
      %v472 = vand.u32 %v470, 15
      %v473 = vsub.s32 0, %v472
      %v474 = vsel %vm468, %v473, %v472
      %vm475 = vcmp.lt.s32.totalorder %v257, 0
      %v476 = vsub.s32 0, %v257
      %v477 = vsel %vm475, %v476, %v257
      %v478 = vshrl.u32 %v477, 4
      %v479 = vand.u32 %v477, 15
      %v480 = vsub.s32 0, %v479
      %v481 = vsel %vm475, %v480, %v479
      %vm482 = vcmp.ne.s32.totalorder %v264, 0
      %vm483 = vcmp.ne.s32.totalorder %v271, 0
      %vm484 = vcmp.ne.s32.totalorder %v278, 0
      %vm485 = vcmp.ne.s32.totalorder %v285, 0
      %vm486 = vcmp.ne.s32.totalorder %v292, 0
      %vm487 = vcmp.ne.s32.totalorder %v299, 0
      %vm488 = vcmp.ne.s32.totalorder %v306, 0
      %vm489 = vcmp.ne.s32.totalorder %v313, 0
      %vm490 = vcmp.ne.s32.totalorder %v320, 0
      %vm491 = vcmp.ne.s32.totalorder %v327, 0
      %vm492 = vcmp.ne.s32.totalorder %v334, 0
      %vm493 = vcmp.ne.s32.totalorder %v341, 0
      %vm494 = vcmp.ne.s32.totalorder %v348, 0
      %vm495 = vcmp.ne.s32.totalorder %v355, 0
      %vm496 = vcmp.ne.s32.totalorder %v362, 0
      %vm497 = vcmp.ne.s32.totalorder %v369, 0
      %vm498 = vcmp.ne.s32.totalorder %v376, 0
      %vm499 = vcmp.ne.s32.totalorder %v383, 0
      %vm500 = vcmp.ne.s32.totalorder %v390, 0
      %vm501 = vcmp.ne.s32.totalorder %v397, 0
      %vm502 = vcmp.ne.s32.totalorder %v404, 0
      %vm503 = vcmp.ne.s32.totalorder %v411, 0
      %vm504 = vcmp.ne.s32.totalorder %v418, 0
      %vm505 = vcmp.ne.s32.totalorder %v425, 0
      %vm506 = vcmp.ne.s32.totalorder %v432, 0
      %vm507 = vcmp.ne.s32.totalorder %v439, 0
      %vm508 = vcmp.ne.s32.totalorder %v446, 0
      %vm509 = vcmp.ne.s32.totalorder %v453, 0
      %vm510 = vcmp.ne.s32.totalorder %v460, 0
      %vm511 = vcmp.ne.s32.totalorder %v467, 0
      %vm512 = vcmp.ne.s32.totalorder %v474, 0
      %vm513 = vcmp.ne.s32.totalorder %v481, 0
      %vm514 = vcmp.lt.s32.totalorder %v264, 0
      %vm515 = vcmp.lt.s32.totalorder %v271, 0
      %vm516 = vcmp.lt.s32.totalorder %v278, 0
      %vm517 = vcmp.lt.s32.totalorder %v285, 0
      %vm518 = vcmp.lt.s32.totalorder %v292, 0
      %vm519 = vcmp.lt.s32.totalorder %v299, 0
      %vm520 = vcmp.lt.s32.totalorder %v306, 0
      %vm521 = vcmp.lt.s32.totalorder %v313, 0
      %vm522 = vcmp.lt.s32.totalorder %v320, 0
      %vm523 = vcmp.lt.s32.totalorder %v327, 0
      %vm524 = vcmp.lt.s32.totalorder %v334, 0
      %vm525 = vcmp.lt.s32.totalorder %v341, 0
      %vm526 = vcmp.lt.s32.totalorder %v348, 0
      %vm527 = vcmp.lt.s32.totalorder %v355, 0
      %vm528 = vcmp.lt.s32.totalorder %v362, 0
      %vm529 = vcmp.lt.s32.totalorder %v369, 0
      %vm530 = vcmp.lt.s32.totalorder %v376, 0
      %vm531 = vcmp.lt.s32.totalorder %v383, 0
      %vm532 = vcmp.lt.s32.totalorder %v390, 0
      %vm533 = vcmp.lt.s32.totalorder %v397, 0
      %vm534 = vcmp.lt.s32.totalorder %v404, 0
      %vm535 = vcmp.lt.s32.totalorder %v411, 0
      %vm536 = vcmp.lt.s32.totalorder %v418, 0
      %vm537 = vcmp.lt.s32.totalorder %v425, 0
      %vm538 = vcmp.lt.s32.totalorder %v432, 0
      %vm539 = vcmp.lt.s32.totalorder %v439, 0
      %vm540 = vcmp.lt.s32.totalorder %v446, 0
      %vm541 = vcmp.lt.s32.totalorder %v453, 0
      %vm542 = vcmp.lt.s32.totalorder %v460, 0
      %vm543 = vcmp.lt.s32.totalorder %v467, 0
      %vm544 = vcmp.lt.s32.totalorder %v474, 0
      %vm545 = vcmp.lt.s32.totalorder %v481, 0
      %vm546 = vmand %vm514, %vm482
      %vm547 = vmand %vm515, %vm483
      %vm548 = vmand %vm516, %vm484
      %vm549 = vmand %vm517, %vm485
      %vm550 = vmand %vm518, %vm486
      %vm551 = vmand %vm519, %vm487
      %vm552 = vmand %vm520, %vm488
      %vm553 = vmand %vm521, %vm489
      %vm554 = vmand %vm522, %vm490
      %vm555 = vmand %vm523, %vm491
      %vm556 = vmand %vm524, %vm492
      %vm557 = vmand %vm525, %vm493
      %vm558 = vmand %vm526, %vm494
      %vm559 = vmand %vm527, %vm495
      %vm560 = vmand %vm528, %vm496
      %vm561 = vmand %vm529, %vm497
      %vm562 = vmand %vm530, %vm498
      %vm563 = vmand %vm531, %vm499
      %vm564 = vmand %vm532, %vm500
      %vm565 = vmand %vm533, %vm501
      %vm566 = vmand %vm534, %vm502
      %vm567 = vmand %vm535, %vm503
      %vm568 = vmand %vm536, %vm504
      %vm569 = vmand %vm537, %vm505
      %vm570 = vmand %vm538, %vm506
      %vm571 = vmand %vm539, %vm507
      %vm572 = vmand %vm540, %vm508
      %vm573 = vmand %vm541, %vm509
      %vm574 = vmand %vm542, %vm510
      %vm575 = vmand %vm543, %vm511
      %vm576 = vmand %vm544, %vm512
      %vm577 = vmand %vm545, %vm513
      %v578 = vadd.s32 %v264, 16
      %v579 = vadd.s32 %v271, 16
      %v580 = vadd.s32 %v278, 16
      %v581 = vadd.s32 %v285, 16
      %v582 = vadd.s32 %v292, 16
      %v583 = vadd.s32 %v299, 16
      %v584 = vadd.s32 %v306, 16
      %v585 = vadd.s32 %v313, 16
      %v586 = vadd.s32 %v320, 16
      %v587 = vadd.s32 %v327, 16
      %v588 = vadd.s32 %v334, 16
      %v589 = vadd.s32 %v341, 16
      %v590 = vadd.s32 %v348, 16
      %v591 = vadd.s32 %v355, 16
      %v592 = vadd.s32 %v362, 16
      %v593 = vadd.s32 %v369, 16
      %v594 = vadd.s32 %v376, 16
      %v595 = vadd.s32 %v383, 16
      %v596 = vadd.s32 %v390, 16
      %v597 = vadd.s32 %v397, 16
      %v598 = vadd.s32 %v404, 16
      %v599 = vadd.s32 %v411, 16
      %v600 = vadd.s32 %v418, 16
      %v601 = vadd.s32 %v425, 16
      %v602 = vadd.s32 %v432, 16
      %v603 = vadd.s32 %v439, 16
      %v604 = vadd.s32 %v446, 16
      %v605 = vadd.s32 %v453, 16
      %v606 = vadd.s32 %v460, 16
      %v607 = vadd.s32 %v467, 16
      %v608 = vadd.s32 %v474, 16
      %v609 = vadd.s32 %v481, 16
      %v610 = vsel %vm546, %v578, %v264
      %v611 = vsel %vm547, %v579, %v271
      %v612 = vsel %vm548, %v580, %v278
      %v613 = vsel %vm549, %v581, %v285
      %v614 = vsel %vm550, %v582, %v292
      %v615 = vsel %vm551, %v583, %v299
      %v616 = vsel %vm552, %v584, %v306
      %v617 = vsel %vm553, %v585, %v313
      %v618 = vsel %vm554, %v586, %v320
      %v619 = vsel %vm555, %v587, %v327
      %v620 = vsel %vm556, %v588, %v334
      %v621 = vsel %vm557, %v589, %v341
      %v622 = vsel %vm558, %v590, %v348
      %v623 = vsel %vm559, %v591, %v355
      %v624 = vsel %vm560, %v592, %v362
      %v625 = vsel %vm561, %v593, %v369
      %v626 = vsel %vm562, %v594, %v376
      %v627 = vsel %vm563, %v595, %v383
      %v628 = vsel %vm564, %v596, %v390
      %v629 = vsel %vm565, %v597, %v397
      %v630 = vsel %vm566, %v598, %v404
      %v631 = vsel %vm567, %v599, %v411
      %v632 = vsel %vm568, %v600, %v418
      %v633 = vsel %vm569, %v601, %v425
      %v634 = vsel %vm570, %v602, %v432
      %v635 = vsel %vm571, %v603, %v439
      %v636 = vsel %vm572, %v604, %v446
      %v637 = vsel %vm573, %v605, %v453
      %v638 = vsel %vm574, %v606, %v460
      %v639 = vsel %vm575, %v607, %v467
      %v640 = vsel %vm576, %v608, %v474
      %v641 = vsel %vm577, %v609, %v481
      %vm642 = vcmp.ne.s32.totalorder %v610, 15
      %vm643 = vcmp.ne.s32.totalorder %v611, 15
      %vm644 = vcmp.ne.s32.totalorder %v612, 15
      %vm645 = vcmp.ne.s32.totalorder %v613, 15
      %vm646 = vcmp.ne.s32.totalorder %v614, 15
      %vm647 = vcmp.ne.s32.totalorder %v615, 15
      %vm648 = vcmp.ne.s32.totalorder %v616, 15
      %vm649 = vcmp.ne.s32.totalorder %v617, 15
      %vm650 = vcmp.ne.s32.totalorder %v618, 15
      %vm651 = vcmp.ne.s32.totalorder %v619, 15
      %vm652 = vcmp.ne.s32.totalorder %v620, 15
      %vm653 = vcmp.ne.s32.totalorder %v621, 15
      %vm654 = vcmp.ne.s32.totalorder %v622, 15
      %vm655 = vcmp.ne.s32.totalorder %v623, 15
      %vm656 = vcmp.ne.s32.totalorder %v624, 15
      %vm657 = vcmp.ne.s32.totalorder %v625, 15
      %vm658 = vcmp.ne.s32.totalorder %v626, 15
      %vm659 = vcmp.ne.s32.totalorder %v627, 15
      %vm660 = vcmp.ne.s32.totalorder %v628, 15
      %vm661 = vcmp.ne.s32.totalorder %v629, 15
      %vm662 = vcmp.ne.s32.totalorder %v630, 15
      %vm663 = vcmp.ne.s32.totalorder %v631, 15
      %vm664 = vcmp.ne.s32.totalorder %v632, 15
      %vm665 = vcmp.ne.s32.totalorder %v633, 15
      %vm666 = vcmp.ne.s32.totalorder %v634, 15
      %vm667 = vcmp.ne.s32.totalorder %v635, 15
      %vm668 = vcmp.ne.s32.totalorder %v636, 15
      %vm669 = vcmp.ne.s32.totalorder %v637, 15
      %vm670 = vcmp.ne.s32.totalorder %v638, 15
      %vm671 = vcmp.ne.s32.totalorder %v639, 15
      %vm672 = vcmp.ne.s32.totalorder %v640, 15
      %vm673 = vcmp.ne.s32.totalorder %v641, 15
      %v674 = vsel %vm642, 1, 0
      %v675 = vsel %vm643, 1, 0
      %v676 = vsel %vm644, 1, 0
      %v677 = vsel %vm645, 1, 0
      %v678 = vsel %vm646, 1, 0
      %v679 = vsel %vm647, 1, 0
      %v680 = vsel %vm648, 1, 0
      %v681 = vsel %vm649, 1, 0
      %v682 = vsel %vm650, 1, 0
      %v683 = vsel %vm651, 1, 0
      %v684 = vsel %vm652, 1, 0
      %v685 = vsel %vm653, 1, 0
      %v686 = vsel %vm654, 1, 0
      %v687 = vsel %vm655, 1, 0
      %v688 = vsel %vm656, 1, 0
      %v689 = vsel %vm657, 1, 0
      %v690 = vsel %vm658, 1, 0
      %v691 = vsel %vm659, 1, 0
      %v692 = vsel %vm660, 1, 0
      %v693 = vsel %vm661, 1, 0
      %v694 = vsel %vm662, 1, 0
      %v695 = vsel %vm663, 1, 0
      %v696 = vsel %vm664, 1, 0
      %v697 = vsel %vm665, 1, 0
      %v698 = vsel %vm666, 1, 0
      %v699 = vsel %vm667, 1, 0
      %v700 = vsel %vm668, 1, 0
      %v701 = vsel %vm669, 1, 0
      %v702 = vsel %vm670, 1, 0
      %v703 = vsel %vm671, 1, 0
      %v704 = vsel %vm672, 1, 0
      %v705 = vsel %vm673, 1, 0
      %v706 = vcvt.s32.f32 %v674
      %v707 = vcvt.s32.f32 %v675
      %v708 = vcvt.s32.f32 %v676
      %v709 = vcvt.s32.f32 %v677
      %v710 = vcvt.s32.f32 %v678
      %v711 = vcvt.s32.f32 %v679
      %v712 = vcvt.s32.f32 %v680
      %v713 = vcvt.s32.f32 %v681
      %v714 = vcvt.s32.f32 %v682
      %v715 = vcvt.s32.f32 %v683
      %v716 = vcvt.s32.f32 %v684
      %v717 = vcvt.s32.f32 %v685
      %v718 = vcvt.s32.f32 %v686
      %v719 = vcvt.s32.f32 %v687
      %v720 = vcvt.s32.f32 %v688
      %v721 = vcvt.s32.f32 %v689
      %v722 = vcvt.s32.f32 %v690
      %v723 = vcvt.s32.f32 %v691
      %v724 = vcvt.s32.f32 %v692
      %v725 = vcvt.s32.f32 %v693
      %v726 = vcvt.s32.f32 %v694
      %v727 = vcvt.s32.f32 %v695
      %v728 = vcvt.s32.f32 %v696
      %v729 = vcvt.s32.f32 %v697
      %v730 = vcvt.s32.f32 %v698
      %v731 = vcvt.s32.f32 %v699
      %v732 = vcvt.s32.f32 %v700
      %v733 = vcvt.s32.f32 %v701
      %v734 = vcvt.s32.f32 %v702
      %v735 = vcvt.s32.f32 %v703
      %v736 = vcvt.s32.f32 %v704
      %v737 = vcvt.s32.f32 %v705
      %vm738 = vcmp.ne.s32.totalorder %v610, 0
      %vm739 = vcmp.ne.s32.totalorder %v611, 0
      %vm740 = vcmp.ne.s32.totalorder %v612, 0
      %vm741 = vcmp.ne.s32.totalorder %v613, 0
      %vm742 = vcmp.ne.s32.totalorder %v614, 0
      %vm743 = vcmp.ne.s32.totalorder %v615, 0
      %vm744 = vcmp.ne.s32.totalorder %v616, 0
      %vm745 = vcmp.ne.s32.totalorder %v617, 0
      %vm746 = vcmp.ne.s32.totalorder %v618, 0
      %vm747 = vcmp.ne.s32.totalorder %v619, 0
      %vm748 = vcmp.ne.s32.totalorder %v620, 0
      %vm749 = vcmp.ne.s32.totalorder %v621, 0
      %vm750 = vcmp.ne.s32.totalorder %v622, 0
      %vm751 = vcmp.ne.s32.totalorder %v623, 0
      %vm752 = vcmp.ne.s32.totalorder %v624, 0
      %vm753 = vcmp.ne.s32.totalorder %v625, 0
      %vm754 = vcmp.ne.s32.totalorder %v626, 0
      %vm755 = vcmp.ne.s32.totalorder %v627, 0
      %vm756 = vcmp.ne.s32.totalorder %v628, 0
      %vm757 = vcmp.ne.s32.totalorder %v629, 0
      %vm758 = vcmp.ne.s32.totalorder %v630, 0
      %vm759 = vcmp.ne.s32.totalorder %v631, 0
      %vm760 = vcmp.ne.s32.totalorder %v632, 0
      %vm761 = vcmp.ne.s32.totalorder %v633, 0
      %vm762 = vcmp.ne.s32.totalorder %v634, 0
      %vm763 = vcmp.ne.s32.totalorder %v635, 0
      %vm764 = vcmp.ne.s32.totalorder %v636, 0
      %vm765 = vcmp.ne.s32.totalorder %v637, 0
      %vm766 = vcmp.ne.s32.totalorder %v638, 0
      %vm767 = vcmp.ne.s32.totalorder %v639, 0
      %vm768 = vcmp.ne.s32.totalorder %v640, 0
      %vm769 = vcmp.ne.s32.totalorder %v641, 0
      %v770 = vsel %vm738, 1, 0
      %v771 = vsel %vm739, 1, 0
      %v772 = vsel %vm740, 1, 0
      %v773 = vsel %vm741, 1, 0
      %v774 = vsel %vm742, 1, 0
      %v775 = vsel %vm743, 1, 0
      %v776 = vsel %vm744, 1, 0
      %v777 = vsel %vm745, 1, 0
      %v778 = vsel %vm746, 1, 0
      %v779 = vsel %vm747, 1, 0
      %v780 = vsel %vm748, 1, 0
      %v781 = vsel %vm749, 1, 0
      %v782 = vsel %vm750, 1, 0
      %v783 = vsel %vm751, 1, 0
      %v784 = vsel %vm752, 1, 0
      %v785 = vsel %vm753, 1, 0
      %v786 = vsel %vm754, 1, 0
      %v787 = vsel %vm755, 1, 0
      %v788 = vsel %vm756, 1, 0
      %v789 = vsel %vm757, 1, 0
      %v790 = vsel %vm758, 1, 0
      %v791 = vsel %vm759, 1, 0
      %v792 = vsel %vm760, 1, 0
      %v793 = vsel %vm761, 1, 0
      %v794 = vsel %vm762, 1, 0
      %v795 = vsel %vm763, 1, 0
      %v796 = vsel %vm764, 1, 0
      %v797 = vsel %vm765, 1, 0
      %v798 = vsel %vm766, 1, 0
      %v799 = vsel %vm767, 1, 0
      %v800 = vsel %vm768, 1, 0
      %v801 = vsel %vm769, 1, 0
      %v802 = vcvt.s32.f32 %v770
      %v803 = vcvt.s32.f32 %v771
      %v804 = vcvt.s32.f32 %v772
      %v805 = vcvt.s32.f32 %v773
      %v806 = vcvt.s32.f32 %v774
      %v807 = vcvt.s32.f32 %v775
      %v808 = vcvt.s32.f32 %v776
      %v809 = vcvt.s32.f32 %v777
      %v810 = vcvt.s32.f32 %v778
      %v811 = vcvt.s32.f32 %v779
      %v812 = vcvt.s32.f32 %v780
      %v813 = vcvt.s32.f32 %v781
      %v814 = vcvt.s32.f32 %v782
      %v815 = vcvt.s32.f32 %v783
      %v816 = vcvt.s32.f32 %v784
      %v817 = vcvt.s32.f32 %v785
      %v818 = vcvt.s32.f32 %v786
      %v819 = vcvt.s32.f32 %v787
      %v820 = vcvt.s32.f32 %v788
      %v821 = vcvt.s32.f32 %v789
      %v822 = vcvt.s32.f32 %v790
      %v823 = vcvt.s32.f32 %v791
      %v824 = vcvt.s32.f32 %v792
      %v825 = vcvt.s32.f32 %v793
      %v826 = vcvt.s32.f32 %v794
      %v827 = vcvt.s32.f32 %v795
      %v828 = vcvt.s32.f32 %v796
      %v829 = vcvt.s32.f32 %v797
      %v830 = vcvt.s32.f32 %v798
      %v831 = vcvt.s32.f32 %v799
      %v832 = vcvt.s32.f32 %v800
      %v833 = vcvt.s32.f32 %v801
      %v834 = vld [vmem:[%s219] sm:$0xff]
      %v835 = vld [vmem:[%s219 + $0x8] sm:$0xff]
      %v836 = vld [vmem:[%s219 + $0x10] sm:$0xff]
      %v837 = vld [vmem:[%s219 + $0x18] sm:$0xff]
      %v838 = vld [vmem:[%s219 + $0x20] sm:$0xff]
      %v839 = vld [vmem:[%s219 + $0x28] sm:$0xff]
      %v840 = vld [vmem:[%s219 + $0x30] sm:$0xff]
      %v841 = vld [vmem:[%s219 + $0x38] sm:$0xff]
      %v842 = vld [vmem:[%s219 + $0x40] sm:$0xff]
      %v843 = vld [vmem:[%s219 + $0x48] sm:$0xff]
      %v844 = vld [vmem:[%s219 + $0x50] sm:$0xff]
      %v845 = vld [vmem:[%s219 + $0x58] sm:$0xff]
      %v846 = vld [vmem:[%s219 + $0x60] sm:$0xff]
      %v847 = vld [vmem:[%s219 + $0x68] sm:$0xff]
      %v848 = vld [vmem:[%s219 + $0x70] sm:$0xff]
      %v849 = vld [vmem:[%s219 + $0x78] sm:$0xff]
      %v850 = vld [vmem:[%s219 + $0x80] sm:$0xff]
      %v851 = vld [vmem:[%s219 + $0x88] sm:$0xff]
      %v852 = vld [vmem:[%s219 + $0x90] sm:$0xff]
      %v853 = vld [vmem:[%s219 + $0x98] sm:$0xff]
      %v854 = vld [vmem:[%s219 + $0xa0] sm:$0xff]
      %v855 = vld [vmem:[%s219 + $0xa8] sm:$0xff]
      %v856 = vld [vmem:[%s219 + $0xb0] sm:$0xff]
      %v857 = vld [vmem:[%s219 + $0xb8] sm:$0xff]
      %v858 = vld [vmem:[%s219 + $0xc0] sm:$0xff]
      %v859 = vld [vmem:[%s219 + $0xc8] sm:$0xff]
      %v860 = vld [vmem:[%s219 + $0xd0] sm:$0xff]
      %v861 = vld [vmem:[%s219 + $0xd8] sm:$0xff]
      %v862 = vld [vmem:[%s219 + $0xe0] sm:$0xff]
      %v863 = vld [vmem:[%s219 + $0xe8] sm:$0xff]
      %v864 = vld [vmem:[%s219 + $0xf0] sm:$0xff]
      %v865 = vld [vmem:[%s219 + $0xf8] sm:$0xff]
      %vm866 = vcmask 392192
      %867 = vst.msk [vmem:[#allocation2 + $0x10] sm:$0xff] %vm866, 0.0
      %868 = vst.msk [vmem:[#allocation2 + $0x18] sm:$0xff] %vm866, 0.0
      %vm869 = vcmask 385024
      %870 = vst.msk [vmem:[#allocation2 + $0x20] sm:$0x1] %vm869, 0.0
      %871 = vst.msk [vmem:[#allocation2 + $0x11f] sm:$0xff] %vm866, 0.0
      %872 = vst.msk [vmem:[#allocation2 + $0x127] sm:$0xff] %vm866, 0.0
      %873 = vst.msk [vmem:[#allocation2 + $0x12f] sm:$0x1] %vm869, 0.0
      %v874 = vmul.f32 %v834, %v706
      %v875 = vmul.f32 %v835, %v707
      %v876 = vmul.f32 %v836, %v708
      %v877 = vmul.f32 %v837, %v709
      %v878 = vmul.f32 %v838, %v710
      %v879 = vmul.f32 %v839, %v711
      %v880 = vmul.f32 %v840, %v712
      %v881 = vmul.f32 %v841, %v713
      %v882 = vmul.f32 %v842, %v714
      %v883 = vmul.f32 %v843, %v715
      %v884 = vmul.f32 %v844, %v716
      %v885 = vmul.f32 %v845, %v717
      %v886 = vmul.f32 %v846, %v718
      %v887 = vmul.f32 %v847, %v719
      %v888 = vmul.f32 %v848, %v720
      %v889 = vmul.f32 %v849, %v721
      %v890 = vmul.f32 %v850, %v722
      %v891 = vmul.f32 %v851, %v723
      %v892 = vmul.f32 %v852, %v724
      %v893 = vmul.f32 %v853, %v725
      %v894 = vmul.f32 %v854, %v726
      %v895 = vmul.f32 %v855, %v727
      %v896 = vmul.f32 %v856, %v728
      %v897 = vmul.f32 %v857, %v729
      %v898 = vmul.f32 %v858, %v730
      %v899 = vmul.f32 %v859, %v731
      %v900 = vmul.f32 %v860, %v732
      %v901 = vmul.f32 %v861, %v733
      %v902 = vmul.f32 %v862, %v734
      %v903 = vmul.f32 %v863, %v735
      %v904 = vmul.f32 %v864, %v736
      %v905 = vmul.f32 %v865, %v737
      %vm906 = vcmask 130048
      %907 = vst.msk [vmem:[#allocation2 + $0x21] sm:$0xff] %vm906, %v874
      %908 = vst.msk [vmem:[#allocation2 + $0x29] sm:$0xff] %vm906, %v875
      %909 = vst.msk [vmem:[#allocation2 + $0x31] sm:$0xff] %vm906, %v876
      %910 = vst.msk [vmem:[#allocation2 + $0x39] sm:$0xff] %vm906, %v877
      %911 = vst.msk [vmem:[#allocation2 + $0x41] sm:$0xff] %vm906, %v878
      %912 = vst.msk [vmem:[#allocation2 + $0x49] sm:$0xff] %vm906, %v879
      %913 = vst.msk [vmem:[#allocation2 + $0x51] sm:$0xff] %vm906, %v880
      %914 = vst.msk [vmem:[#allocation2 + $0x59] sm:$0xff] %vm906, %v881
      %915 = vst.msk [vmem:[#allocation2 + $0x61] sm:$0xff] %vm906, %v882
      %916 = vst.msk [vmem:[#allocation2 + $0x69] sm:$0xff] %vm906, %v883
      %917 = vst.msk [vmem:[#allocation2 + $0x71] sm:$0xff] %vm906, %v884
      %918 = vst.msk [vmem:[#allocation2 + $0x79] sm:$0xff] %vm906, %v885
      %919 = vst.msk [vmem:[#allocation2 + $0x81] sm:$0xff] %vm906, %v886
      %920 = vst.msk [vmem:[#allocation2 + $0x89] sm:$0xff] %vm906, %v887
      %921 = vst.msk [vmem:[#allocation2 + $0x91] sm:$0xff] %vm906, %v888
      %922 = vst.msk [vmem:[#allocation2 + $0x99] sm:$0xff] %vm906, %v889
      %923 = vst.msk [vmem:[#allocation2 + $0xa1] sm:$0xff] %vm906, %v890
      %924 = vst.msk [vmem:[#allocation2 + $0xa9] sm:$0xff] %vm906, %v891
      %925 = vst.msk [vmem:[#allocation2 + $0xb1] sm:$0xff] %vm906, %v892
      %926 = vst.msk [vmem:[#allocation2 + $0xb9] sm:$0xff] %vm906, %v893
      %927 = vst.msk [vmem:[#allocation2 + $0xc1] sm:$0xff] %vm906, %v894
      %928 = vst.msk [vmem:[#allocation2 + $0xc9] sm:$0xff] %vm906, %v895
      %929 = vst.msk [vmem:[#allocation2 + $0xd1] sm:$0xff] %vm906, %v896
      %930 = vst.msk [vmem:[#allocation2 + $0xd9] sm:$0xff] %vm906, %v897
      %931 = vst.msk [vmem:[#allocation2 + $0xe1] sm:$0xff] %vm906, %v898
      %932 = vst.msk [vmem:[#allocation2 + $0xe9] sm:$0xff] %vm906, %v899
      %933 = vst.msk [vmem:[#allocation2 + $0xf1] sm:$0xff] %vm906, %v900
      %934 = vst.msk [vmem:[#allocation2 + $0xf9] sm:$0xff] %vm906, %v901
      %935 = vst.msk [vmem:[#allocation2 + $0x101] sm:$0xff] %vm906, %v902
      %936 = vst.msk [vmem:[#allocation2 + $0x109] sm:$0xff] %vm906, %v903
      %937 = vst.msk [vmem:[#allocation2 + $0x111] sm:$0xff] %vm906, %v904
      %938 = vst.msk [vmem:[#allocation2 + $0x119] sm:$0xff] %vm906, %v905
      %971 = vrot.lane.b32.xlu0 %v834, 16
      %v972 = vpop.permute.xlu0 %971
      %973 = vrot.lane.b32.xlu0 %v835, 16
      %v974 = vpop.permute.xlu0 %973
      %975 = vrot.lane.b32.xlu0 %v836, 16
      %v976 = vpop.permute.xlu0 %975
      %977 = vrot.lane.b32.xlu0 %v837, 16
      %v978 = vpop.permute.xlu0 %977
      %979 = vrot.lane.b32.xlu0 %v838, 16
      %v980 = vpop.permute.xlu0 %979
      %981 = vrot.lane.b32.xlu0 %v839, 16
      %v982 = vpop.permute.xlu0 %981
      %983 = vrot.lane.b32.xlu0 %v840, 16
      %v984 = vpop.permute.xlu0 %983
      %985 = vrot.lane.b32.xlu0 %v841, 16
      %v986 = vpop.permute.xlu0 %985
      %987 = vrot.lane.b32.xlu0 %v842, 16
      %v988 = vpop.permute.xlu0 %987
      %989 = vrot.lane.b32.xlu0 %v843, 16
      %v990 = vpop.permute.xlu0 %989
      %991 = vrot.lane.b32.xlu0 %v844, 16
      %v992 = vpop.permute.xlu0 %991
      %993 = vrot.lane.b32.xlu0 %v845, 16
      %v994 = vpop.permute.xlu0 %993
      %995 = vrot.lane.b32.xlu0 %v846, 16
      %v996 = vpop.permute.xlu0 %995
      %997 = vrot.lane.b32.xlu0 %v847, 16
      %v998 = vpop.permute.xlu0 %997
      %999 = vrot.lane.b32.xlu0 %v848, 16
      %v1000 = vpop.permute.xlu0 %999
      %1001 = vrot.lane.b32.xlu0 %v849, 16
      %v1002 = vpop.permute.xlu0 %1001
      %1003 = vrot.lane.b32.xlu0 %v850, 16
      %v1004 = vpop.permute.xlu0 %1003
      %1005 = vrot.lane.b32.xlu0 %v851, 16
      %v1006 = vpop.permute.xlu0 %1005
      %1007 = vrot.lane.b32.xlu0 %v852, 16
      %v1008 = vpop.permute.xlu0 %1007
      %1009 = vrot.lane.b32.xlu0 %v853, 16
      %v1010 = vpop.permute.xlu0 %1009
      %1011 = vrot.lane.b32.xlu0 %v854, 16
      %v1012 = vpop.permute.xlu0 %1011
      %1013 = vrot.lane.b32.xlu0 %v855, 16
      %v1014 = vpop.permute.xlu0 %1013
      %1015 = vrot.lane.b32.xlu0 %v856, 16
      %v1016 = vpop.permute.xlu0 %1015
      %1017 = vrot.lane.b32.xlu0 %v857, 16
      %v1018 = vpop.permute.xlu0 %1017
      %1019 = vrot.lane.b32.xlu0 %v858, 16
      %v1020 = vpop.permute.xlu0 %1019
      %1021 = vrot.lane.b32.xlu0 %v859, 16
      %v1022 = vpop.permute.xlu0 %1021
      %1023 = vrot.lane.b32.xlu0 %v860, 16
      %v1024 = vpop.permute.xlu0 %1023
      %1025 = vrot.lane.b32.xlu0 %v861, 16
      %v1026 = vpop.permute.xlu0 %1025
      %1027 = vrot.lane.b32.xlu0 %v862, 16
      %v1028 = vpop.permute.xlu0 %1027
      %1029 = vrot.lane.b32.xlu0 %v863, 16
      %v1030 = vpop.permute.xlu0 %1029
      %1031 = vrot.lane.b32.xlu0 %v864, 16
      %v1032 = vpop.permute.xlu0 %1031
      %1033 = vrot.lane.b32.xlu0 %v865, 16
      %v1034 = vpop.permute.xlu0 %1033
      %vm1067 = vcmask 261248
      %1068 = vst.msk [vmem:[#allocation2 + $0x20] sm:$0xff] %vm1067, %v972
      %1069 = vst.msk [vmem:[#allocation2 + $0x28] sm:$0xff] %vm1067, %v974
      %1070 = vst.msk [vmem:[#allocation2 + $0x30] sm:$0xff] %vm1067, %v976
      %1071 = vst.msk [vmem:[#allocation2 + $0x38] sm:$0xff] %vm1067, %v978
      %1072 = vst.msk [vmem:[#allocation2 + $0x40] sm:$0xff] %vm1067, %v980
      %1073 = vst.msk [vmem:[#allocation2 + $0x48] sm:$0xff] %vm1067, %v982
      %1074 = vst.msk [vmem:[#allocation2 + $0x50] sm:$0xff] %vm1067, %v984
      %1075 = vst.msk [vmem:[#allocation2 + $0x58] sm:$0xff] %vm1067, %v986
      %1076 = vst.msk [vmem:[#allocation2 + $0x60] sm:$0xff] %vm1067, %v988
      %1077 = vst.msk [vmem:[#allocation2 + $0x68] sm:$0xff] %vm1067, %v990
      %1078 = vst.msk [vmem:[#allocation2 + $0x70] sm:$0xff] %vm1067, %v992
      %1079 = vst.msk [vmem:[#allocation2 + $0x78] sm:$0xff] %vm1067, %v994
      %1080 = vst.msk [vmem:[#allocation2 + $0x80] sm:$0xff] %vm1067, %v996
      %1081 = vst.msk [vmem:[#allocation2 + $0x88] sm:$0xff] %vm1067, %v998
      %1082 = vst.msk [vmem:[#allocation2 + $0x90] sm:$0xff] %vm1067, %v1000
      %1083 = vst.msk [vmem:[#allocation2 + $0x98] sm:$0xff] %vm1067, %v1002
      %1084 = vst.msk [vmem:[#allocation2 + $0xa0] sm:$0xff] %vm1067, %v1004
      %1085 = vst.msk [vmem:[#allocation2 + $0xa8] sm:$0xff] %vm1067, %v1006
      %1086 = vst.msk [vmem:[#allocation2 + $0xb0] sm:$0xff] %vm1067, %v1008
      %1087 = vst.msk [vmem:[#allocation2 + $0xb8] sm:$0xff] %vm1067, %v1010
      %1088 = vst.msk [vmem:[#allocation2 + $0xc0] sm:$0xff] %vm1067, %v1012
      %1089 = vst.msk [vmem:[#allocation2 + $0xc8] sm:$0xff] %vm1067, %v1014
      %1090 = vst.msk [vmem:[#allocation2 + $0xd0] sm:$0xff] %vm1067, %v1016
      %1091 = vst.msk [vmem:[#allocation2 + $0xd8] sm:$0xff] %vm1067, %v1018
      %1092 = vst.msk [vmem:[#allocation2 + $0xe0] sm:$0xff] %vm1067, %v1020
      %1093 = vst.msk [vmem:[#allocation2 + $0xe8] sm:$0xff] %vm1067, %v1022
      %1094 = vst.msk [vmem:[#allocation2 + $0xf0] sm:$0xff] %vm1067, %v1024
      %1095 = vst.msk [vmem:[#allocation2 + $0xf8] sm:$0xff] %vm1067, %v1026
      %1096 = vst.msk [vmem:[#allocation2 + $0x100] sm:$0xff] %vm1067, %v1028
      %1097 = vst.msk [vmem:[#allocation2 + $0x108] sm:$0xff] %vm1067, %v1030
      %1098 = vst.msk [vmem:[#allocation2 + $0x110] sm:$0xff] %vm1067, %v1032
      %1099 = vst.msk [vmem:[#allocation2 + $0x118] sm:$0xff] %vm1067, %v1034
      %v1100 = vmul.f32 %v834, %v802
      %v1101 = vmul.f32 %v835, %v803
      %v1102 = vmul.f32 %v836, %v804
      %v1103 = vmul.f32 %v837, %v805
      %v1104 = vmul.f32 %v838, %v806
      %v1105 = vmul.f32 %v839, %v807
      %v1106 = vmul.f32 %v840, %v808
      %v1107 = vmul.f32 %v841, %v809
      %v1108 = vmul.f32 %v842, %v810
      %v1109 = vmul.f32 %v843, %v811
      %v1110 = vmul.f32 %v844, %v812
      %v1111 = vmul.f32 %v845, %v813
      %v1112 = vmul.f32 %v846, %v814
      %v1113 = vmul.f32 %v847, %v815
      %v1114 = vmul.f32 %v848, %v816
      %v1115 = vmul.f32 %v849, %v817
      %v1116 = vmul.f32 %v850, %v818
      %v1117 = vmul.f32 %v851, %v819
      %v1118 = vmul.f32 %v852, %v820
      %v1119 = vmul.f32 %v853, %v821
      %v1120 = vmul.f32 %v854, %v822
      %v1121 = vmul.f32 %v855, %v823
      %v1122 = vmul.f32 %v856, %v824
      %v1123 = vmul.f32 %v857, %v825
      %v1124 = vmul.f32 %v858, %v826
      %v1125 = vmul.f32 %v859, %v827
      %v1126 = vmul.f32 %v860, %v828
      %v1127 = vmul.f32 %v861, %v829
      %v1128 = vmul.f32 %v862, %v830
      %v1129 = vmul.f32 %v863, %v831
      %v1130 = vmul.f32 %v864, %v832
      %v1131 = vmul.f32 %v865, %v833
      %1164 = vrot.lane.b32.xlu0 %v1100, 32
      %v1165 = vpop.permute.xlu0 %1164
      %1166 = vrot.lane.b32.xlu0 %v1101, 32
      %v1167 = vpop.permute.xlu0 %1166
      %1168 = vrot.lane.b32.xlu0 %v1102, 32
      %v1169 = vpop.permute.xlu0 %1168
      %1170 = vrot.lane.b32.xlu0 %v1103, 32
      %v1171 = vpop.permute.xlu0 %1170
      %1172 = vrot.lane.b32.xlu0 %v1104, 32
      %v1173 = vpop.permute.xlu0 %1172
      %1174 = vrot.lane.b32.xlu0 %v1105, 32
      %v1175 = vpop.permute.xlu0 %1174
      %1176 = vrot.lane.b32.xlu0 %v1106, 32
      %v1177 = vpop.permute.xlu0 %1176
      %1178 = vrot.lane.b32.xlu0 %v1107, 32
      %v1179 = vpop.permute.xlu0 %1178
      %1180 = vrot.lane.b32.xlu0 %v1108, 32
      %v1181 = vpop.permute.xlu0 %1180
      %1182 = vrot.lane.b32.xlu0 %v1109, 32
      %v1183 = vpop.permute.xlu0 %1182
      %1184 = vrot.lane.b32.xlu0 %v1110, 32
      %v1185 = vpop.permute.xlu0 %1184
      %1186 = vrot.lane.b32.xlu0 %v1111, 32
      %v1187 = vpop.permute.xlu0 %1186
      %1188 = vrot.lane.b32.xlu0 %v1112, 32
      %v1189 = vpop.permute.xlu0 %1188
      %1190 = vrot.lane.b32.xlu0 %v1113, 32
      %v1191 = vpop.permute.xlu0 %1190
      %1192 = vrot.lane.b32.xlu0 %v1114, 32
      %v1193 = vpop.permute.xlu0 %1192
      %1194 = vrot.lane.b32.xlu0 %v1115, 32
      %v1195 = vpop.permute.xlu0 %1194
      %1196 = vrot.lane.b32.xlu0 %v1116, 32
      %v1197 = vpop.permute.xlu0 %1196
      %1198 = vrot.lane.b32.xlu0 %v1117, 32
      %v1199 = vpop.permute.xlu0 %1198
      %1200 = vrot.lane.b32.xlu0 %v1118, 32
      %v1201 = vpop.permute.xlu0 %1200
      %1202 = vrot.lane.b32.xlu0 %v1119, 32
      %v1203 = vpop.permute.xlu0 %1202
      %1204 = vrot.lane.b32.xlu0 %v1120, 32
      %v1205 = vpop.permute.xlu0 %1204
      %1206 = vrot.lane.b32.xlu0 %v1121, 32
      %v1207 = vpop.permute.xlu0 %1206
      %1208 = vrot.lane.b32.xlu0 %v1122, 32
      %v1209 = vpop.permute.xlu0 %1208
      %1210 = vrot.lane.b32.xlu0 %v1123, 32
      %v1211 = vpop.permute.xlu0 %1210
      %1212 = vrot.lane.b32.xlu0 %v1124, 32
      %v1213 = vpop.permute.xlu0 %1212
      %1214 = vrot.lane.b32.xlu0 %v1125, 32
      %v1215 = vpop.permute.xlu0 %1214
      %1216 = vrot.lane.b32.xlu0 %v1126, 32
      %v1217 = vpop.permute.xlu0 %1216
      %1218 = vrot.lane.b32.xlu0 %v1127, 32
      %v1219 = vpop.permute.xlu0 %1218
      %1220 = vrot.lane.b32.xlu0 %v1128, 32
      %v1221 = vpop.permute.xlu0 %1220
      %1222 = vrot.lane.b32.xlu0 %v1129, 32
      %v1223 = vpop.permute.xlu0 %1222
      %1224 = vrot.lane.b32.xlu0 %v1130, 32
      %v1225 = vpop.permute.xlu0 %1224
      %1226 = vrot.lane.b32.xlu0 %v1131, 32
      %v1227 = vpop.permute.xlu0 %1226
      %vm1260 = vcmask 392448
      %1261 = vst.msk [vmem:[#allocation2 + $0x1f] sm:$0xff] %vm1260, %v1165
      %1262 = vst.msk [vmem:[#allocation2 + $0x27] sm:$0xff] %vm1260, %v1167
      %1263 = vst.msk [vmem:[#allocation2 + $0x2f] sm:$0xff] %vm1260, %v1169
      %1264 = vst.msk [vmem:[#allocation2 + $0x37] sm:$0xff] %vm1260, %v1171
      %1265 = vst.msk [vmem:[#allocation2 + $0x3f] sm:$0xff] %vm1260, %v1173
      %1266 = vst.msk [vmem:[#allocation2 + $0x47] sm:$0xff] %vm1260, %v1175
      %1267 = vst.msk [vmem:[#allocation2 + $0x4f] sm:$0xff] %vm1260, %v1177
      %1268 = vst.msk [vmem:[#allocation2 + $0x57] sm:$0xff] %vm1260, %v1179
      %1269 = vst.msk [vmem:[#allocation2 + $0x5f] sm:$0xff] %vm1260, %v1181
      %1270 = vst.msk [vmem:[#allocation2 + $0x67] sm:$0xff] %vm1260, %v1183
      %1271 = vst.msk [vmem:[#allocation2 + $0x6f] sm:$0xff] %vm1260, %v1185
      %1272 = vst.msk [vmem:[#allocation2 + $0x77] sm:$0xff] %vm1260, %v1187
      %1273 = vst.msk [vmem:[#allocation2 + $0x7f] sm:$0xff] %vm1260, %v1189
      %1274 = vst.msk [vmem:[#allocation2 + $0x87] sm:$0xff] %vm1260, %v1191
      %1275 = vst.msk [vmem:[#allocation2 + $0x8f] sm:$0xff] %vm1260, %v1193
      %1276 = vst.msk [vmem:[#allocation2 + $0x97] sm:$0xff] %vm1260, %v1195
      %1277 = vst.msk [vmem:[#allocation2 + $0x9f] sm:$0xff] %vm1260, %v1197
      %1278 = vst.msk [vmem:[#allocation2 + $0xa7] sm:$0xff] %vm1260, %v1199
      %1279 = vst.msk [vmem:[#allocation2 + $0xaf] sm:$0xff] %vm1260, %v1201
      %1280 = vst.msk [vmem:[#allocation2 + $0xb7] sm:$0xff] %vm1260, %v1203
      %1281 = vst.msk [vmem:[#allocation2 + $0xbf] sm:$0xff] %vm1260, %v1205
      %1282 = vst.msk [vmem:[#allocation2 + $0xc7] sm:$0xff] %vm1260, %v1207
      %1283 = vst.msk [vmem:[#allocation2 + $0xcf] sm:$0xff] %vm1260, %v1209
      %1284 = vst.msk [vmem:[#allocation2 + $0xd7] sm:$0xff] %vm1260, %v1211
      %1285 = vst.msk [vmem:[#allocation2 + $0xdf] sm:$0xff] %vm1260, %v1213
      %1286 = vst.msk [vmem:[#allocation2 + $0xe7] sm:$0xff] %vm1260, %v1215
      %1287 = vst.msk [vmem:[#allocation2 + $0xef] sm:$0xff] %vm1260, %v1217
      %1288 = vst.msk [vmem:[#allocation2 + $0xf7] sm:$0xff] %vm1260, %v1219
      %1289 = vst.msk [vmem:[#allocation2 + $0xff] sm:$0xff] %vm1260, %v1221
      %1290 = vst.msk [vmem:[#allocation2 + $0x107] sm:$0xff] %vm1260, %v1223
      %1291 = vst.msk [vmem:[#allocation2 + $0x10f] sm:$0xff] %vm1260, %v1225
      %1292 = vst.msk [vmem:[#allocation2 + $0x117] sm:$0xff] %vm1260, %v1227
      %v1293 = vld [vmem:[#allocation2 + $0x10] sm:$0xff]
      %v1294 = vld [vmem:[#allocation2 + $0x18] sm:$0xff]
      %v1295 = vld [vmem:[#allocation2 + $0x20] sm:$0xff]
      %v1296 = vld [vmem:[#allocation2 + $0x28] sm:$0xff]
      %v1297 = vld [vmem:[#allocation2 + $0x30] sm:$0xff]
      %v1298 = vld [vmem:[#allocation2 + $0x38] sm:$0xff]
      %v1299 = vld [vmem:[#allocation2 + $0x40] sm:$0xff]
      %v1300 = vld [vmem:[#allocation2 + $0x48] sm:$0xff]
      %v1301 = vld [vmem:[#allocation2 + $0x50] sm:$0xff]
      %v1302 = vld [vmem:[#allocation2 + $0x58] sm:$0xff]
      %v1303 = vld [vmem:[#allocation2 + $0x60] sm:$0xff]
      %v1304 = vld [vmem:[#allocation2 + $0x68] sm:$0xff]
      %v1305 = vld [vmem:[#allocation2 + $0x70] sm:$0xff]
      %v1306 = vld [vmem:[#allocation2 + $0x78] sm:$0xff]
      %v1307 = vld [vmem:[#allocation2 + $0x80] sm:$0xff]
      %v1308 = vld [vmem:[#allocation2 + $0x88] sm:$0xff]
      %v1309 = vld [vmem:[#allocation2 + $0x90] sm:$0xff]
      %v1310 = vld [vmem:[#allocation2 + $0x98] sm:$0xff]
      %v1311 = vld [vmem:[#allocation2 + $0xa0] sm:$0xff]
      %v1312 = vld [vmem:[#allocation2 + $0xa8] sm:$0xff]
      %v1313 = vld [vmem:[#allocation2 + $0xb0] sm:$0xff]
      %v1314 = vld [vmem:[#allocation2 + $0xb8] sm:$0xff]
      %v1315 = vld [vmem:[#allocation2 + $0xc0] sm:$0xff]
      %v1316 = vld [vmem:[#allocation2 + $0xc8] sm:$0xff]
      %v1317 = vld [vmem:[#allocation2 + $0xd0] sm:$0xff]
      %v1318 = vld [vmem:[#allocation2 + $0xd8] sm:$0xff]
      %v1319 = vld [vmem:[#allocation2 + $0xe0] sm:$0xff]
      %v1320 = vld [vmem:[#allocation2 + $0xe8] sm:$0xff]
      %v1321 = vld [vmem:[#allocation2 + $0xf0] sm:$0xff]
      %v1322 = vld [vmem:[#allocation2 + $0xf8] sm:$0xff]
      %v1323 = vld [vmem:[#allocation2 + $0x100] sm:$0xff]
      %v1324 = vld [vmem:[#allocation2 + $0x108] sm:$0xff]
      %v1325 = vld [vmem:[%s1] sm:$0xff]
      %v1326 = vld [vmem:[%s1 + $0x8] sm:$0xff]
      %v1327 = vld [vmem:[%s1 + $0x10] sm:$0xff]
      %v1328 = vld [vmem:[%s1 + $0x18] sm:$0xff]
      %v1329 = vld [vmem:[%s1 + $0x20] sm:$0xff]
      %v1330 = vld [vmem:[%s1 + $0x28] sm:$0xff]
      %v1331 = vld [vmem:[#allocation2 + $0x110] sm:$0xff]
      %v1332 = vld [vmem:[#allocation2 + $0x118] sm:$0xff]
      %s1333 = scalar_lea.vmem %s1, 48
      %v1334 = vld [vmem:[%s1333] sm:$0xff]
      %v1335 = vld [vmem:[%s1333 + $0x8] sm:$0xff]
      %v1336 = vld [vmem:[%s1333 + $0x10] sm:$0xff]
      %v1337 = vld [vmem:[%s1333 + $0x18] sm:$0xff]
      %v1338 = vld [vmem:[%s1333 + $0x20] sm:$0xff]
      %v1339 = vld [vmem:[%s1333 + $0x28] sm:$0xff]
      %v1341 = vsel %vm866, %v1295, 0
      %v1344 = vsel %vm866, %v1296, 0
      %v1347 = vsel %vm866, %v1297, 0
      %v1350 = vsel %vm866, %v1298, 0
      %v1353 = vsel %vm866, %v1299, 0
      %v1356 = vsel %vm866, %v1300, 0
      %v1359 = vsel %vm866, %v1301, 0
      %v1362 = vsel %vm866, %v1302, 0
      %v1365 = vsel %vm866, %v1303, 0
      %v1368 = vsel %vm866, %v1304, 0
      %v1371 = vsel %vm866, %v1305, 0
      %v1374 = vsel %vm866, %v1306, 0
      %v1377 = vsel %vm866, %v1307, 0
      %v1380 = vsel %vm866, %v1308, 0
      %v1383 = vsel %vm866, %v1309, 0
      %v1386 = vsel %vm866, %v1310, 0
      %v1389 = vsel %vm866, %v1311, 0
      %v1392 = vsel %vm866, %v1312, 0
      %v1395 = vsel %vm866, %v1313, 0
      %v1398 = vsel %vm866, %v1314, 0
      %v1401 = vsel %vm866, %v1315, 0
      %v1404 = vsel %vm866, %v1316, 0
      %v1407 = vsel %vm866, %v1317, 0
      %v1410 = vsel %vm866, %v1318, 0
      %v1413 = vsel %vm866, %v1319, 0
      %v1416 = vsel %vm866, %v1320, 0
      %v1419 = vsel %vm866, %v1321, 0
      %v1422 = vsel %vm866, %v1322, 0
      %v1425 = vsel %vm866, %v1323, 0
      %v1428 = vsel %vm866, %v1324, 0
      %v1431 = vsel %vm866, %v1331, 0
      %v1434 = vsel %vm866, %v1332, 0
      %1436 = vmatprep.subr.mxu0 0.0
      %1437 = vmatpush1.msra.mxu0 %v1334
      %1438 = vmatprep.subr.mxu0 0.0
      %1439 = vmatpush1.msra.mxu0 %v1335
      %1440 = vmatprep.subr.mxu0 0.0
      %1441 = vmatpush1.msra.mxu0 %v1336
      %1442 = vmatprep.subr.mxu0 0.0
      %1443 = vmatpush1.msra.mxu0 %v1337
      %1444 = vmatprep.subr.mxu0 0.0
      %1445 = vmatpush1.msra.mxu0 %v1338
      %1446 = vmatprep.subr.mxu0 0.0
      %1447 = vmatpush1.msra.mxu0 %v1339
      %1448 = vmatprep.subr.mxu0 0.0
      %1449 = vmatpush1.msra.mxu0 0.0
      %1450 = vmatprep.subr.mxu0 0.0
      %1451 = vmatpush1.msra.mxu0 0.0
      %1452 = vmatprep.subr.mxu0 0.0
      %1453 = vmatpush1.msra.mxu0 0.0
      %1454 = vmatprep.subr.mxu0 0.0
      %1455 = vmatpush1.msra.mxu0 0.0
      %1456 = vmatprep.subr.mxu0 0.0
      %1457 = vmatpush1.msra.mxu0 0.0
      %1458 = vmatprep.subr.mxu0 0.0
      %1459 = vmatpush1.msra.mxu0 0.0
      %1460 = vmatprep.subr.mxu0 0.0
      %1461 = vmatpush1.msra.mxu0 0.0
      %1462 = vmatprep.subr.mxu0 0.0
      %1463 = vmatpush1.msra.mxu0 0.0
      %1464 = vmatprep.subr.mxu0 0.0
      %1465 = vmatpush1.msra.mxu0 0.0
      %1466 = vmatprep.subr.mxu0 0.0
      %1467 = vmatpush1.msra.mxu0 0.0
      %1468 = vmatprep.subr.mxu0 0.0
      %1469 = vmatpush1.msra.mxu0 0.0
      %1470 = vmatprep.subr.mxu0 0.0
      %1471 = vmatpush1.msra.mxu0 0.0
      %1472 = vmatprep.subr.mxu0 0.0
      %1473 = vmatpush1.msra.mxu0 0.0
      %1474 = vmatprep.subr.mxu0 0.0
      %1475 = vmatpush1.msra.mxu0 0.0
      %1476 = vmatprep.subr.mxu0 0.0
      %1477 = vmatpush1.msra.mxu0 0.0
      %1478 = vmatprep.subr.mxu0 0.0
      %1479 = vmatpush1.msra.mxu0 0.0
      %1480 = vmatprep.subr.mxu0 0.0
      %1481 = vmatpush1.msra.mxu0 0.0
      %1482 = vmatprep.subr.mxu0 0.0
      %1483 = vmatpush1.msra.mxu0 0.0
      %1484 = vmatprep.subr.mxu0 0.0
      %1485 = vmatpush1.msra.mxu0 0.0
      %1486 = vmatprep.subr.mxu0 0.0
      %1487 = vmatpush1.msra.mxu0 0.0
      %1488 = vmatprep.subr.mxu0 0.0
      %1489 = vmatpush1.msra.mxu0 0.0
      %1490 = vmatprep.subr.mxu0 0.0
      %1491 = vmatpush1.msra.mxu0 0.0
      %1492 = vmatprep.subr.mxu0 0.0
      %1493 = vmatpush1.msra.mxu0 0.0
      %1494 = vmatprep.subr.mxu0 0.0
      %1495 = vmatpush1.msra.mxu0 0.0
      %1496 = vmatprep.subr.mxu0 0.0
      %1497 = vmatpush1.msra.mxu0 0.0
      %1498 = vmatprep.subr.mxu0 0.0
      %1499 = vmatpush1.msra.mxu0 0.0
      %1500 = vmatprep.mubr.f32.mxu0 0.0
      %1501 = vmatmul.mubr.f32.gmra.mrb[0].mxu0 %v1341
      %v1502 = vpop.f32.mrb[0].mxu0
      %v1503 = vadd.f32 0.0, %v1502
      %v1504 = vpop.f32.mrb[0].mxu0
      %1505 = vmatprep.mubr.f32.mxu0 0.0
      %1506 = vmatmul.mubr.f32.gmra.mrb[0].mxu0 %v1344
      %v1507 = vpop.f32.mrb[0].mxu0
      %v1508 = vadd.f32 0.0, %v1507
      %v1509 = vpop.f32.mrb[0].mxu0
      %1510 = vmatprep.mubr.f32.mxu0 0.0
      %1511 = vmatmul.mubr.f32.gmra.mrb[0].mxu0 %v1347
      %v1512 = vpop.f32.mrb[0].mxu0
      %v1513 = vadd.f32 0.0, %v1512
      %v1514 = vpop.f32.mrb[0].mxu0
      %1515 = vmatprep.mubr.f32.mxu0 0.0
      %1516 = vmatmul.mubr.f32.gmra.mrb[0].mxu0 %v1350
      %v1517 = vpop.f32.mrb[0].mxu0
      %v1518 = vadd.f32 0.0, %v1517
      %v1519 = vpop.f32.mrb[0].mxu0
      %1520 = vmatprep.mubr.f32.mxu0 0.0
      %1521 = vmatmul.mubr.f32.gmra.mrb[0].mxu0 %v1353
      %v1522 = vpop.f32.mrb[0].mxu0
      %v1523 = vadd.f32 0.0, %v1522
      %v1524 = vpop.f32.mrb[0].mxu0
      %1525 = vmatprep.mubr.f32.mxu0 0.0
      %1526 = vmatmul.mubr.f32.gmra.mrb[0].mxu0 %v1356
      %v1527 = vpop.f32.mrb[0].mxu0
      %v1528 = vadd.f32 0.0, %v1527
      %v1529 = vpop.f32.mrb[0].mxu0
      %1530 = vmatprep.mubr.f32.mxu0 0.0
      %1531 = vmatmul.mubr.f32.gmra.mrb[0].mxu0 %v1359
      %v1532 = vpop.f32.mrb[0].mxu0
      %v1533 = vadd.f32 0.0, %v1532
      %v1534 = vpop.f32.mrb[0].mxu0
      %1535 = vmatprep.mubr.f32.mxu0 0.0
      %1536 = vmatmul.mubr.f32.gmra.mrb[0].mxu0 %v1362
      %v1537 = vpop.f32.mrb[0].mxu0
      %v1538 = vadd.f32 0.0, %v1537
      %v1539 = vpop.f32.mrb[0].mxu0
      %1540 = vmatprep.mubr.f32.mxu0 0.0
      %1541 = vmatmul.mubr.f32.gmra.mrb[0].mxu0 %v1365
      %v1542 = vpop.f32.mrb[0].mxu0
      %v1543 = vadd.f32 0.0, %v1542
      %v1544 = vpop.f32.mrb[0].mxu0
      %1545 = vmatprep.mubr.f32.mxu0 0.0
      %1546 = vmatmul.mubr.f32.gmra.mrb[0].mxu0 %v1368
      %v1547 = vpop.f32.mrb[0].mxu0
      %v1548 = vadd.f32 0.0, %v1547
      %v1549 = vpop.f32.mrb[0].mxu0
      %1550 = vmatprep.mubr.f32.mxu0 0.0
      %1551 = vmatmul.mubr.f32.gmra.mrb[0].mxu0 %v1371
      %v1552 = vpop.f32.mrb[0].mxu0
      %v1553 = vadd.f32 0.0, %v1552
      %v1554 = vpop.f32.mrb[0].mxu0
      %1555 = vmatprep.mubr.f32.mxu0 0.0
      %1556 = vmatmul.mubr.f32.gmra.mrb[0].mxu0 %v1374
      %v1557 = vpop.f32.mrb[0].mxu0
      %v1558 = vadd.f32 0.0, %v1557
      %v1559 = vpop.f32.mrb[0].mxu0
      %1560 = vmatprep.mubr.f32.mxu0 0.0
      %1561 = vmatmul.mubr.f32.gmra.mrb[0].mxu0 %v1377
      %v1562 = vpop.f32.mrb[0].mxu0
      %v1563 = vadd.f32 0.0, %v1562
      %v1564 = vpop.f32.mrb[0].mxu0
      %1565 = vmatprep.mubr.f32.mxu0 0.0
      %1566 = vmatmul.mubr.f32.gmra.mrb[0].mxu0 %v1380
      %v1567 = vpop.f32.mrb[0].mxu0
      %v1568 = vadd.f32 0.0, %v1567
      %v1569 = vpop.f32.mrb[0].mxu0
      %1570 = vmatprep.mubr.f32.mxu0 0.0
      %1571 = vmatmul.mubr.f32.gmra.mrb[0].mxu0 %v1383
      %v1572 = vpop.f32.mrb[0].mxu0
      %v1573 = vadd.f32 0.0, %v1572
      %v1574 = vpop.f32.mrb[0].mxu0
      %1575 = vmatprep.mubr.f32.mxu0 0.0
      %1576 = vmatmul.mubr.f32.gmra.mrb[0].mxu0 %v1386
      %v1577 = vpop.f32.mrb[0].mxu0
      %v1578 = vadd.f32 0.0, %v1577
      %v1579 = vpop.f32.mrb[0].mxu0
      %1580 = vmatprep.mubr.f32.mxu0 0.0
      %1581 = vmatmul.mubr.f32.gmra.mrb[0].mxu0 %v1389
      %v1582 = vpop.f32.mrb[0].mxu0
      %v1583 = vadd.f32 0.0, %v1582
      %v1584 = vpop.f32.mrb[0].mxu0
      %1585 = vmatprep.mubr.f32.mxu0 0.0
      %1586 = vmatmul.mubr.f32.gmra.mrb[0].mxu0 %v1392
      %v1587 = vpop.f32.mrb[0].mxu0
      %v1588 = vadd.f32 0.0, %v1587
      %v1589 = vpop.f32.mrb[0].mxu0
      %1590 = vmatprep.mubr.f32.mxu0 0.0
      %1591 = vmatmul.mubr.f32.gmra.mrb[0].mxu0 %v1395
      %v1592 = vpop.f32.mrb[0].mxu0
      %v1593 = vadd.f32 0.0, %v1592
      %v1594 = vpop.f32.mrb[0].mxu0
      %1595 = vmatprep.mubr.f32.mxu0 0.0
      %1596 = vmatmul.mubr.f32.gmra.mrb[0].mxu0 %v1398
      %v1597 = vpop.f32.mrb[0].mxu0
      %v1598 = vadd.f32 0.0, %v1597
      %v1599 = vpop.f32.mrb[0].mxu0
      %1600 = vmatprep.mubr.f32.mxu0 0.0
      %1601 = vmatmul.mubr.f32.gmra.mrb[0].mxu0 %v1401
      %v1602 = vpop.f32.mrb[0].mxu0
      %v1603 = vadd.f32 0.0, %v1602
      %v1604 = vpop.f32.mrb[0].mxu0
      %1605 = vmatprep.mubr.f32.mxu0 0.0
      %1606 = vmatmul.mubr.f32.gmra.mrb[0].mxu0 %v1404
      %v1607 = vpop.f32.mrb[0].mxu0
      %v1608 = vadd.f32 0.0, %v1607
      %v1609 = vpop.f32.mrb[0].mxu0
      %1610 = vmatprep.mubr.f32.mxu0 0.0
      %1611 = vmatmul.mubr.f32.gmra.mrb[0].mxu0 %v1407
      %v1612 = vpop.f32.mrb[0].mxu0
      %v1613 = vadd.f32 0.0, %v1612
      %v1614 = vpop.f32.mrb[0].mxu0
      %1615 = vmatprep.mubr.f32.mxu0 0.0
      %1616 = vmatmul.mubr.f32.gmra.mrb[0].mxu0 %v1410
      %v1617 = vpop.f32.mrb[0].mxu0
      %v1618 = vadd.f32 0.0, %v1617
      %v1619 = vpop.f32.mrb[0].mxu0
      %1620 = vmatprep.mubr.f32.mxu0 0.0
      %1621 = vmatmul.mubr.f32.gmra.mrb[0].mxu0 %v1413
      %v1622 = vpop.f32.mrb[0].mxu0
      %v1623 = vadd.f32 0.0, %v1622
      %v1624 = vpop.f32.mrb[0].mxu0
      %1625 = vmatprep.mubr.f32.mxu0 0.0
      %1626 = vmatmul.mubr.f32.gmra.mrb[0].mxu0 %v1416
      %v1627 = vpop.f32.mrb[0].mxu0
      %v1628 = vadd.f32 0.0, %v1627
      %v1629 = vpop.f32.mrb[0].mxu0
      %1630 = vmatprep.mubr.f32.mxu0 0.0
      %1631 = vmatmul.mubr.f32.gmra.mrb[0].mxu0 %v1419
      %v1632 = vpop.f32.mrb[0].mxu0
      %v1633 = vadd.f32 0.0, %v1632
      %v1634 = vpop.f32.mrb[0].mxu0
      %1635 = vmatprep.mubr.f32.mxu0 0.0
      %1636 = vmatmul.mubr.f32.gmra.mrb[0].mxu0 %v1422
      %v1637 = vpop.f32.mrb[0].mxu0
      %v1638 = vadd.f32 0.0, %v1637
      %v1639 = vpop.f32.mrb[0].mxu0
      %1640 = vmatprep.mubr.f32.mxu0 0.0
      %1641 = vmatmul.mubr.f32.gmra.mrb[0].mxu0 %v1425
      %v1642 = vpop.f32.mrb[0].mxu0
      %v1643 = vadd.f32 0.0, %v1642
      %v1644 = vpop.f32.mrb[0].mxu0
      %1645 = vmatprep.mubr.f32.mxu0 0.0
      %1646 = vmatmul.mubr.f32.gmra.mrb[0].mxu0 %v1428
      %v1647 = vpop.f32.mrb[0].mxu0
      %v1648 = vadd.f32 0.0, %v1647
      %v1649 = vpop.f32.mrb[0].mxu0
      %1650 = vmatprep.mubr.f32.mxu0 0.0
      %1651 = vmatmul.mubr.f32.gmra.mrb[0].mxu0 %v1431
      %v1652 = vpop.f32.mrb[0].mxu0
      %v1653 = vadd.f32 0.0, %v1652
      %v1654 = vpop.f32.mrb[0].mxu0
      %1655 = vmatprep.mubr.f32.mxu0 0.0
      %1656 = vmatmul.mubr.f32.gmra.mrb[0].mxu0 %v1434
      %v1657 = vpop.f32.mrb[0].mxu0
      %v1658 = vadd.f32 0.0, %v1657
      %v1659 = vpop.f32.mrb[0].mxu0
      %1660 = vdwg.mxu0
      %v1662 = vsel %vm866, %v1293, 0
      %v1665 = vsel %vm866, %v1294, 0
      %1667 = vmatprep.subr.mxu0 0.0
      %1668 = vmatpush1.msra.mxu0 %v1325
      %1669 = vmatprep.subr.mxu0 0.0
      %1670 = vmatpush1.msra.mxu0 %v1326
      %1671 = vmatprep.subr.mxu0 0.0
      %1672 = vmatpush1.msra.mxu0 %v1327
      %1673 = vmatprep.subr.mxu0 0.0
      %1674 = vmatpush1.msra.mxu0 %v1328
      %1675 = vmatprep.subr.mxu0 0.0
      %1676 = vmatpush1.msra.mxu0 %v1329
      %1677 = vmatprep.subr.mxu0 0.0
      %1678 = vmatpush1.msra.mxu0 %v1330
      %1679 = vmatprep.subr.mxu0 0.0
      %1680 = vmatpush1.msra.mxu0 0.0
      %1681 = vmatprep.subr.mxu0 0.0
      %1682 = vmatpush1.msra.mxu0 0.0
      %1683 = vmatprep.subr.mxu0 0.0
      %1684 = vmatpush1.msra.mxu0 0.0
      %1685 = vmatprep.subr.mxu0 0.0
      %1686 = vmatpush1.msra.mxu0 0.0
      %1687 = vmatprep.subr.mxu0 0.0
      %1688 = vmatpush1.msra.mxu0 0.0
      %1689 = vmatprep.subr.mxu0 0.0
      %1690 = vmatpush1.msra.mxu0 0.0
      %1691 = vmatprep.subr.mxu0 0.0
      %1692 = vmatpush1.msra.mxu0 0.0
      %1693 = vmatprep.subr.mxu0 0.0
      %1694 = vmatpush1.msra.mxu0 0.0
      %1695 = vmatprep.subr.mxu0 0.0
      %1696 = vmatpush1.msra.mxu0 0.0
      %1697 = vmatprep.subr.mxu0 0.0
      %1698 = vmatpush1.msra.mxu0 0.0
      %1699 = vmatprep.subr.mxu0 0.0
      %1700 = vmatpush1.msra.mxu0 0.0
      %1701 = vmatprep.subr.mxu0 0.0
      %1702 = vmatpush1.msra.mxu0 0.0
      %1703 = vmatprep.subr.mxu0 0.0
      %1704 = vmatpush1.msra.mxu0 0.0
      %1705 = vmatprep.subr.mxu0 0.0
      %1706 = vmatpush1.msra.mxu0 0.0
      %1707 = vmatprep.subr.mxu0 0.0
      %1708 = vmatpush1.msra.mxu0 0.0
      %1709 = vmatprep.subr.mxu0 0.0
      %1710 = vmatpush1.msra.mxu0 0.0
      %1711 = vmatprep.subr.mxu0 0.0
      %1712 = vmatpush1.msra.mxu0 0.0
      %1713 = vmatprep.subr.mxu0 0.0
      %1714 = vmatpush1.msra.mxu0 0.0
      %1715 = vmatprep.subr.mxu0 0.0
      %1716 = vmatpush1.msra.mxu0 0.0
      %1717 = vmatprep.subr.mxu0 0.0
      %1718 = vmatpush1.msra.mxu0 0.0
      %1719 = vmatprep.subr.mxu0 0.0
      %1720 = vmatpush1.msra.mxu0 0.0
      %1721 = vmatprep.subr.mxu0 0.0
      %1722 = vmatpush1.msra.mxu0 0.0
      %1723 = vmatprep.subr.mxu0 0.0
      %1724 = vmatpush1.msra.mxu0 0.0
      %1725 = vmatprep.subr.mxu0 0.0
      %1726 = vmatpush1.msra.mxu0 0.0
      %1727 = vmatprep.subr.mxu0 0.0
      %1728 = vmatpush1.msra.mxu0 0.0
      %1729 = vmatprep.subr.mxu0 0.0
      %1730 = vmatpush1.msra.mxu0 0.0
      %1731 = vmatprep.mubr.f32.mxu0 0.0
      %1732 = vmatmul.mubr.f32.gmra.mrb[0].mxu0 %v1662
      %v1733 = vpop.f32.mrb[0].mxu0
      %v1734 = vadd.f32 %v1503, %v1733
      %v1735 = vpop.f32.mrb[0].mxu0
      %1736 = vmatprep.mubr.f32.mxu0 0.0
      %1737 = vmatmul.mubr.f32.gmra.mrb[0].mxu0 %v1665
      %v1738 = vpop.f32.mrb[0].mxu0
      %v1739 = vadd.f32 %v1508, %v1738
      %v1740 = vpop.f32.mrb[0].mxu0
      %1741 = vmatprep.mubr.f32.mxu0 0.0
      %1742 = vmatmul.mubr.f32.gmra.mrb[0].mxu0 %v1341
      %v1743 = vpop.f32.mrb[0].mxu0
      %v1744 = vadd.f32 %v1513, %v1743
      %v1745 = vpop.f32.mrb[0].mxu0
      %1746 = vmatprep.mubr.f32.mxu0 0.0
      %1747 = vmatmul.mubr.f32.gmra.mrb[0].mxu0 %v1344
      %v1748 = vpop.f32.mrb[0].mxu0
      %v1749 = vadd.f32 %v1518, %v1748
      %v1750 = vpop.f32.mrb[0].mxu0
      %1751 = vmatprep.mubr.f32.mxu0 0.0
      %1752 = vmatmul.mubr.f32.gmra.mrb[0].mxu0 %v1347
      %v1753 = vpop.f32.mrb[0].mxu0
      %v1754 = vadd.f32 %v1523, %v1753
      %v1755 = vpop.f32.mrb[0].mxu0
      %1756 = vmatprep.mubr.f32.mxu0 0.0
      %1757 = vmatmul.mubr.f32.gmra.mrb[0].mxu0 %v1350
      %v1758 = vpop.f32.mrb[0].mxu0
      %v1759 = vadd.f32 %v1528, %v1758
      %v1760 = vpop.f32.mrb[0].mxu0
      %1761 = vmatprep.mubr.f32.mxu0 0.0
      %1762 = vmatmul.mubr.f32.gmra.mrb[0].mxu0 %v1353
      %v1763 = vpop.f32.mrb[0].mxu0
      %v1764 = vadd.f32 %v1533, %v1763
      %v1765 = vpop.f32.mrb[0].mxu0
      %1766 = vmatprep.mubr.f32.mxu0 0.0
      %1767 = vmatmul.mubr.f32.gmra.mrb[0].mxu0 %v1356
      %v1768 = vpop.f32.mrb[0].mxu0
      %v1769 = vadd.f32 %v1538, %v1768
      %v1770 = vpop.f32.mrb[0].mxu0
      %1771 = vmatprep.mubr.f32.mxu0 0.0
      %1772 = vmatmul.mubr.f32.gmra.mrb[0].mxu0 %v1359
      %v1773 = vpop.f32.mrb[0].mxu0
      %v1774 = vadd.f32 %v1543, %v1773
      %v1775 = vpop.f32.mrb[0].mxu0
      %1776 = vmatprep.mubr.f32.mxu0 0.0
      %1777 = vmatmul.mubr.f32.gmra.mrb[0].mxu0 %v1362
      %v1778 = vpop.f32.mrb[0].mxu0
      %v1779 = vadd.f32 %v1548, %v1778
      %v1780 = vpop.f32.mrb[0].mxu0
      %1781 = vmatprep.mubr.f32.mxu0 0.0
      %1782 = vmatmul.mubr.f32.gmra.mrb[0].mxu0 %v1365
      %v1783 = vpop.f32.mrb[0].mxu0
      %v1784 = vadd.f32 %v1553, %v1783
      %v1785 = vpop.f32.mrb[0].mxu0
      %1786 = vmatprep.mubr.f32.mxu0 0.0
      %1787 = vmatmul.mubr.f32.gmra.mrb[0].mxu0 %v1368
      %v1788 = vpop.f32.mrb[0].mxu0
      %v1789 = vadd.f32 %v1558, %v1788
      %v1790 = vpop.f32.mrb[0].mxu0
      %1791 = vmatprep.mubr.f32.mxu0 0.0
      %1792 = vmatmul.mubr.f32.gmra.mrb[0].mxu0 %v1371
      %v1793 = vpop.f32.mrb[0].mxu0
      %v1794 = vadd.f32 %v1563, %v1793
      %v1795 = vpop.f32.mrb[0].mxu0
      %1796 = vmatprep.mubr.f32.mxu0 0.0
      %1797 = vmatmul.mubr.f32.gmra.mrb[0].mxu0 %v1374
      %v1798 = vpop.f32.mrb[0].mxu0
      %v1799 = vadd.f32 %v1568, %v1798
      %v1800 = vpop.f32.mrb[0].mxu0
      %1801 = vmatprep.mubr.f32.mxu0 0.0
      %1802 = vmatmul.mubr.f32.gmra.mrb[0].mxu0 %v1377
      %v1803 = vpop.f32.mrb[0].mxu0
      %v1804 = vadd.f32 %v1573, %v1803
      %v1805 = vpop.f32.mrb[0].mxu0
      %1806 = vmatprep.mubr.f32.mxu0 0.0
      %1807 = vmatmul.mubr.f32.gmra.mrb[0].mxu0 %v1380
      %v1808 = vpop.f32.mrb[0].mxu0
      %v1809 = vadd.f32 %v1578, %v1808
      %v1810 = vpop.f32.mrb[0].mxu0
      %1811 = vmatprep.mubr.f32.mxu0 0.0
      %1812 = vmatmul.mubr.f32.gmra.mrb[0].mxu0 %v1383
      %v1813 = vpop.f32.mrb[0].mxu0
      %v1814 = vadd.f32 %v1583, %v1813
      %v1815 = vpop.f32.mrb[0].mxu0
      %1816 = vmatprep.mubr.f32.mxu0 0.0
      %1817 = vmatmul.mubr.f32.gmra.mrb[0].mxu0 %v1386
      %v1818 = vpop.f32.mrb[0].mxu0
      %v1819 = vadd.f32 %v1588, %v1818
      %v1820 = vpop.f32.mrb[0].mxu0
      %1821 = vmatprep.mubr.f32.mxu0 0.0
      %1822 = vmatmul.mubr.f32.gmra.mrb[0].mxu0 %v1389
      %v1823 = vpop.f32.mrb[0].mxu0
      %v1824 = vadd.f32 %v1593, %v1823
      %v1825 = vpop.f32.mrb[0].mxu0
      %1826 = vmatprep.mubr.f32.mxu0 0.0
      %1827 = vmatmul.mubr.f32.gmra.mrb[0].mxu0 %v1392
      %v1828 = vpop.f32.mrb[0].mxu0
      %v1829 = vadd.f32 %v1598, %v1828
      %v1830 = vpop.f32.mrb[0].mxu0
      %1831 = vmatprep.mubr.f32.mxu0 0.0
      %1832 = vmatmul.mubr.f32.gmra.mrb[0].mxu0 %v1395
      %v1833 = vpop.f32.mrb[0].mxu0
      %v1834 = vadd.f32 %v1603, %v1833
      %v1835 = vpop.f32.mrb[0].mxu0
      %1836 = vmatprep.mubr.f32.mxu0 0.0
      %1837 = vmatmul.mubr.f32.gmra.mrb[0].mxu0 %v1398
      %v1838 = vpop.f32.mrb[0].mxu0
      %v1839 = vadd.f32 %v1608, %v1838
      %v1840 = vpop.f32.mrb[0].mxu0
      %1841 = vmatprep.mubr.f32.mxu0 0.0
      %1842 = vmatmul.mubr.f32.gmra.mrb[0].mxu0 %v1401
      %v1843 = vpop.f32.mrb[0].mxu0
      %v1844 = vadd.f32 %v1613, %v1843
      %v1845 = vpop.f32.mrb[0].mxu0
      %1846 = vmatprep.mubr.f32.mxu0 0.0
      %1847 = vmatmul.mubr.f32.gmra.mrb[0].mxu0 %v1404
      %v1848 = vpop.f32.mrb[0].mxu0
      %v1849 = vadd.f32 %v1618, %v1848
      %v1850 = vpop.f32.mrb[0].mxu0
      %1851 = vmatprep.mubr.f32.mxu0 0.0
      %1852 = vmatmul.mubr.f32.gmra.mrb[0].mxu0 %v1407
      %v1853 = vpop.f32.mrb[0].mxu0
      %v1854 = vadd.f32 %v1623, %v1853
      %v1855 = vpop.f32.mrb[0].mxu0
      %1856 = vmatprep.mubr.f32.mxu0 0.0
      %1857 = vmatmul.mubr.f32.gmra.mrb[0].mxu0 %v1410
      %v1858 = vpop.f32.mrb[0].mxu0
      %v1859 = vadd.f32 %v1628, %v1858
      %v1860 = vpop.f32.mrb[0].mxu0
      %1861 = vmatprep.mubr.f32.mxu0 0.0
      %1862 = vmatmul.mubr.f32.gmra.mrb[0].mxu0 %v1413
      %v1863 = vpop.f32.mrb[0].mxu0
      %v1864 = vadd.f32 %v1633, %v1863
      %v1865 = vpop.f32.mrb[0].mxu0
      %1866 = vmatprep.mubr.f32.mxu0 0.0
      %1867 = vmatmul.mubr.f32.gmra.mrb[0].mxu0 %v1416
      %v1868 = vpop.f32.mrb[0].mxu0
      %v1869 = vadd.f32 %v1638, %v1868
      %v1870 = vpop.f32.mrb[0].mxu0
      %1871 = vmatprep.mubr.f32.mxu0 0.0
      %1872 = vmatmul.mubr.f32.gmra.mrb[0].mxu0 %v1419
      %v1873 = vpop.f32.mrb[0].mxu0
      %v1874 = vadd.f32 %v1643, %v1873
      %v1875 = vpop.f32.mrb[0].mxu0
      %1876 = vmatprep.mubr.f32.mxu0 0.0
      %1877 = vmatmul.mubr.f32.gmra.mrb[0].mxu0 %v1422
      %v1878 = vpop.f32.mrb[0].mxu0
      %v1879 = vadd.f32 %v1648, %v1878
      %v1880 = vpop.f32.mrb[0].mxu0
      %1881 = vmatprep.mubr.f32.mxu0 0.0
      %1882 = vmatmul.mubr.f32.gmra.mrb[0].mxu0 %v1425
      %v1883 = vpop.f32.mrb[0].mxu0
      %v1884 = vadd.f32 %v1653, %v1883
      %v1885 = vpop.f32.mrb[0].mxu0
      %1886 = vmatprep.mubr.f32.mxu0 0.0
      %1887 = vmatmul.mubr.f32.gmra.mrb[0].mxu0 %v1428
      %v1888 = vpop.f32.mrb[0].mxu0
      %v1889 = vadd.f32 %v1658, %v1888
      %v1890 = vpop.f32.mrb[0].mxu0
      %1891 = vdwg.mxu0
      %v1892 = vld [vmem:[#allocation2 + $0x30] sm:$0xff]
      %v1893 = vld [vmem:[#allocation2 + $0x38] sm:$0xff]
      %v1894 = vld [vmem:[#allocation2 + $0x40] sm:$0xff]
      %v1895 = vld [vmem:[#allocation2 + $0x48] sm:$0xff]
      %v1896 = vld [vmem:[#allocation2 + $0x50] sm:$0xff]
      %v1897 = vld [vmem:[#allocation2 + $0x58] sm:$0xff]
      %v1898 = vld [vmem:[#allocation2 + $0x60] sm:$0xff]
      %v1899 = vld [vmem:[#allocation2 + $0x68] sm:$0xff]
      %v1900 = vld [vmem:[#allocation2 + $0x70] sm:$0xff]
      %v1901 = vld [vmem:[#allocation2 + $0x78] sm:$0xff]
      %v1902 = vld [vmem:[#allocation2 + $0x80] sm:$0xff]
      %v1903 = vld [vmem:[#allocation2 + $0x88] sm:$0xff]
      %v1904 = vld [vmem:[#allocation2 + $0x90] sm:$0xff]
      %v1905 = vld [vmem:[#allocation2 + $0x98] sm:$0xff]
      %v1906 = vld [vmem:[#allocation2 + $0xa0] sm:$0xff]
      %v1907 = vld [vmem:[#allocation2 + $0xa8] sm:$0xff]
      %v1908 = vld [vmem:[#allocation2 + $0xb0] sm:$0xff]
      %v1909 = vld [vmem:[#allocation2 + $0xb8] sm:$0xff]
      %v1910 = vld [vmem:[#allocation2 + $0xc0] sm:$0xff]
      %v1911 = vld [vmem:[#allocation2 + $0xc8] sm:$0xff]
      %v1912 = vld [vmem:[#allocation2 + $0xd0] sm:$0xff]
      %v1913 = vld [vmem:[#allocation2 + $0xd8] sm:$0xff]
      %v1914 = vld [vmem:[#allocation2 + $0xe0] sm:$0xff]
      %v1915 = vld [vmem:[#allocation2 + $0xe8] sm:$0xff]
      %v1916 = vld [vmem:[#allocation2 + $0xf0] sm:$0xff]
      %v1917 = vld [vmem:[#allocation2 + $0xf8] sm:$0xff]
      %v1918 = vld [vmem:[#allocation2 + $0x100] sm:$0xff]
      %v1919 = vld [vmem:[#allocation2 + $0x108] sm:$0xff]
      %v1920 = vld [vmem:[#allocation2 + $0x110] sm:$0xff]
      %v1921 = vld [vmem:[#allocation2 + $0x118] sm:$0xff]
      %v1922 = vld [vmem:[#allocation2 + $0x120] sm:$0xff]
      %v1923 = vld [vmem:[#allocation2 + $0x128] sm:$0xff]
      %s1924 = scalar_lea.vmem %s1, 96
      %v1925 = vld [vmem:[%s1924] sm:$0xff]
      %v1926 = vld [vmem:[%s1924 + $0x8] sm:$0xff]
      %v1927 = vld [vmem:[%s1924 + $0x10] sm:$0xff]
      %v1928 = vld [vmem:[%s1924 + $0x18] sm:$0xff]
      %v1929 = vld [vmem:[%s1924 + $0x20] sm:$0xff]
      %v1930 = vld [vmem:[%s1924 + $0x28] sm:$0xff]
      %v1932 = vsel %vm866, %v1892, 0
      %v1935 = vsel %vm866, %v1893, 0
      %v1938 = vsel %vm866, %v1894, 0
      %v1941 = vsel %vm866, %v1895, 0
      %v1944 = vsel %vm866, %v1896, 0
      %v1947 = vsel %vm866, %v1897, 0
      %v1950 = vsel %vm866, %v1898, 0
      %v1953 = vsel %vm866, %v1899, 0
      %v1956 = vsel %vm866, %v1900, 0
      %v1959 = vsel %vm866, %v1901, 0
      %v1962 = vsel %vm866, %v1902, 0
      %v1965 = vsel %vm866, %v1903, 0
      %v1968 = vsel %vm866, %v1904, 0
      %v1971 = vsel %vm866, %v1905, 0
      %v1974 = vsel %vm866, %v1906, 0
      %v1977 = vsel %vm866, %v1907, 0
      %v1980 = vsel %vm866, %v1908, 0
      %v1983 = vsel %vm866, %v1909, 0
      %v1986 = vsel %vm866, %v1910, 0
      %v1989 = vsel %vm866, %v1911, 0
      %v1992 = vsel %vm866, %v1912, 0
      %v1995 = vsel %vm866, %v1913, 0
      %v1998 = vsel %vm866, %v1914, 0
      %v2001 = vsel %vm866, %v1915, 0
      %v2004 = vsel %vm866, %v1916, 0
      %v2007 = vsel %vm866, %v1917, 0
      %v2010 = vsel %vm866, %v1918, 0
      %v2013 = vsel %vm866, %v1919, 0
      %v2016 = vsel %vm866, %v1920, 0
      %v2019 = vsel %vm866, %v1921, 0
      %v2022 = vsel %vm866, %v1922, 0
      %v2025 = vsel %vm866, %v1923, 0
      %2027 = vmatprep.subr.mxu0 0.0
      %2028 = vmatpush1.msra.mxu0 %v1925
      %2029 = vmatprep.subr.mxu0 0.0
      %2030 = vmatpush1.msra.mxu0 %v1926
      %2031 = vmatprep.subr.mxu0 0.0
      %2032 = vmatpush1.msra.mxu0 %v1927
      %2033 = vmatprep.subr.mxu0 0.0
      %2034 = vmatpush1.msra.mxu0 %v1928
      %2035 = vmatprep.subr.mxu0 0.0
      %2036 = vmatpush1.msra.mxu0 %v1929
      %2037 = vmatprep.subr.mxu0 0.0
      %2038 = vmatpush1.msra.mxu0 %v1930
      %2039 = vmatprep.subr.mxu0 0.0
      %2040 = vmatpush1.msra.mxu0 0.0
      %2041 = vmatprep.subr.mxu0 0.0
      %2042 = vmatpush1.msra.mxu0 0.0
      %2043 = vmatprep.subr.mxu0 0.0
      %2044 = vmatpush1.msra.mxu0 0.0
      %2045 = vmatprep.subr.mxu0 0.0
      %2046 = vmatpush1.msra.mxu0 0.0
      %2047 = vmatprep.subr.mxu0 0.0
      %2048 = vmatpush1.msra.mxu0 0.0
      %2049 = vmatprep.subr.mxu0 0.0
      %2050 = vmatpush1.msra.mxu0 0.0
      %2051 = vmatprep.subr.mxu0 0.0
      %2052 = vmatpush1.msra.mxu0 0.0
      %2053 = vmatprep.subr.mxu0 0.0
      %2054 = vmatpush1.msra.mxu0 0.0
      %2055 = vmatprep.subr.mxu0 0.0
      %2056 = vmatpush1.msra.mxu0 0.0
      %2057 = vmatprep.subr.mxu0 0.0
      %2058 = vmatpush1.msra.mxu0 0.0
      %2059 = vmatprep.subr.mxu0 0.0
      %2060 = vmatpush1.msra.mxu0 0.0
      %2061 = vmatprep.subr.mxu0 0.0
      %2062 = vmatpush1.msra.mxu0 0.0
      %2063 = vmatprep.subr.mxu0 0.0
      %2064 = vmatpush1.msra.mxu0 0.0
      %2065 = vmatprep.subr.mxu0 0.0
      %2066 = vmatpush1.msra.mxu0 0.0
      %2067 = vmatprep.subr.mxu0 0.0
      %2068 = vmatpush1.msra.mxu0 0.0
      %2069 = vmatprep.subr.mxu0 0.0
      %2070 = vmatpush1.msra.mxu0 0.0
      %2071 = vmatprep.subr.mxu0 0.0
      %2072 = vmatpush1.msra.mxu0 0.0
      %2073 = vmatprep.subr.mxu0 0.0
      %2074 = vmatpush1.msra.mxu0 0.0
      %2075 = vmatprep.subr.mxu0 0.0
      %2076 = vmatpush1.msra.mxu0 0.0
      %2077 = vmatprep.subr.mxu0 0.0
      %2078 = vmatpush1.msra.mxu0 0.0
      %2079 = vmatprep.subr.mxu0 0.0
      %2080 = vmatpush1.msra.mxu0 0.0
      %2081 = vmatprep.subr.mxu0 0.0
      %2082 = vmatpush1.msra.mxu0 0.0
      %2083 = vmatprep.subr.mxu0 0.0
      %2084 = vmatpush1.msra.mxu0 0.0
      %2085 = vmatprep.subr.mxu0 0.0
      %2086 = vmatpush1.msra.mxu0 0.0
      %2087 = vmatprep.subr.mxu0 0.0
      %2088 = vmatpush1.msra.mxu0 0.0
      %2089 = vmatprep.subr.mxu0 0.0
      %2090 = vmatpush1.msra.mxu0 0.0
      %2091 = vmatprep.mubr.f32.mxu0 0.0
      %2092 = vmatmul.mubr.f32.gmra.mrb[0].mxu0 %v1932
      %v2093 = vpop.f32.mrb[0].mxu0
      %v2094 = vadd.f32 0.0, %v2093
      %v2095 = vpop.f32.mrb[0].mxu0
      %2096 = vmatprep.mubr.f32.mxu0 0.0
      %2097 = vmatmul.mubr.f32.gmra.mrb[0].mxu0 %v1935
      %v2098 = vpop.f32.mrb[0].mxu0
      %v2099 = vadd.f32 0.0, %v2098
      %v2100 = vpop.f32.mrb[0].mxu0
      %2101 = vmatprep.mubr.f32.mxu0 0.0
      %2102 = vmatmul.mubr.f32.gmra.mrb[0].mxu0 %v1938
      %v2103 = vpop.f32.mrb[0].mxu0
      %v2104 = vadd.f32 0.0, %v2103
      %v2105 = vpop.f32.mrb[0].mxu0
      %2106 = vmatprep.mubr.f32.mxu0 0.0
      %2107 = vmatmul.mubr.f32.gmra.mrb[0].mxu0 %v1941
      %v2108 = vpop.f32.mrb[0].mxu0
      %v2109 = vadd.f32 0.0, %v2108
      %v2110 = vpop.f32.mrb[0].mxu0
      %2111 = vmatprep.mubr.f32.mxu0 0.0
      %2112 = vmatmul.mubr.f32.gmra.mrb[0].mxu0 %v1944
      %v2113 = vpop.f32.mrb[0].mxu0
      %v2114 = vadd.f32 0.0, %v2113
      %v2115 = vpop.f32.mrb[0].mxu0
      %2116 = vmatprep.mubr.f32.mxu0 0.0
      %2117 = vmatmul.mubr.f32.gmra.mrb[0].mxu0 %v1947
      %v2118 = vpop.f32.mrb[0].mxu0
      %v2119 = vadd.f32 0.0, %v2118
      %v2120 = vpop.f32.mrb[0].mxu0
      %2121 = vmatprep.mubr.f32.mxu0 0.0
      %2122 = vmatmul.mubr.f32.gmra.mrb[0].mxu0 %v1950
      %v2123 = vpop.f32.mrb[0].mxu0
      %v2124 = vadd.f32 0.0, %v2123
      %v2125 = vpop.f32.mrb[0].mxu0
      %2126 = vmatprep.mubr.f32.mxu0 0.0
      %2127 = vmatmul.mubr.f32.gmra.mrb[0].mxu0 %v1953
      %v2128 = vpop.f32.mrb[0].mxu0
      %v2129 = vadd.f32 0.0, %v2128
      %v2130 = vpop.f32.mrb[0].mxu0
      %2131 = vmatprep.mubr.f32.mxu0 0.0
      %2132 = vmatmul.mubr.f32.gmra.mrb[0].mxu0 %v1956
      %v2133 = vpop.f32.mrb[0].mxu0
      %v2134 = vadd.f32 0.0, %v2133
      %v2135 = vpop.f32.mrb[0].mxu0
      %2136 = vmatprep.mubr.f32.mxu0 0.0
      %2137 = vmatmul.mubr.f32.gmra.mrb[0].mxu0 %v1959
      %v2138 = vpop.f32.mrb[0].mxu0
      %v2139 = vadd.f32 0.0, %v2138
      %v2140 = vpop.f32.mrb[0].mxu0
      %2141 = vmatprep.mubr.f32.mxu0 0.0
      %2142 = vmatmul.mubr.f32.gmra.mrb[0].mxu0 %v1962
      %v2143 = vpop.f32.mrb[0].mxu0
      %v2144 = vadd.f32 0.0, %v2143
      %v2145 = vpop.f32.mrb[0].mxu0
      %2146 = vmatprep.mubr.f32.mxu0 0.0
      %2147 = vmatmul.mubr.f32.gmra.mrb[0].mxu0 %v1965
      %v2148 = vpop.f32.mrb[0].mxu0
      %v2149 = vadd.f32 0.0, %v2148
      %v2150 = vpop.f32.mrb[0].mxu0
      %2151 = vmatprep.mubr.f32.mxu0 0.0
      %2152 = vmatmul.mubr.f32.gmra.mrb[0].mxu0 %v1968
      %v2153 = vpop.f32.mrb[0].mxu0
      %v2154 = vadd.f32 0.0, %v2153
      %v2155 = vpop.f32.mrb[0].mxu0
      %2156 = vmatprep.mubr.f32.mxu0 0.0
      %2157 = vmatmul.mubr.f32.gmra.mrb[0].mxu0 %v1971
      %v2158 = vpop.f32.mrb[0].mxu0
      %v2159 = vadd.f32 0.0, %v2158
      %v2160 = vpop.f32.mrb[0].mxu0
      %2161 = vmatprep.mubr.f32.mxu0 0.0
      %2162 = vmatmul.mubr.f32.gmra.mrb[0].mxu0 %v1974
      %v2163 = vpop.f32.mrb[0].mxu0
      %v2164 = vadd.f32 0.0, %v2163
      %v2165 = vpop.f32.mrb[0].mxu0
      %2166 = vmatprep.mubr.f32.mxu0 0.0
      %2167 = vmatmul.mubr.f32.gmra.mrb[0].mxu0 %v1977
      %v2168 = vpop.f32.mrb[0].mxu0
      %v2169 = vadd.f32 0.0, %v2168
      %v2170 = vpop.f32.mrb[0].mxu0
      %2171 = vmatprep.mubr.f32.mxu0 0.0
      %2172 = vmatmul.mubr.f32.gmra.mrb[0].mxu0 %v1980
      %v2173 = vpop.f32.mrb[0].mxu0
      %v2174 = vadd.f32 0.0, %v2173
      %v2175 = vpop.f32.mrb[0].mxu0
      %2176 = vmatprep.mubr.f32.mxu0 0.0
      %2177 = vmatmul.mubr.f32.gmra.mrb[0].mxu0 %v1983
      %v2178 = vpop.f32.mrb[0].mxu0
      %v2179 = vadd.f32 0.0, %v2178
      %v2180 = vpop.f32.mrb[0].mxu0
      %2181 = vmatprep.mubr.f32.mxu0 0.0
      %2182 = vmatmul.mubr.f32.gmra.mrb[0].mxu0 %v1986
      %v2183 = vpop.f32.mrb[0].mxu0
      %v2184 = vadd.f32 0.0, %v2183
      %v2185 = vpop.f32.mrb[0].mxu0
      %2186 = vmatprep.mubr.f32.mxu0 0.0
      %2187 = vmatmul.mubr.f32.gmra.mrb[0].mxu0 %v1989
      %v2188 = vpop.f32.mrb[0].mxu0
      %v2189 = vadd.f32 0.0, %v2188
      %v2190 = vpop.f32.mrb[0].mxu0
      %2191 = vmatprep.mubr.f32.mxu0 0.0
      %2192 = vmatmul.mubr.f32.gmra.mrb[0].mxu0 %v1992
      %v2193 = vpop.f32.mrb[0].mxu0
      %v2194 = vadd.f32 0.0, %v2193
      %v2195 = vpop.f32.mrb[0].mxu0
      %2196 = vmatprep.mubr.f32.mxu0 0.0
      %2197 = vmatmul.mubr.f32.gmra.mrb[0].mxu0 %v1995
      %v2198 = vpop.f32.mrb[0].mxu0
      %v2199 = vadd.f32 0.0, %v2198
      %v2200 = vpop.f32.mrb[0].mxu0
      %2201 = vmatprep.mubr.f32.mxu0 0.0
      %2202 = vmatmul.mubr.f32.gmra.mrb[0].mxu0 %v1998
      %v2203 = vpop.f32.mrb[0].mxu0
      %v2204 = vadd.f32 0.0, %v2203
      %v2205 = vpop.f32.mrb[0].mxu0
      %2206 = vmatprep.mubr.f32.mxu0 0.0
      %2207 = vmatmul.mubr.f32.gmra.mrb[0].mxu0 %v2001
      %v2208 = vpop.f32.mrb[0].mxu0
      %v2209 = vadd.f32 0.0, %v2208
      %v2210 = vpop.f32.mrb[0].mxu0
      %2211 = vmatprep.mubr.f32.mxu0 0.0
      %2212 = vmatmul.mubr.f32.gmra.mrb[0].mxu0 %v2004
      %v2213 = vpop.f32.mrb[0].mxu0
      %v2214 = vadd.f32 0.0, %v2213
      %v2215 = vpop.f32.mrb[0].mxu0
      %2216 = vmatprep.mubr.f32.mxu0 0.0
      %2217 = vmatmul.mubr.f32.gmra.mrb[0].mxu0 %v2007
      %v2218 = vpop.f32.mrb[0].mxu0
      %v2219 = vadd.f32 0.0, %v2218
      %v2220 = vpop.f32.mrb[0].mxu0
      %2221 = vmatprep.mubr.f32.mxu0 0.0
      %2222 = vmatmul.mubr.f32.gmra.mrb[0].mxu0 %v2010
      %v2223 = vpop.f32.mrb[0].mxu0
      %v2224 = vadd.f32 0.0, %v2223
      %v2225 = vpop.f32.mrb[0].mxu0
      %2226 = vmatprep.mubr.f32.mxu0 0.0
      %2227 = vmatmul.mubr.f32.gmra.mrb[0].mxu0 %v2013
      %v2228 = vpop.f32.mrb[0].mxu0
      %v2229 = vadd.f32 0.0, %v2228
      %v2230 = vpop.f32.mrb[0].mxu0
      %2231 = vmatprep.mubr.f32.mxu0 0.0
      %2232 = vmatmul.mubr.f32.gmra.mrb[0].mxu0 %v2016
      %v2233 = vpop.f32.mrb[0].mxu0
      %v2234 = vadd.f32 0.0, %v2233
      %v2235 = vpop.f32.mrb[0].mxu0
      %2236 = vmatprep.mubr.f32.mxu0 0.0
      %2237 = vmatmul.mubr.f32.gmra.mrb[0].mxu0 %v2019
      %v2238 = vpop.f32.mrb[0].mxu0
      %v2239 = vadd.f32 0.0, %v2238
      %v2240 = vpop.f32.mrb[0].mxu0
      %2241 = vmatprep.mubr.f32.mxu0 0.0
      %2242 = vmatmul.mubr.f32.gmra.mrb[0].mxu0 %v2022
      %v2243 = vpop.f32.mrb[0].mxu0
      %v2244 = vadd.f32 0.0, %v2243
      %v2245 = vpop.f32.mrb[0].mxu0
      %2246 = vmatprep.mubr.f32.mxu0 0.0
      %2247 = vmatmul.mubr.f32.gmra.mrb[0].mxu0 %v2025
      %v2248 = vpop.f32.mrb[0].mxu0
      %v2249 = vadd.f32 0.0, %v2248
      %v2250 = vpop.f32.mrb[0].mxu0
      %2251 = vdwg.mxu0
      %v2252 = vadd.f32 %v1734, %v2094
      %v2253 = vadd.f32 %v1739, %v2099
      %v2254 = vadd.f32 %v1744, %v2104
      %v2255 = vadd.f32 %v1749, %v2109
      %v2256 = vadd.f32 %v1754, %v2114
      %v2257 = vadd.f32 %v1759, %v2119
      %v2258 = vadd.f32 %v1764, %v2124
      %v2259 = vadd.f32 %v1769, %v2129
      %v2260 = vadd.f32 %v1774, %v2134
      %v2261 = vadd.f32 %v1779, %v2139
      %v2262 = vadd.f32 %v1784, %v2144
      %v2263 = vadd.f32 %v1789, %v2149
      %v2264 = vadd.f32 %v1794, %v2154
      %v2265 = vadd.f32 %v1799, %v2159
      %v2266 = vadd.f32 %v1804, %v2164
      %v2267 = vadd.f32 %v1809, %v2169
      %v2268 = vadd.f32 %v1814, %v2174
      %v2269 = vadd.f32 %v1819, %v2179
      %v2270 = vadd.f32 %v1824, %v2184
      %v2271 = vadd.f32 %v1829, %v2189
      %v2272 = vadd.f32 %v1834, %v2194
      %v2273 = vadd.f32 %v1839, %v2199
      %v2274 = vadd.f32 %v1844, %v2204
      %v2275 = vadd.f32 %v1849, %v2209
      %v2276 = vadd.f32 %v1854, %v2214
      %v2277 = vadd.f32 %v1859, %v2219
      %v2278 = vadd.f32 %v1864, %v2224
      %v2279 = vadd.f32 %v1869, %v2229
      %v2280 = vadd.f32 %v1874, %v2234
      %v2281 = vadd.f32 %v1879, %v2239
      %v2282 = vadd.f32 %v1884, %v2244
      %v2283 = vadd.f32 %v1889, %v2249
      %v2284 = vld [vmem:[%s2] sm:$0x1]
      %v2286 = vlaneseq
      %v2287 = vshrl.u32 %v2286, 7
      %v2288 = vsub.s32 0, %v2287
      %v2289 = vrot.slane %v2284, %v2288
      %v2291 = vadd.f32 %v2252, %v2289
      %v2292 = vadd.f32 %v2253, %v2289
      %v2293 = vadd.f32 %v2254, %v2289
      %v2294 = vadd.f32 %v2255, %v2289
      %v2295 = vadd.f32 %v2256, %v2289
      %v2296 = vadd.f32 %v2257, %v2289
      %v2297 = vadd.f32 %v2258, %v2289
      %v2298 = vadd.f32 %v2259, %v2289
      %v2299 = vadd.f32 %v2260, %v2289
      %v2300 = vadd.f32 %v2261, %v2289
      %v2301 = vadd.f32 %v2262, %v2289
      %v2302 = vadd.f32 %v2263, %v2289
      %v2303 = vadd.f32 %v2264, %v2289
      %v2304 = vadd.f32 %v2265, %v2289
      %v2305 = vadd.f32 %v2266, %v2289
      %v2306 = vadd.f32 %v2267, %v2289
      %v2307 = vadd.f32 %v2268, %v2289
      %v2308 = vadd.f32 %v2269, %v2289
      %v2309 = vadd.f32 %v2270, %v2289
      %v2310 = vadd.f32 %v2271, %v2289
      %v2311 = vadd.f32 %v2272, %v2289
      %v2312 = vadd.f32 %v2273, %v2289
      %v2313 = vadd.f32 %v2274, %v2289
      %v2314 = vadd.f32 %v2275, %v2289
      %v2315 = vadd.f32 %v2276, %v2289
      %v2316 = vadd.f32 %v2277, %v2289
      %v2317 = vadd.f32 %v2278, %v2289
      %v2318 = vadd.f32 %v2279, %v2289
      %v2319 = vadd.f32 %v2280, %v2289
      %v2320 = vadd.f32 %v2281, %v2289
      %v2321 = vadd.f32 %v2282, %v2289
      %v2322 = vadd.f32 %v2283, %v2289
      %v2323 = vmax.f32 %v2291, 0.0
      %v2324 = vmax.f32 %v2292, 0.0
      %v2325 = vmax.f32 %v2293, 0.0
      %v2326 = vmax.f32 %v2294, 0.0
      %v2327 = vmax.f32 %v2295, 0.0
      %v2328 = vmax.f32 %v2296, 0.0
      %v2329 = vmax.f32 %v2297, 0.0
      %v2330 = vmax.f32 %v2298, 0.0
      %v2331 = vmax.f32 %v2299, 0.0
      %v2332 = vmax.f32 %v2300, 0.0
      %v2333 = vmax.f32 %v2301, 0.0
      %v2334 = vmax.f32 %v2302, 0.0
      %v2335 = vmax.f32 %v2303, 0.0
      %v2336 = vmax.f32 %v2304, 0.0
      %v2337 = vmax.f32 %v2305, 0.0
      %v2338 = vmax.f32 %v2306, 0.0
      %v2339 = vmax.f32 %v2307, 0.0
      %v2340 = vmax.f32 %v2308, 0.0
      %v2341 = vmax.f32 %v2309, 0.0
      %v2342 = vmax.f32 %v2310, 0.0
      %v2343 = vmax.f32 %v2311, 0.0
      %v2344 = vmax.f32 %v2312, 0.0
      %v2345 = vmax.f32 %v2313, 0.0
      %v2346 = vmax.f32 %v2314, 0.0
      %v2347 = vmax.f32 %v2315, 0.0
      %v2348 = vmax.f32 %v2316, 0.0
      %v2349 = vmax.f32 %v2317, 0.0
      %v2350 = vmax.f32 %v2318, 0.0
      %v2351 = vmax.f32 %v2319, 0.0
      %v2352 = vmax.f32 %v2320, 0.0
      %v2353 = vmax.f32 %v2321, 0.0
      %v2354 = vmax.f32 %v2322, 0.0
      %2355 = vst.msk [vmem:[#allocation3 + $0x10] sm:$0xff] %vm866, 0.0
      %2356 = vst.msk [vmem:[#allocation3 + $0x18] sm:$0xff] %vm866, 0.0
      %2357 = vst.msk [vmem:[#allocation3 + $0x20] sm:$0x1] %vm869, 0.0
      %2358 = vst.msk [vmem:[#allocation3 + $0x11f] sm:$0xff] %vm866, 0.0
      %2359 = vst.msk [vmem:[#allocation3 + $0x127] sm:$0xff] %vm866, 0.0
      %2360 = vst.msk [vmem:[#allocation3 + $0x12f] sm:$0x1] %vm869, 0.0
      %v2361 = vmul.f32 %v2323, %v706
      %v2362 = vmul.f32 %v2324, %v707
      %v2363 = vmul.f32 %v2325, %v708
      %v2364 = vmul.f32 %v2326, %v709
      %v2365 = vmul.f32 %v2327, %v710
      %v2366 = vmul.f32 %v2328, %v711
      %v2367 = vmul.f32 %v2329, %v712
      %v2368 = vmul.f32 %v2330, %v713
      %v2369 = vmul.f32 %v2331, %v714
      %v2370 = vmul.f32 %v2332, %v715
      %v2371 = vmul.f32 %v2333, %v716
      %v2372 = vmul.f32 %v2334, %v717
      %v2373 = vmul.f32 %v2335, %v718
      %v2374 = vmul.f32 %v2336, %v719
      %v2375 = vmul.f32 %v2337, %v720
      %v2376 = vmul.f32 %v2338, %v721
      %v2377 = vmul.f32 %v2339, %v722
      %v2378 = vmul.f32 %v2340, %v723
      %v2379 = vmul.f32 %v2341, %v724
      %v2380 = vmul.f32 %v2342, %v725
      %v2381 = vmul.f32 %v2343, %v726
      %v2382 = vmul.f32 %v2344, %v727
      %v2383 = vmul.f32 %v2345, %v728
      %v2384 = vmul.f32 %v2346, %v729
      %v2385 = vmul.f32 %v2347, %v730
      %v2386 = vmul.f32 %v2348, %v731
      %v2387 = vmul.f32 %v2349, %v732
      %v2388 = vmul.f32 %v2350, %v733
      %v2389 = vmul.f32 %v2351, %v734
      %v2390 = vmul.f32 %v2352, %v735
      %v2391 = vmul.f32 %v2353, %v736
      %v2392 = vmul.f32 %v2354, %v737
      %2393 = vst.msk [vmem:[#allocation3 + $0x21] sm:$0xff] %vm906, %v2361
      %2394 = vst.msk [vmem:[#allocation3 + $0x29] sm:$0xff] %vm906, %v2362
      %2395 = vst.msk [vmem:[#allocation3 + $0x31] sm:$0xff] %vm906, %v2363
      %2396 = vst.msk [vmem:[#allocation3 + $0x39] sm:$0xff] %vm906, %v2364
      %2397 = vst.msk [vmem:[#allocation3 + $0x41] sm:$0xff] %vm906, %v2365
      %2398 = vst.msk [vmem:[#allocation3 + $0x49] sm:$0xff] %vm906, %v2366
      %2399 = vst.msk [vmem:[#allocation3 + $0x51] sm:$0xff] %vm906, %v2367
      %2400 = vst.msk [vmem:[#allocation3 + $0x59] sm:$0xff] %vm906, %v2368
      %2401 = vst.msk [vmem:[#allocation3 + $0x61] sm:$0xff] %vm906, %v2369
      %2402 = vst.msk [vmem:[#allocation3 + $0x69] sm:$0xff] %vm906, %v2370
      %2403 = vst.msk [vmem:[#allocation3 + $0x71] sm:$0xff] %vm906, %v2371
      %2404 = vst.msk [vmem:[#allocation3 + $0x79] sm:$0xff] %vm906, %v2372
      %2405 = vst.msk [vmem:[#allocation3 + $0x81] sm:$0xff] %vm906, %v2373
      %2406 = vst.msk [vmem:[#allocation3 + $0x89] sm:$0xff] %vm906, %v2374
      %2407 = vst.msk [vmem:[#allocation3 + $0x91] sm:$0xff] %vm906, %v2375
      %2408 = vst.msk [vmem:[#allocation3 + $0x99] sm:$0xff] %vm906, %v2376
      %2409 = vst.msk [vmem:[#allocation3 + $0xa1] sm:$0xff] %vm906, %v2377
      %2410 = vst.msk [vmem:[#allocation3 + $0xa9] sm:$0xff] %vm906, %v2378
      %2411 = vst.msk [vmem:[#allocation3 + $0xb1] sm:$0xff] %vm906, %v2379
      %2412 = vst.msk [vmem:[#allocation3 + $0xb9] sm:$0xff] %vm906, %v2380
      %2413 = vst.msk [vmem:[#allocation3 + $0xc1] sm:$0xff] %vm906, %v2381
      %2414 = vst.msk [vmem:[#allocation3 + $0xc9] sm:$0xff] %vm906, %v2382
      %2415 = vst.msk [vmem:[#allocation3 + $0xd1] sm:$0xff] %vm906, %v2383
      %2416 = vst.msk [vmem:[#allocation3 + $0xd9] sm:$0xff] %vm906, %v2384
      %2417 = vst.msk [vmem:[#allocation3 + $0xe1] sm:$0xff] %vm906, %v2385
      %2418 = vst.msk [vmem:[#allocation3 + $0xe9] sm:$0xff] %vm906, %v2386
      %2419 = vst.msk [vmem:[#allocation3 + $0xf1] sm:$0xff] %vm906, %v2387
      %2420 = vst.msk [vmem:[#allocation3 + $0xf9] sm:$0xff] %vm906, %v2388
      %2421 = vst.msk [vmem:[#allocation3 + $0x101] sm:$0xff] %vm906, %v2389
      %2422 = vst.msk [vmem:[#allocation3 + $0x109] sm:$0xff] %vm906, %v2390
      %2423 = vst.msk [vmem:[#allocation3 + $0x111] sm:$0xff] %vm906, %v2391
      %2424 = vst.msk [vmem:[#allocation3 + $0x119] sm:$0xff] %vm906, %v2392
      %2457 = vrot.lane.b32.xlu0 %v2323, 16
      %v2458 = vpop.permute.xlu0 %2457
      %2459 = vrot.lane.b32.xlu0 %v2324, 16
      %v2460 = vpop.permute.xlu0 %2459
      %2461 = vrot.lane.b32.xlu0 %v2325, 16
      %v2462 = vpop.permute.xlu0 %2461
      %2463 = vrot.lane.b32.xlu0 %v2326, 16
      %v2464 = vpop.permute.xlu0 %2463
      %2465 = vrot.lane.b32.xlu0 %v2327, 16
      %v2466 = vpop.permute.xlu0 %2465
      %2467 = vrot.lane.b32.xlu0 %v2328, 16
      %v2468 = vpop.permute.xlu0 %2467
      %2469 = vrot.lane.b32.xlu0 %v2329, 16
      %v2470 = vpop.permute.xlu0 %2469
      %2471 = vrot.lane.b32.xlu0 %v2330, 16
      %v2472 = vpop.permute.xlu0 %2471
      %2473 = vrot.lane.b32.xlu0 %v2331, 16
      %v2474 = vpop.permute.xlu0 %2473
      %2475 = vrot.lane.b32.xlu0 %v2332, 16
      %v2476 = vpop.permute.xlu0 %2475
      %2477 = vrot.lane.b32.xlu0 %v2333, 16
      %v2478 = vpop.permute.xlu0 %2477
      %2479 = vrot.lane.b32.xlu0 %v2334, 16
      %v2480 = vpop.permute.xlu0 %2479
      %2481 = vrot.lane.b32.xlu0 %v2335, 16
      %v2482 = vpop.permute.xlu0 %2481
      %2483 = vrot.lane.b32.xlu0 %v2336, 16
      %v2484 = vpop.permute.xlu0 %2483
      %2485 = vrot.lane.b32.xlu0 %v2337, 16
      %v2486 = vpop.permute.xlu0 %2485
      %2487 = vrot.lane.b32.xlu0 %v2338, 16
      %v2488 = vpop.permute.xlu0 %2487
      %2489 = vrot.lane.b32.xlu0 %v2339, 16
      %v2490 = vpop.permute.xlu0 %2489
      %2491 = vrot.lane.b32.xlu0 %v2340, 16
      %v2492 = vpop.permute.xlu0 %2491
      %2493 = vrot.lane.b32.xlu0 %v2341, 16
      %v2494 = vpop.permute.xlu0 %2493
      %2495 = vrot.lane.b32.xlu0 %v2342, 16
      %v2496 = vpop.permute.xlu0 %2495
      %2497 = vrot.lane.b32.xlu0 %v2343, 16
      %v2498 = vpop.permute.xlu0 %2497
      %2499 = vrot.lane.b32.xlu0 %v2344, 16
      %v2500 = vpop.permute.xlu0 %2499
      %2501 = vrot.lane.b32.xlu0 %v2345, 16
      %v2502 = vpop.permute.xlu0 %2501
      %2503 = vrot.lane.b32.xlu0 %v2346, 16
      %v2504 = vpop.permute.xlu0 %2503
      %2505 = vrot.lane.b32.xlu0 %v2347, 16
      %v2506 = vpop.permute.xlu0 %2505
      %2507 = vrot.lane.b32.xlu0 %v2348, 16
      %v2508 = vpop.permute.xlu0 %2507
      %2509 = vrot.lane.b32.xlu0 %v2349, 16
      %v2510 = vpop.permute.xlu0 %2509
      %2511 = vrot.lane.b32.xlu0 %v2350, 16
      %v2512 = vpop.permute.xlu0 %2511
      %2513 = vrot.lane.b32.xlu0 %v2351, 16
      %v2514 = vpop.permute.xlu0 %2513
      %2515 = vrot.lane.b32.xlu0 %v2352, 16
      %v2516 = vpop.permute.xlu0 %2515
      %2517 = vrot.lane.b32.xlu0 %v2353, 16
      %v2518 = vpop.permute.xlu0 %2517
      %2519 = vrot.lane.b32.xlu0 %v2354, 16
      %v2520 = vpop.permute.xlu0 %2519
      %2553 = vst.msk [vmem:[#allocation3 + $0x20] sm:$0xff] %vm1067, %v2458
      %2554 = vst.msk [vmem:[#allocation3 + $0x28] sm:$0xff] %vm1067, %v2460
      %2555 = vst.msk [vmem:[#allocation3 + $0x30] sm:$0xff] %vm1067, %v2462
      %2556 = vst.msk [vmem:[#allocation3 + $0x38] sm:$0xff] %vm1067, %v2464
      %2557 = vst.msk [vmem:[#allocation3 + $0x40] sm:$0xff] %vm1067, %v2466
      %2558 = vst.msk [vmem:[#allocation3 + $0x48] sm:$0xff] %vm1067, %v2468
      %2559 = vst.msk [vmem:[#allocation3 + $0x50] sm:$0xff] %vm1067, %v2470
      %2560 = vst.msk [vmem:[#allocation3 + $0x58] sm:$0xff] %vm1067, %v2472
      %2561 = vst.msk [vmem:[#allocation3 + $0x60] sm:$0xff] %vm1067, %v2474
      %2562 = vst.msk [vmem:[#allocation3 + $0x68] sm:$0xff] %vm1067, %v2476
      %2563 = vst.msk [vmem:[#allocation3 + $0x70] sm:$0xff] %vm1067, %v2478
      %2564 = vst.msk [vmem:[#allocation3 + $0x78] sm:$0xff] %vm1067, %v2480
      %2565 = vst.msk [vmem:[#allocation3 + $0x80] sm:$0xff] %vm1067, %v2482
      %2566 = vst.msk [vmem:[#allocation3 + $0x88] sm:$0xff] %vm1067, %v2484
      %2567 = vst.msk [vmem:[#allocation3 + $0x90] sm:$0xff] %vm1067, %v2486
      %2568 = vst.msk [vmem:[#allocation3 + $0x98] sm:$0xff] %vm1067, %v2488
      %2569 = vst.msk [vmem:[#allocation3 + $0xa0] sm:$0xff] %vm1067, %v2490
      %2570 = vst.msk [vmem:[#allocation3 + $0xa8] sm:$0xff] %vm1067, %v2492
      %2571 = vst.msk [vmem:[#allocation3 + $0xb0] sm:$0xff] %vm1067, %v2494
      %2572 = vst.msk [vmem:[#allocation3 + $0xb8] sm:$0xff] %vm1067, %v2496
      %2573 = vst.msk [vmem:[#allocation3 + $0xc0] sm:$0xff] %vm1067, %v2498
      %2574 = vst.msk [vmem:[#allocation3 + $0xc8] sm:$0xff] %vm1067, %v2500
      %2575 = vst.msk [vmem:[#allocation3 + $0xd0] sm:$0xff] %vm1067, %v2502
      %2576 = vst.msk [vmem:[#allocation3 + $0xd8] sm:$0xff] %vm1067, %v2504
      %2577 = vst.msk [vmem:[#allocation3 + $0xe0] sm:$0xff] %vm1067, %v2506
      %2578 = vst.msk [vmem:[#allocation3 + $0xe8] sm:$0xff] %vm1067, %v2508
      %2579 = vst.msk [vmem:[#allocation3 + $0xf0] sm:$0xff] %vm1067, %v2510
      %2580 = vst.msk [vmem:[#allocation3 + $0xf8] sm:$0xff] %vm1067, %v2512
      %2581 = vst.msk [vmem:[#allocation3 + $0x100] sm:$0xff] %vm1067, %v2514
      %2582 = vst.msk [vmem:[#allocation3 + $0x108] sm:$0xff] %vm1067, %v2516
      %2583 = vst.msk [vmem:[#allocation3 + $0x110] sm:$0xff] %vm1067, %v2518
      %2584 = vst.msk [vmem:[#allocation3 + $0x118] sm:$0xff] %vm1067, %v2520
      %v2585 = vmul.f32 %v2323, %v802
      %v2586 = vmul.f32 %v2324, %v803
      %v2587 = vmul.f32 %v2325, %v804
      %v2588 = vmul.f32 %v2326, %v805
      %v2589 = vmul.f32 %v2327, %v806
      %v2590 = vmul.f32 %v2328, %v807
      %v2591 = vmul.f32 %v2329, %v808
      %v2592 = vmul.f32 %v2330, %v809
      %v2593 = vmul.f32 %v2331, %v810
      %v2594 = vmul.f32 %v2332, %v811
      %v2595 = vmul.f32 %v2333, %v812
      %v2596 = vmul.f32 %v2334, %v813
      %v2597 = vmul.f32 %v2335, %v814
      %v2598 = vmul.f32 %v2336, %v815
      %v2599 = vmul.f32 %v2337, %v816
      %v2600 = vmul.f32 %v2338, %v817
      %v2601 = vmul.f32 %v2339, %v818
      %v2602 = vmul.f32 %v2340, %v819
      %v2603 = vmul.f32 %v2341, %v820
      %v2604 = vmul.f32 %v2342, %v821
      %v2605 = vmul.f32 %v2343, %v822
      %v2606 = vmul.f32 %v2344, %v823
      %v2607 = vmul.f32 %v2345, %v824
      %v2608 = vmul.f32 %v2346, %v825
      %v2609 = vmul.f32 %v2347, %v826
      %v2610 = vmul.f32 %v2348, %v827
      %v2611 = vmul.f32 %v2349, %v828
      %v2612 = vmul.f32 %v2350, %v829
      %v2613 = vmul.f32 %v2351, %v830
      %v2614 = vmul.f32 %v2352, %v831
      %v2615 = vmul.f32 %v2353, %v832
      %v2616 = vmul.f32 %v2354, %v833
      %2649 = vrot.lane.b32.xlu0 %v2585, 32
      %v2650 = vpop.permute.xlu0 %2649
      %2651 = vrot.lane.b32.xlu0 %v2586, 32
      %v2652 = vpop.permute.xlu0 %2651
      %2653 = vrot.lane.b32.xlu0 %v2587, 32
      %v2654 = vpop.permute.xlu0 %2653
      %2655 = vrot.lane.b32.xlu0 %v2588, 32
      %v2656 = vpop.permute.xlu0 %2655
      %2657 = vrot.lane.b32.xlu0 %v2589, 32
      %v2658 = vpop.permute.xlu0 %2657
      %2659 = vrot.lane.b32.xlu0 %v2590, 32
      %v2660 = vpop.permute.xlu0 %2659
      %2661 = vrot.lane.b32.xlu0 %v2591, 32
      %v2662 = vpop.permute.xlu0 %2661
      %2663 = vrot.lane.b32.xlu0 %v2592, 32
      %v2664 = vpop.permute.xlu0 %2663
      %2665 = vrot.lane.b32.xlu0 %v2593, 32
      %v2666 = vpop.permute.xlu0 %2665
      %2667 = vrot.lane.b32.xlu0 %v2594, 32
      %v2668 = vpop.permute.xlu0 %2667
      %2669 = vrot.lane.b32.xlu0 %v2595, 32
      %v2670 = vpop.permute.xlu0 %2669
      %2671 = vrot.lane.b32.xlu0 %v2596, 32
      %v2672 = vpop.permute.xlu0 %2671
      %2673 = vrot.lane.b32.xlu0 %v2597, 32
      %v2674 = vpop.permute.xlu0 %2673
      %2675 = vrot.lane.b32.xlu0 %v2598, 32
      %v2676 = vpop.permute.xlu0 %2675
      %2677 = vrot.lane.b32.xlu0 %v2599, 32
      %v2678 = vpop.permute.xlu0 %2677
      %2679 = vrot.lane.b32.xlu0 %v2600, 32
      %v2680 = vpop.permute.xlu0 %2679
      %2681 = vrot.lane.b32.xlu0 %v2601, 32
      %v2682 = vpop.permute.xlu0 %2681
      %2683 = vrot.lane.b32.xlu0 %v2602, 32
      %v2684 = vpop.permute.xlu0 %2683
      %2685 = vrot.lane.b32.xlu0 %v2603, 32
      %v2686 = vpop.permute.xlu0 %2685
      %2687 = vrot.lane.b32.xlu0 %v2604, 32
      %v2688 = vpop.permute.xlu0 %2687
      %2689 = vrot.lane.b32.xlu0 %v2605, 32
      %v2690 = vpop.permute.xlu0 %2689
      %2691 = vrot.lane.b32.xlu0 %v2606, 32
      %v2692 = vpop.permute.xlu0 %2691
      %2693 = vrot.lane.b32.xlu0 %v2607, 32
      %v2694 = vpop.permute.xlu0 %2693
      %2695 = vrot.lane.b32.xlu0 %v2608, 32
      %v2696 = vpop.permute.xlu0 %2695
      %2697 = vrot.lane.b32.xlu0 %v2609, 32
      %v2698 = vpop.permute.xlu0 %2697
      %2699 = vrot.lane.b32.xlu0 %v2610, 32
      %v2700 = vpop.permute.xlu0 %2699
      %2701 = vrot.lane.b32.xlu0 %v2611, 32
      %v2702 = vpop.permute.xlu0 %2701
      %2703 = vrot.lane.b32.xlu0 %v2612, 32
      %v2704 = vpop.permute.xlu0 %2703
      %2705 = vrot.lane.b32.xlu0 %v2613, 32
      %v2706 = vpop.permute.xlu0 %2705
      %2707 = vrot.lane.b32.xlu0 %v2614, 32
      %v2708 = vpop.permute.xlu0 %2707
      %2709 = vrot.lane.b32.xlu0 %v2615, 32
      %v2710 = vpop.permute.xlu0 %2709
      %2711 = vrot.lane.b32.xlu0 %v2616, 32
      %v2712 = vpop.permute.xlu0 %2711
      %2745 = vst.msk [vmem:[#allocation3 + $0x1f] sm:$0xff] %vm1260, %v2650
      %2746 = vst.msk [vmem:[#allocation3 + $0x27] sm:$0xff] %vm1260, %v2652
      %2747 = vst.msk [vmem:[#allocation3 + $0x2f] sm:$0xff] %vm1260, %v2654
      %2748 = vst.msk [vmem:[#allocation3 + $0x37] sm:$0xff] %vm1260, %v2656
      %2749 = vst.msk [vmem:[#allocation3 + $0x3f] sm:$0xff] %vm1260, %v2658
      %2750 = vst.msk [vmem:[#allocation3 + $0x47] sm:$0xff] %vm1260, %v2660
      %2751 = vst.msk [vmem:[#allocation3 + $0x4f] sm:$0xff] %vm1260, %v2662
      %2752 = vst.msk [vmem:[#allocation3 + $0x57] sm:$0xff] %vm1260, %v2664
      %2753 = vst.msk [vmem:[#allocation3 + $0x5f] sm:$0xff] %vm1260, %v2666
      %2754 = vst.msk [vmem:[#allocation3 + $0x67] sm:$0xff] %vm1260, %v2668
      %2755 = vst.msk [vmem:[#allocation3 + $0x6f] sm:$0xff] %vm1260, %v2670
      %2756 = vst.msk [vmem:[#allocation3 + $0x77] sm:$0xff] %vm1260, %v2672
      %2757 = vst.msk [vmem:[#allocation3 + $0x7f] sm:$0xff] %vm1260, %v2674
      %2758 = vst.msk [vmem:[#allocation3 + $0x87] sm:$0xff] %vm1260, %v2676
      %2759 = vst.msk [vmem:[#allocation3 + $0x8f] sm:$0xff] %vm1260, %v2678
      %2760 = vst.msk [vmem:[#allocation3 + $0x97] sm:$0xff] %vm1260, %v2680
      %2761 = vst.msk [vmem:[#allocation3 + $0x9f] sm:$0xff] %vm1260, %v2682
      %2762 = vst.msk [vmem:[#allocation3 + $0xa7] sm:$0xff] %vm1260, %v2684
      %2763 = vst.msk [vmem:[#allocation3 + $0xaf] sm:$0xff] %vm1260, %v2686
      %2764 = vst.msk [vmem:[#allocation3 + $0xb7] sm:$0xff] %vm1260, %v2688
      %2765 = vst.msk [vmem:[#allocation3 + $0xbf] sm:$0xff] %vm1260, %v2690
      %2766 = vst.msk [vmem:[#allocation3 + $0xc7] sm:$0xff] %vm1260, %v2692
      %2767 = vst.msk [vmem:[#allocation3 + $0xcf] sm:$0xff] %vm1260, %v2694
      %2768 = vst.msk [vmem:[#allocation3 + $0xd7] sm:$0xff] %vm1260, %v2696
      %2769 = vst.msk [vmem:[#allocation3 + $0xdf] sm:$0xff] %vm1260, %v2698
      %2770 = vst.msk [vmem:[#allocation3 + $0xe7] sm:$0xff] %vm1260, %v2700
      %2771 = vst.msk [vmem:[#allocation3 + $0xef] sm:$0xff] %vm1260, %v2702
      %2772 = vst.msk [vmem:[#allocation3 + $0xf7] sm:$0xff] %vm1260, %v2704
      %2773 = vst.msk [vmem:[#allocation3 + $0xff] sm:$0xff] %vm1260, %v2706
      %2774 = vst.msk [vmem:[#allocation3 + $0x107] sm:$0xff] %vm1260, %v2708
      %2775 = vst.msk [vmem:[#allocation3 + $0x10f] sm:$0xff] %vm1260, %v2710
      %2776 = vst.msk [vmem:[#allocation3 + $0x117] sm:$0xff] %vm1260, %v2712
      %v2777 = vld [vmem:[#allocation3 + $0x10] sm:$0xff]
      %v2778 = vld [vmem:[#allocation3 + $0x18] sm:$0xff]
      %v2779 = vld [vmem:[#allocation3 + $0x20] sm:$0xff]
      %v2780 = vld [vmem:[#allocation3 + $0x28] sm:$0xff]
      %v2781 = vld [vmem:[#allocation3 + $0x30] sm:$0xff]
      %v2782 = vld [vmem:[#allocation3 + $0x38] sm:$0xff]
      %v2783 = vld [vmem:[#allocation3 + $0x40] sm:$0xff]
      %v2784 = vld [vmem:[#allocation3 + $0x48] sm:$0xff]
      %v2785 = vld [vmem:[#allocation3 + $0x50] sm:$0xff]
      %v2786 = vld [vmem:[#allocation3 + $0x58] sm:$0xff]
      %v2787 = vld [vmem:[#allocation3 + $0x60] sm:$0xff]
      %v2788 = vld [vmem:[#allocation3 + $0x68] sm:$0xff]
      %v2789 = vld [vmem:[#allocation3 + $0x70] sm:$0xff]
      %v2790 = vld [vmem:[#allocation3 + $0x78] sm:$0xff]
      %v2791 = vld [vmem:[#allocation3 + $0x80] sm:$0xff]
      %v2792 = vld [vmem:[#allocation3 + $0x88] sm:$0xff]
      %v2793 = vld [vmem:[#allocation3 + $0x90] sm:$0xff]
      %v2794 = vld [vmem:[#allocation3 + $0x98] sm:$0xff]
      %v2795 = vld [vmem:[#allocation3 + $0xa0] sm:$0xff]
      %v2796 = vld [vmem:[#allocation3 + $0xa8] sm:$0xff]
      %v2797 = vld [vmem:[#allocation3 + $0xb0] sm:$0xff]
      %v2798 = vld [vmem:[#allocation3 + $0xb8] sm:$0xff]
      %v2799 = vld [vmem:[#allocation3 + $0xc0] sm:$0xff]
      %v2800 = vld [vmem:[#allocation3 + $0xc8] sm:$0xff]
      %v2801 = vld [vmem:[#allocation3 + $0xd0] sm:$0xff]
      %v2802 = vld [vmem:[#allocation3 + $0xd8] sm:$0xff]
      %v2803 = vld [vmem:[#allocation3 + $0xe0] sm:$0xff]
      %v2804 = vld [vmem:[#allocation3 + $0xe8] sm:$0xff]
      %v2805 = vld [vmem:[#allocation3 + $0xf0] sm:$0xff]
      %v2806 = vld [vmem:[#allocation3 + $0xf8] sm:$0xff]
      %v2807 = vld [vmem:[#allocation3 + $0x100] sm:$0xff]
      %v2808 = vld [vmem:[#allocation3 + $0x108] sm:$0xff]
      %v2809 = vld [vmem:[%s3] sm:$0xff]
      %v2810 = vld [vmem:[%s3 + $0x8] sm:$0xff]
      %v2811 = vld [vmem:[%s3 + $0x10] sm:$0xff]
      %v2812 = vld [vmem:[%s3 + $0x18] sm:$0xff]
      %v2813 = vld [vmem:[%s3 + $0x20] sm:$0xff]
      %v2814 = vld [vmem:[%s3 + $0x28] sm:$0xff]
      %v2815 = vld [vmem:[#allocation3 + $0x110] sm:$0xff]
      %v2816 = vld [vmem:[#allocation3 + $0x118] sm:$0xff]
      %s2817 = scalar_lea.vmem %s3, 48
      %v2818 = vld [vmem:[%s2817] sm:$0xff]
      %v2819 = vld [vmem:[%s2817 + $0x8] sm:$0xff]
      %v2820 = vld [vmem:[%s2817 + $0x10] sm:$0xff]
      %v2821 = vld [vmem:[%s2817 + $0x18] sm:$0xff]
      %v2822 = vld [vmem:[%s2817 + $0x20] sm:$0xff]
      %v2823 = vld [vmem:[%s2817 + $0x28] sm:$0xff]
      %v2825 = vsel %vm866, %v2779, 0
      %v2828 = vsel %vm866, %v2780, 0
      %v2831 = vsel %vm866, %v2781, 0
      %v2834 = vsel %vm866, %v2782, 0
      %v2837 = vsel %vm866, %v2783, 0
      %v2840 = vsel %vm866, %v2784, 0
      %v2843 = vsel %vm866, %v2785, 0
      %v2846 = vsel %vm866, %v2786, 0
      %v2849 = vsel %vm866, %v2787, 0
      %v2852 = vsel %vm866, %v2788, 0
      %v2855 = vsel %vm866, %v2789, 0
      %v2858 = vsel %vm866, %v2790, 0
      %v2861 = vsel %vm866, %v2791, 0
      %v2864 = vsel %vm866, %v2792, 0
      %v2867 = vsel %vm866, %v2793, 0
      %v2870 = vsel %vm866, %v2794, 0
      %v2873 = vsel %vm866, %v2795, 0
      %v2876 = vsel %vm866, %v2796, 0
      %v2879 = vsel %vm866, %v2797, 0
      %v2882 = vsel %vm866, %v2798, 0
      %v2885 = vsel %vm866, %v2799, 0
      %v2888 = vsel %vm866, %v2800, 0
      %v2891 = vsel %vm866, %v2801, 0
      %v2894 = vsel %vm866, %v2802, 0
      %v2897 = vsel %vm866, %v2803, 0
      %v2900 = vsel %vm866, %v2804, 0
      %v2903 = vsel %vm866, %v2805, 0
      %v2906 = vsel %vm866, %v2806, 0
      %v2909 = vsel %vm866, %v2807, 0
      %v2912 = vsel %vm866, %v2808, 0
      %v2915 = vsel %vm866, %v2815, 0
      %v2918 = vsel %vm866, %v2816, 0
      %2920 = vmatprep.subr.mxu0 0.0
      %2921 = vmatpush1.msra.mxu0 %v2818
      %2922 = vmatprep.subr.mxu0 0.0
      %2923 = vmatpush1.msra.mxu0 %v2819
      %2924 = vmatprep.subr.mxu0 0.0
      %2925 = vmatpush1.msra.mxu0 %v2820
      %2926 = vmatprep.subr.mxu0 0.0
      %2927 = vmatpush1.msra.mxu0 %v2821
      %2928 = vmatprep.subr.mxu0 0.0
      %2929 = vmatpush1.msra.mxu0 %v2822
      %2930 = vmatprep.subr.mxu0 0.0
      %2931 = vmatpush1.msra.mxu0 %v2823
      %2932 = vmatprep.subr.mxu0 0.0
      %2933 = vmatpush1.msra.mxu0 0.0
      %2934 = vmatprep.subr.mxu0 0.0
      %2935 = vmatpush1.msra.mxu0 0.0
      %2936 = vmatprep.subr.mxu0 0.0
      %2937 = vmatpush1.msra.mxu0 0.0
      %2938 = vmatprep.subr.mxu0 0.0
      %2939 = vmatpush1.msra.mxu0 0.0
      %2940 = vmatprep.subr.mxu0 0.0
      %2941 = vmatpush1.msra.mxu0 0.0
      %2942 = vmatprep.subr.mxu0 0.0
      %2943 = vmatpush1.msra.mxu0 0.0
      %2944 = vmatprep.subr.mxu0 0.0
      %2945 = vmatpush1.msra.mxu0 0.0
      %2946 = vmatprep.subr.mxu0 0.0
      %2947 = vmatpush1.msra.mxu0 0.0
      %2948 = vmatprep.subr.mxu0 0.0
      %2949 = vmatpush1.msra.mxu0 0.0
      %2950 = vmatprep.subr.mxu0 0.0
      %2951 = vmatpush1.msra.mxu0 0.0
      %2952 = vmatprep.subr.mxu0 0.0
      %2953 = vmatpush1.msra.mxu0 0.0
      %2954 = vmatprep.subr.mxu0 0.0
      %2955 = vmatpush1.msra.mxu0 0.0
      %2956 = vmatprep.subr.mxu0 0.0
      %2957 = vmatpush1.msra.mxu0 0.0
      %2958 = vmatprep.subr.mxu0 0.0
      %2959 = vmatpush1.msra.mxu0 0.0
      %2960 = vmatprep.subr.mxu0 0.0
      %2961 = vmatpush1.msra.mxu0 0.0
      %2962 = vmatprep.subr.mxu0 0.0
      %2963 = vmatpush1.msra.mxu0 0.0
      %2964 = vmatprep.subr.mxu0 0.0
      %2965 = vmatpush1.msra.mxu0 0.0
      %2966 = vmatprep.subr.mxu0 0.0
      %2967 = vmatpush1.msra.mxu0 0.0
      %2968 = vmatprep.subr.mxu0 0.0
      %2969 = vmatpush1.msra.mxu0 0.0
      %2970 = vmatprep.subr.mxu0 0.0
      %2971 = vmatpush1.msra.mxu0 0.0
      %2972 = vmatprep.subr.mxu0 0.0
      %2973 = vmatpush1.msra.mxu0 0.0
      %2974 = vmatprep.subr.mxu0 0.0
      %2975 = vmatpush1.msra.mxu0 0.0
      %2976 = vmatprep.subr.mxu0 0.0
      %2977 = vmatpush1.msra.mxu0 0.0
      %2978 = vmatprep.subr.mxu0 0.0
      %2979 = vmatpush1.msra.mxu0 0.0
      %2980 = vmatprep.subr.mxu0 0.0
      %2981 = vmatpush1.msra.mxu0 0.0
      %2982 = vmatprep.subr.mxu0 0.0
      %2983 = vmatpush1.msra.mxu0 0.0
      %2984 = vmatprep.mubr.f32.mxu0 0.0
      %2985 = vmatmul.mubr.f32.gmra.mrb[0].mxu0 %v2825
      %v2986 = vpop.f32.mrb[0].mxu0
      %v2987 = vadd.f32 0.0, %v2986
      %v2988 = vpop.f32.mrb[0].mxu0
      %2989 = vmatprep.mubr.f32.mxu0 0.0
      %2990 = vmatmul.mubr.f32.gmra.mrb[0].mxu0 %v2828
      %v2991 = vpop.f32.mrb[0].mxu0
      %v2992 = vadd.f32 0.0, %v2991
      %v2993 = vpop.f32.mrb[0].mxu0
      %2994 = vmatprep.mubr.f32.mxu0 0.0
      %2995 = vmatmul.mubr.f32.gmra.mrb[0].mxu0 %v2831
      %v2996 = vpop.f32.mrb[0].mxu0
      %v2997 = vadd.f32 0.0, %v2996
      %v2998 = vpop.f32.mrb[0].mxu0
      %2999 = vmatprep.mubr.f32.mxu0 0.0
      %3000 = vmatmul.mubr.f32.gmra.mrb[0].mxu0 %v2834
      %v3001 = vpop.f32.mrb[0].mxu0
      %v3002 = vadd.f32 0.0, %v3001
      %v3003 = vpop.f32.mrb[0].mxu0
      %3004 = vmatprep.mubr.f32.mxu0 0.0
      %3005 = vmatmul.mubr.f32.gmra.mrb[0].mxu0 %v2837
      %v3006 = vpop.f32.mrb[0].mxu0
      %v3007 = vadd.f32 0.0, %v3006
      %v3008 = vpop.f32.mrb[0].mxu0
      %3009 = vmatprep.mubr.f32.mxu0 0.0
      %3010 = vmatmul.mubr.f32.gmra.mrb[0].mxu0 %v2840
      %v3011 = vpop.f32.mrb[0].mxu0
      %v3012 = vadd.f32 0.0, %v3011
      %v3013 = vpop.f32.mrb[0].mxu0
      %3014 = vmatprep.mubr.f32.mxu0 0.0
      %3015 = vmatmul.mubr.f32.gmra.mrb[0].mxu0 %v2843
      %v3016 = vpop.f32.mrb[0].mxu0
      %v3017 = vadd.f32 0.0, %v3016
      %v3018 = vpop.f32.mrb[0].mxu0
      %3019 = vmatprep.mubr.f32.mxu0 0.0
      %3020 = vmatmul.mubr.f32.gmra.mrb[0].mxu0 %v2846
      %v3021 = vpop.f32.mrb[0].mxu0
      %v3022 = vadd.f32 0.0, %v3021
      %v3023 = vpop.f32.mrb[0].mxu0
      %3024 = vmatprep.mubr.f32.mxu0 0.0
      %3025 = vmatmul.mubr.f32.gmra.mrb[0].mxu0 %v2849
      %v3026 = vpop.f32.mrb[0].mxu0
      %v3027 = vadd.f32 0.0, %v3026
      %v3028 = vpop.f32.mrb[0].mxu0
      %3029 = vmatprep.mubr.f32.mxu0 0.0
      %3030 = vmatmul.mubr.f32.gmra.mrb[0].mxu0 %v2852
      %v3031 = vpop.f32.mrb[0].mxu0
      %v3032 = vadd.f32 0.0, %v3031
      %v3033 = vpop.f32.mrb[0].mxu0
      %3034 = vmatprep.mubr.f32.mxu0 0.0
      %3035 = vmatmul.mubr.f32.gmra.mrb[0].mxu0 %v2855
      %v3036 = vpop.f32.mrb[0].mxu0
      %v3037 = vadd.f32 0.0, %v3036
      %v3038 = vpop.f32.mrb[0].mxu0
      %3039 = vmatprep.mubr.f32.mxu0 0.0
      %3040 = vmatmul.mubr.f32.gmra.mrb[0].mxu0 %v2858
      %v3041 = vpop.f32.mrb[0].mxu0
      %v3042 = vadd.f32 0.0, %v3041
      %v3043 = vpop.f32.mrb[0].mxu0
      %3044 = vmatprep.mubr.f32.mxu0 0.0
      %3045 = vmatmul.mubr.f32.gmra.mrb[0].mxu0 %v2861
      %v3046 = vpop.f32.mrb[0].mxu0
      %v3047 = vadd.f32 0.0, %v3046
      %v3048 = vpop.f32.mrb[0].mxu0
      %3049 = vmatprep.mubr.f32.mxu0 0.0
      %3050 = vmatmul.mubr.f32.gmra.mrb[0].mxu0 %v2864
      %v3051 = vpop.f32.mrb[0].mxu0
      %v3052 = vadd.f32 0.0, %v3051
      %v3053 = vpop.f32.mrb[0].mxu0
      %3054 = vmatprep.mubr.f32.mxu0 0.0
      %3055 = vmatmul.mubr.f32.gmra.mrb[0].mxu0 %v2867
      %v3056 = vpop.f32.mrb[0].mxu0
      %v3057 = vadd.f32 0.0, %v3056
      %v3058 = vpop.f32.mrb[0].mxu0
      %3059 = vmatprep.mubr.f32.mxu0 0.0
      %3060 = vmatmul.mubr.f32.gmra.mrb[0].mxu0 %v2870
      %v3061 = vpop.f32.mrb[0].mxu0
      %v3062 = vadd.f32 0.0, %v3061
      %v3063 = vpop.f32.mrb[0].mxu0
      %3064 = vmatprep.mubr.f32.mxu0 0.0
      %3065 = vmatmul.mubr.f32.gmra.mrb[0].mxu0 %v2873
      %v3066 = vpop.f32.mrb[0].mxu0
      %v3067 = vadd.f32 0.0, %v3066
      %v3068 = vpop.f32.mrb[0].mxu0
      %3069 = vmatprep.mubr.f32.mxu0 0.0
      %3070 = vmatmul.mubr.f32.gmra.mrb[0].mxu0 %v2876
      %v3071 = vpop.f32.mrb[0].mxu0
      %v3072 = vadd.f32 0.0, %v3071
      %v3073 = vpop.f32.mrb[0].mxu0
      %3074 = vmatprep.mubr.f32.mxu0 0.0
      %3075 = vmatmul.mubr.f32.gmra.mrb[0].mxu0 %v2879
      %v3076 = vpop.f32.mrb[0].mxu0
      %v3077 = vadd.f32 0.0, %v3076
      %v3078 = vpop.f32.mrb[0].mxu0
      %3079 = vmatprep.mubr.f32.mxu0 0.0
      %3080 = vmatmul.mubr.f32.gmra.mrb[0].mxu0 %v2882
      %v3081 = vpop.f32.mrb[0].mxu0
      %v3082 = vadd.f32 0.0, %v3081
      %v3083 = vpop.f32.mrb[0].mxu0
      %3084 = vmatprep.mubr.f32.mxu0 0.0
      %3085 = vmatmul.mubr.f32.gmra.mrb[0].mxu0 %v2885
      %v3086 = vpop.f32.mrb[0].mxu0
      %v3087 = vadd.f32 0.0, %v3086
      %v3088 = vpop.f32.mrb[0].mxu0
      %3089 = vmatprep.mubr.f32.mxu0 0.0
      %3090 = vmatmul.mubr.f32.gmra.mrb[0].mxu0 %v2888
      %v3091 = vpop.f32.mrb[0].mxu0
      %v3092 = vadd.f32 0.0, %v3091
      %v3093 = vpop.f32.mrb[0].mxu0
      %3094 = vmatprep.mubr.f32.mxu0 0.0
      %3095 = vmatmul.mubr.f32.gmra.mrb[0].mxu0 %v2891
      %v3096 = vpop.f32.mrb[0].mxu0
      %v3097 = vadd.f32 0.0, %v3096
      %v3098 = vpop.f32.mrb[0].mxu0
      %3099 = vmatprep.mubr.f32.mxu0 0.0
      %3100 = vmatmul.mubr.f32.gmra.mrb[0].mxu0 %v2894
      %v3101 = vpop.f32.mrb[0].mxu0
      %v3102 = vadd.f32 0.0, %v3101
      %v3103 = vpop.f32.mrb[0].mxu0
      %3104 = vmatprep.mubr.f32.mxu0 0.0
      %3105 = vmatmul.mubr.f32.gmra.mrb[0].mxu0 %v2897
      %v3106 = vpop.f32.mrb[0].mxu0
      %v3107 = vadd.f32 0.0, %v3106
      %v3108 = vpop.f32.mrb[0].mxu0
      %3109 = vmatprep.mubr.f32.mxu0 0.0
      %3110 = vmatmul.mubr.f32.gmra.mrb[0].mxu0 %v2900
      %v3111 = vpop.f32.mrb[0].mxu0
      %v3112 = vadd.f32 0.0, %v3111
      %v3113 = vpop.f32.mrb[0].mxu0
      %3114 = vmatprep.mubr.f32.mxu0 0.0
      %3115 = vmatmul.mubr.f32.gmra.mrb[0].mxu0 %v2903
      %v3116 = vpop.f32.mrb[0].mxu0
      %v3117 = vadd.f32 0.0, %v3116
      %v3118 = vpop.f32.mrb[0].mxu0
      %3119 = vmatprep.mubr.f32.mxu0 0.0
      %3120 = vmatmul.mubr.f32.gmra.mrb[0].mxu0 %v2906
      %v3121 = vpop.f32.mrb[0].mxu0
      %v3122 = vadd.f32 0.0, %v3121
      %v3123 = vpop.f32.mrb[0].mxu0
      %3124 = vmatprep.mubr.f32.mxu0 0.0
      %3125 = vmatmul.mubr.f32.gmra.mrb[0].mxu0 %v2909
      %v3126 = vpop.f32.mrb[0].mxu0
      %v3127 = vadd.f32 0.0, %v3126
      %v3128 = vpop.f32.mrb[0].mxu0
      %3129 = vmatprep.mubr.f32.mxu0 0.0
      %3130 = vmatmul.mubr.f32.gmra.mrb[0].mxu0 %v2912
      %v3131 = vpop.f32.mrb[0].mxu0
      %v3132 = vadd.f32 0.0, %v3131
      %v3133 = vpop.f32.mrb[0].mxu0
      %3134 = vmatprep.mubr.f32.mxu0 0.0
      %3135 = vmatmul.mubr.f32.gmra.mrb[0].mxu0 %v2915
      %v3136 = vpop.f32.mrb[0].mxu0
      %v3137 = vadd.f32 0.0, %v3136
      %v3138 = vpop.f32.mrb[0].mxu0
      %3139 = vmatprep.mubr.f32.mxu0 0.0
      %3140 = vmatmul.mubr.f32.gmra.mrb[0].mxu0 %v2918
      %v3141 = vpop.f32.mrb[0].mxu0
      %v3142 = vadd.f32 0.0, %v3141
      %v3143 = vpop.f32.mrb[0].mxu0
      %3144 = vdwg.mxu0
      %v3146 = vsel %vm866, %v2777, 0
      %v3149 = vsel %vm866, %v2778, 0
      %3151 = vmatprep.subr.mxu0 0.0
      %3152 = vmatpush1.msra.mxu0 %v2809
      %3153 = vmatprep.subr.mxu0 0.0
      %3154 = vmatpush1.msra.mxu0 %v2810
      %3155 = vmatprep.subr.mxu0 0.0
      %3156 = vmatpush1.msra.mxu0 %v2811
      %3157 = vmatprep.subr.mxu0 0.0
      %3158 = vmatpush1.msra.mxu0 %v2812
      %3159 = vmatprep.subr.mxu0 0.0
      %3160 = vmatpush1.msra.mxu0 %v2813
      %3161 = vmatprep.subr.mxu0 0.0
      %3162 = vmatpush1.msra.mxu0 %v2814
      %3163 = vmatprep.subr.mxu0 0.0
      %3164 = vmatpush1.msra.mxu0 0.0
      %3165 = vmatprep.subr.mxu0 0.0
      %3166 = vmatpush1.msra.mxu0 0.0
      %3167 = vmatprep.subr.mxu0 0.0
      %3168 = vmatpush1.msra.mxu0 0.0
      %3169 = vmatprep.subr.mxu0 0.0
      %3170 = vmatpush1.msra.mxu0 0.0
      %3171 = vmatprep.subr.mxu0 0.0
      %3172 = vmatpush1.msra.mxu0 0.0
      %3173 = vmatprep.subr.mxu0 0.0
      %3174 = vmatpush1.msra.mxu0 0.0
      %3175 = vmatprep.subr.mxu0 0.0
      %3176 = vmatpush1.msra.mxu0 0.0
      %3177 = vmatprep.subr.mxu0 0.0
      %3178 = vmatpush1.msra.mxu0 0.0
      %3179 = vmatprep.subr.mxu0 0.0
      %3180 = vmatpush1.msra.mxu0 0.0
      %3181 = vmatprep.subr.mxu0 0.0
      %3182 = vmatpush1.msra.mxu0 0.0
      %3183 = vmatprep.subr.mxu0 0.0
      %3184 = vmatpush1.msra.mxu0 0.0
      %3185 = vmatprep.subr.mxu0 0.0
      %3186 = vmatpush1.msra.mxu0 0.0
      %3187 = vmatprep.subr.mxu0 0.0
      %3188 = vmatpush1.msra.mxu0 0.0
      %3189 = vmatprep.subr.mxu0 0.0
      %3190 = vmatpush1.msra.mxu0 0.0
      %3191 = vmatprep.subr.mxu0 0.0
      %3192 = vmatpush1.msra.mxu0 0.0
      %3193 = vmatprep.subr.mxu0 0.0
      %3194 = vmatpush1.msra.mxu0 0.0
      %3195 = vmatprep.subr.mxu0 0.0
      %3196 = vmatpush1.msra.mxu0 0.0
      %3197 = vmatprep.subr.mxu0 0.0
      %3198 = vmatpush1.msra.mxu0 0.0
      %3199 = vmatprep.subr.mxu0 0.0
      %3200 = vmatpush1.msra.mxu0 0.0
      %3201 = vmatprep.subr.mxu0 0.0
      %3202 = vmatpush1.msra.mxu0 0.0
      %3203 = vmatprep.subr.mxu0 0.0
      %3204 = vmatpush1.msra.mxu0 0.0
      %3205 = vmatprep.subr.mxu0 0.0
      %3206 = vmatpush1.msra.mxu0 0.0
      %3207 = vmatprep.subr.mxu0 0.0
      %3208 = vmatpush1.msra.mxu0 0.0
      %3209 = vmatprep.subr.mxu0 0.0
      %3210 = vmatpush1.msra.mxu0 0.0
      %3211 = vmatprep.subr.mxu0 0.0
      %3212 = vmatpush1.msra.mxu0 0.0
      %3213 = vmatprep.subr.mxu0 0.0
      %3214 = vmatpush1.msra.mxu0 0.0
      %3215 = vmatprep.mubr.f32.mxu0 0.0
      %3216 = vmatmul.mubr.f32.gmra.mrb[0].mxu0 %v3146
      %v3217 = vpop.f32.mrb[0].mxu0
      %v3218 = vadd.f32 %v2987, %v3217
      %v3219 = vpop.f32.mrb[0].mxu0
      %3220 = vmatprep.mubr.f32.mxu0 0.0
      %3221 = vmatmul.mubr.f32.gmra.mrb[0].mxu0 %v3149
      %v3222 = vpop.f32.mrb[0].mxu0
      %v3223 = vadd.f32 %v2992, %v3222
      %v3224 = vpop.f32.mrb[0].mxu0
      %3225 = vmatprep.mubr.f32.mxu0 0.0
      %3226 = vmatmul.mubr.f32.gmra.mrb[0].mxu0 %v2825
      %v3227 = vpop.f32.mrb[0].mxu0
      %v3228 = vadd.f32 %v2997, %v3227
      %v3229 = vpop.f32.mrb[0].mxu0
      %3230 = vmatprep.mubr.f32.mxu0 0.0
      %3231 = vmatmul.mubr.f32.gmra.mrb[0].mxu0 %v2828
      %v3232 = vpop.f32.mrb[0].mxu0
      %v3233 = vadd.f32 %v3002, %v3232
      %v3234 = vpop.f32.mrb[0].mxu0
      %3235 = vmatprep.mubr.f32.mxu0 0.0
      %3236 = vmatmul.mubr.f32.gmra.mrb[0].mxu0 %v2831
      %v3237 = vpop.f32.mrb[0].mxu0
      %v3238 = vadd.f32 %v3007, %v3237
      %v3239 = vpop.f32.mrb[0].mxu0
      %3240 = vmatprep.mubr.f32.mxu0 0.0
      %3241 = vmatmul.mubr.f32.gmra.mrb[0].mxu0 %v2834
      %v3242 = vpop.f32.mrb[0].mxu0
      %v3243 = vadd.f32 %v3012, %v3242
      %v3244 = vpop.f32.mrb[0].mxu0
      %3245 = vmatprep.mubr.f32.mxu0 0.0
      %3246 = vmatmul.mubr.f32.gmra.mrb[0].mxu0 %v2837
      %v3247 = vpop.f32.mrb[0].mxu0
      %v3248 = vadd.f32 %v3017, %v3247
      %v3249 = vpop.f32.mrb[0].mxu0
      %3250 = vmatprep.mubr.f32.mxu0 0.0
      %3251 = vmatmul.mubr.f32.gmra.mrb[0].mxu0 %v2840
      %v3252 = vpop.f32.mrb[0].mxu0
      %v3253 = vadd.f32 %v3022, %v3252
      %v3254 = vpop.f32.mrb[0].mxu0
      %3255 = vmatprep.mubr.f32.mxu0 0.0
      %3256 = vmatmul.mubr.f32.gmra.mrb[0].mxu0 %v2843
      %v3257 = vpop.f32.mrb[0].mxu0
      %v3258 = vadd.f32 %v3027, %v3257
      %v3259 = vpop.f32.mrb[0].mxu0
      %3260 = vmatprep.mubr.f32.mxu0 0.0
      %3261 = vmatmul.mubr.f32.gmra.mrb[0].mxu0 %v2846
      %v3262 = vpop.f32.mrb[0].mxu0
      %v3263 = vadd.f32 %v3032, %v3262
      %v3264 = vpop.f32.mrb[0].mxu0
      %3265 = vmatprep.mubr.f32.mxu0 0.0
      %3266 = vmatmul.mubr.f32.gmra.mrb[0].mxu0 %v2849
      %v3267 = vpop.f32.mrb[0].mxu0
      %v3268 = vadd.f32 %v3037, %v3267
      %v3269 = vpop.f32.mrb[0].mxu0
      %3270 = vmatprep.mubr.f32.mxu0 0.0
      %3271 = vmatmul.mubr.f32.gmra.mrb[0].mxu0 %v2852
      %v3272 = vpop.f32.mrb[0].mxu0
      %v3273 = vadd.f32 %v3042, %v3272
      %v3274 = vpop.f32.mrb[0].mxu0
      %3275 = vmatprep.mubr.f32.mxu0 0.0
      %3276 = vmatmul.mubr.f32.gmra.mrb[0].mxu0 %v2855
      %v3277 = vpop.f32.mrb[0].mxu0
      %v3278 = vadd.f32 %v3047, %v3277
      %v3279 = vpop.f32.mrb[0].mxu0
      %3280 = vmatprep.mubr.f32.mxu0 0.0
      %3281 = vmatmul.mubr.f32.gmra.mrb[0].mxu0 %v2858
      %v3282 = vpop.f32.mrb[0].mxu0
      %v3283 = vadd.f32 %v3052, %v3282
      %v3284 = vpop.f32.mrb[0].mxu0
      %3285 = vmatprep.mubr.f32.mxu0 0.0
      %3286 = vmatmul.mubr.f32.gmra.mrb[0].mxu0 %v2861
      %v3287 = vpop.f32.mrb[0].mxu0
      %v3288 = vadd.f32 %v3057, %v3287
      %v3289 = vpop.f32.mrb[0].mxu0
      %3290 = vmatprep.mubr.f32.mxu0 0.0
      %3291 = vmatmul.mubr.f32.gmra.mrb[0].mxu0 %v2864
      %v3292 = vpop.f32.mrb[0].mxu0
      %v3293 = vadd.f32 %v3062, %v3292
      %v3294 = vpop.f32.mrb[0].mxu0
      %3295 = vmatprep.mubr.f32.mxu0 0.0
      %3296 = vmatmul.mubr.f32.gmra.mrb[0].mxu0 %v2867
      %v3297 = vpop.f32.mrb[0].mxu0
      %v3298 = vadd.f32 %v3067, %v3297
      %v3299 = vpop.f32.mrb[0].mxu0
      %3300 = vmatprep.mubr.f32.mxu0 0.0
      %3301 = vmatmul.mubr.f32.gmra.mrb[0].mxu0 %v2870
      %v3302 = vpop.f32.mrb[0].mxu0
      %v3303 = vadd.f32 %v3072, %v3302
      %v3304 = vpop.f32.mrb[0].mxu0
      %3305 = vmatprep.mubr.f32.mxu0 0.0
      %3306 = vmatmul.mubr.f32.gmra.mrb[0].mxu0 %v2873
      %v3307 = vpop.f32.mrb[0].mxu0
      %v3308 = vadd.f32 %v3077, %v3307
      %v3309 = vpop.f32.mrb[0].mxu0
      %3310 = vmatprep.mubr.f32.mxu0 0.0
      %3311 = vmatmul.mubr.f32.gmra.mrb[0].mxu0 %v2876
      %v3312 = vpop.f32.mrb[0].mxu0
      %v3313 = vadd.f32 %v3082, %v3312
      %v3314 = vpop.f32.mrb[0].mxu0
      %3315 = vmatprep.mubr.f32.mxu0 0.0
      %3316 = vmatmul.mubr.f32.gmra.mrb[0].mxu0 %v2879
      %v3317 = vpop.f32.mrb[0].mxu0
      %v3318 = vadd.f32 %v3087, %v3317
      %v3319 = vpop.f32.mrb[0].mxu0
      %3320 = vmatprep.mubr.f32.mxu0 0.0
      %3321 = vmatmul.mubr.f32.gmra.mrb[0].mxu0 %v2882
      %v3322 = vpop.f32.mrb[0].mxu0
      %v3323 = vadd.f32 %v3092, %v3322
      %v3324 = vpop.f32.mrb[0].mxu0
      %3325 = vmatprep.mubr.f32.mxu0 0.0
      %3326 = vmatmul.mubr.f32.gmra.mrb[0].mxu0 %v2885
      %v3327 = vpop.f32.mrb[0].mxu0
      %v3328 = vadd.f32 %v3097, %v3327
      %v3329 = vpop.f32.mrb[0].mxu0
      %3330 = vmatprep.mubr.f32.mxu0 0.0
      %3331 = vmatmul.mubr.f32.gmra.mrb[0].mxu0 %v2888
      %v3332 = vpop.f32.mrb[0].mxu0
      %v3333 = vadd.f32 %v3102, %v3332
      %v3334 = vpop.f32.mrb[0].mxu0
      %3335 = vmatprep.mubr.f32.mxu0 0.0
      %3336 = vmatmul.mubr.f32.gmra.mrb[0].mxu0 %v2891
      %v3337 = vpop.f32.mrb[0].mxu0
      %v3338 = vadd.f32 %v3107, %v3337
      %v3339 = vpop.f32.mrb[0].mxu0
      %3340 = vmatprep.mubr.f32.mxu0 0.0
      %3341 = vmatmul.mubr.f32.gmra.mrb[0].mxu0 %v2894
      %v3342 = vpop.f32.mrb[0].mxu0
      %v3343 = vadd.f32 %v3112, %v3342
      %v3344 = vpop.f32.mrb[0].mxu0
      %3345 = vmatprep.mubr.f32.mxu0 0.0
      %3346 = vmatmul.mubr.f32.gmra.mrb[0].mxu0 %v2897
      %v3347 = vpop.f32.mrb[0].mxu0
      %v3348 = vadd.f32 %v3117, %v3347
      %v3349 = vpop.f32.mrb[0].mxu0
      %3350 = vmatprep.mubr.f32.mxu0 0.0
      %3351 = vmatmul.mubr.f32.gmra.mrb[0].mxu0 %v2900
      %v3352 = vpop.f32.mrb[0].mxu0
      %v3353 = vadd.f32 %v3122, %v3352
      %v3354 = vpop.f32.mrb[0].mxu0
      %3355 = vmatprep.mubr.f32.mxu0 0.0
      %3356 = vmatmul.mubr.f32.gmra.mrb[0].mxu0 %v2903
      %v3357 = vpop.f32.mrb[0].mxu0
      %v3358 = vadd.f32 %v3127, %v3357
      %v3359 = vpop.f32.mrb[0].mxu0
      %3360 = vmatprep.mubr.f32.mxu0 0.0
      %3361 = vmatmul.mubr.f32.gmra.mrb[0].mxu0 %v2906
      %v3362 = vpop.f32.mrb[0].mxu0
      %v3363 = vadd.f32 %v3132, %v3362
      %v3364 = vpop.f32.mrb[0].mxu0
      %3365 = vmatprep.mubr.f32.mxu0 0.0
      %3366 = vmatmul.mubr.f32.gmra.mrb[0].mxu0 %v2909
      %v3367 = vpop.f32.mrb[0].mxu0
      %v3368 = vadd.f32 %v3137, %v3367
      %v3369 = vpop.f32.mrb[0].mxu0
      %3370 = vmatprep.mubr.f32.mxu0 0.0
      %3371 = vmatmul.mubr.f32.gmra.mrb[0].mxu0 %v2912
      %v3372 = vpop.f32.mrb[0].mxu0
      %v3373 = vadd.f32 %v3142, %v3372
      %v3374 = vpop.f32.mrb[0].mxu0
      %3375 = vdwg.mxu0
      %v3376 = vld [vmem:[#allocation3 + $0x30] sm:$0xff]
      %v3377 = vld [vmem:[#allocation3 + $0x38] sm:$0xff]
      %v3378 = vld [vmem:[#allocation3 + $0x40] sm:$0xff]
      %v3379 = vld [vmem:[#allocation3 + $0x48] sm:$0xff]
      %v3380 = vld [vmem:[#allocation3 + $0x50] sm:$0xff]
      %v3381 = vld [vmem:[#allocation3 + $0x58] sm:$0xff]
      %v3382 = vld [vmem:[#allocation3 + $0x60] sm:$0xff]
      %v3383 = vld [vmem:[#allocation3 + $0x68] sm:$0xff]
      %v3384 = vld [vmem:[#allocation3 + $0x70] sm:$0xff]
      %v3385 = vld [vmem:[#allocation3 + $0x78] sm:$0xff]
      %v3386 = vld [vmem:[#allocation3 + $0x80] sm:$0xff]
      %v3387 = vld [vmem:[#allocation3 + $0x88] sm:$0xff]
      %v3388 = vld [vmem:[#allocation3 + $0x90] sm:$0xff]
      %v3389 = vld [vmem:[#allocation3 + $0x98] sm:$0xff]
      %v3390 = vld [vmem:[#allocation3 + $0xa0] sm:$0xff]
      %v3391 = vld [vmem:[#allocation3 + $0xa8] sm:$0xff]
      %v3392 = vld [vmem:[#allocation3 + $0xb0] sm:$0xff]
      %v3393 = vld [vmem:[#allocation3 + $0xb8] sm:$0xff]
      %v3394 = vld [vmem:[#allocation3 + $0xc0] sm:$0xff]
      %v3395 = vld [vmem:[#allocation3 + $0xc8] sm:$0xff]
      %v3396 = vld [vmem:[#allocation3 + $0xd0] sm:$0xff]
      %v3397 = vld [vmem:[#allocation3 + $0xd8] sm:$0xff]
      %v3398 = vld [vmem:[#allocation3 + $0xe0] sm:$0xff]
      %v3399 = vld [vmem:[#allocation3 + $0xe8] sm:$0xff]
      %v3400 = vld [vmem:[#allocation3 + $0xf0] sm:$0xff]
      %v3401 = vld [vmem:[#allocation3 + $0xf8] sm:$0xff]
      %v3402 = vld [vmem:[#allocation3 + $0x100] sm:$0xff]
      %v3403 = vld [vmem:[#allocation3 + $0x108] sm:$0xff]
      %v3404 = vld [vmem:[#allocation3 + $0x110] sm:$0xff]
      %v3405 = vld [vmem:[#allocation3 + $0x118] sm:$0xff]
      %v3406 = vld [vmem:[#allocation3 + $0x120] sm:$0xff]
      %v3407 = vld [vmem:[#allocation3 + $0x128] sm:$0xff]
      %s3408 = scalar_lea.vmem %s3, 96
      %v3409 = vld [vmem:[%s3408] sm:$0xff]
      %v3410 = vld [vmem:[%s3408 + $0x8] sm:$0xff]
      %v3411 = vld [vmem:[%s3408 + $0x10] sm:$0xff]
      %v3412 = vld [vmem:[%s3408 + $0x18] sm:$0xff]
      %v3413 = vld [vmem:[%s3408 + $0x20] sm:$0xff]
      %v3414 = vld [vmem:[%s3408 + $0x28] sm:$0xff]
      %v3416 = vsel %vm866, %v3376, 0
      %v3419 = vsel %vm866, %v3377, 0
      %v3422 = vsel %vm866, %v3378, 0
      %v3425 = vsel %vm866, %v3379, 0
      %v3428 = vsel %vm866, %v3380, 0
      %v3431 = vsel %vm866, %v3381, 0
      %v3434 = vsel %vm866, %v3382, 0
      %v3437 = vsel %vm866, %v3383, 0
      %v3440 = vsel %vm866, %v3384, 0
      %v3443 = vsel %vm866, %v3385, 0
      %v3446 = vsel %vm866, %v3386, 0
      %v3449 = vsel %vm866, %v3387, 0
      %v3452 = vsel %vm866, %v3388, 0
      %v3455 = vsel %vm866, %v3389, 0
      %v3458 = vsel %vm866, %v3390, 0
      %v3461 = vsel %vm866, %v3391, 0
      %v3464 = vsel %vm866, %v3392, 0
      %v3467 = vsel %vm866, %v3393, 0
      %v3470 = vsel %vm866, %v3394, 0
      %v3473 = vsel %vm866, %v3395, 0
      %v3476 = vsel %vm866, %v3396, 0
      %v3479 = vsel %vm866, %v3397, 0
      %v3482 = vsel %vm866, %v3398, 0
      %v3485 = vsel %vm866, %v3399, 0
      %v3488 = vsel %vm866, %v3400, 0
      %v3491 = vsel %vm866, %v3401, 0
      %v3494 = vsel %vm866, %v3402, 0
      %v3497 = vsel %vm866, %v3403, 0
      %v3500 = vsel %vm866, %v3404, 0
      %v3503 = vsel %vm866, %v3405, 0
      %v3506 = vsel %vm866, %v3406, 0
      %v3509 = vsel %vm866, %v3407, 0
      %3511 = vmatprep.subr.mxu0 0.0
      %3512 = vmatpush1.msra.mxu0 %v3409
      %3513 = vmatprep.subr.mxu0 0.0
      %3514 = vmatpush1.msra.mxu0 %v3410
      %3515 = vmatprep.subr.mxu0 0.0
      %3516 = vmatpush1.msra.mxu0 %v3411
      %3517 = vmatprep.subr.mxu0 0.0
      %3518 = vmatpush1.msra.mxu0 %v3412
      %3519 = vmatprep.subr.mxu0 0.0
      %3520 = vmatpush1.msra.mxu0 %v3413
      %3521 = vmatprep.subr.mxu0 0.0
      %3522 = vmatpush1.msra.mxu0 %v3414
      %3523 = vmatprep.subr.mxu0 0.0
      %3524 = vmatpush1.msra.mxu0 0.0
      %3525 = vmatprep.subr.mxu0 0.0
      %3526 = vmatpush1.msra.mxu0 0.0
      %3527 = vmatprep.subr.mxu0 0.0
      %3528 = vmatpush1.msra.mxu0 0.0
      %3529 = vmatprep.subr.mxu0 0.0
      %3530 = vmatpush1.msra.mxu0 0.0
      %3531 = vmatprep.subr.mxu0 0.0
      %3532 = vmatpush1.msra.mxu0 0.0
      %3533 = vmatprep.subr.mxu0 0.0
      %3534 = vmatpush1.msra.mxu0 0.0
      %3535 = vmatprep.subr.mxu0 0.0
      %3536 = vmatpush1.msra.mxu0 0.0
      %3537 = vmatprep.subr.mxu0 0.0
      %3538 = vmatpush1.msra.mxu0 0.0
      %3539 = vmatprep.subr.mxu0 0.0
      %3540 = vmatpush1.msra.mxu0 0.0
      %3541 = vmatprep.subr.mxu0 0.0
      %3542 = vmatpush1.msra.mxu0 0.0
      %3543 = vmatprep.subr.mxu0 0.0
      %3544 = vmatpush1.msra.mxu0 0.0
      %3545 = vmatprep.subr.mxu0 0.0
      %3546 = vmatpush1.msra.mxu0 0.0
      %3547 = vmatprep.subr.mxu0 0.0
      %3548 = vmatpush1.msra.mxu0 0.0
      %3549 = vmatprep.subr.mxu0 0.0
      %3550 = vmatpush1.msra.mxu0 0.0
      %3551 = vmatprep.subr.mxu0 0.0
      %3552 = vmatpush1.msra.mxu0 0.0
      %3553 = vmatprep.subr.mxu0 0.0
      %3554 = vmatpush1.msra.mxu0 0.0
      %3555 = vmatprep.subr.mxu0 0.0
      %3556 = vmatpush1.msra.mxu0 0.0
      %3557 = vmatprep.subr.mxu0 0.0
      %3558 = vmatpush1.msra.mxu0 0.0
      %3559 = vmatprep.subr.mxu0 0.0
      %3560 = vmatpush1.msra.mxu0 0.0
      %3561 = vmatprep.subr.mxu0 0.0
      %3562 = vmatpush1.msra.mxu0 0.0
      %3563 = vmatprep.subr.mxu0 0.0
      %3564 = vmatpush1.msra.mxu0 0.0
      %3565 = vmatprep.subr.mxu0 0.0
      %3566 = vmatpush1.msra.mxu0 0.0
      %3567 = vmatprep.subr.mxu0 0.0
      %3568 = vmatpush1.msra.mxu0 0.0
      %3569 = vmatprep.subr.mxu0 0.0
      %3570 = vmatpush1.msra.mxu0 0.0
      %3571 = vmatprep.subr.mxu0 0.0
      %3572 = vmatpush1.msra.mxu0 0.0
      %3573 = vmatprep.subr.mxu0 0.0
      %3574 = vmatpush1.msra.mxu0 0.0
      %3575 = vmatprep.mubr.f32.mxu0 0.0
      %3576 = vmatmul.mubr.f32.gmra.mrb[0].mxu0 %v3416
      %v3577 = vpop.f32.mrb[0].mxu0
      %v3578 = vadd.f32 0.0, %v3577
      %v3579 = vpop.f32.mrb[0].mxu0
      %3580 = vmatprep.mubr.f32.mxu0 0.0
      %3581 = vmatmul.mubr.f32.gmra.mrb[0].mxu0 %v3419
      %v3582 = vpop.f32.mrb[0].mxu0
      %v3583 = vadd.f32 0.0, %v3582
      %v3584 = vpop.f32.mrb[0].mxu0
      %3585 = vmatprep.mubr.f32.mxu0 0.0
      %3586 = vmatmul.mubr.f32.gmra.mrb[0].mxu0 %v3422
      %v3587 = vpop.f32.mrb[0].mxu0
      %v3588 = vadd.f32 0.0, %v3587
      %v3589 = vpop.f32.mrb[0].mxu0
      %3590 = vmatprep.mubr.f32.mxu0 0.0
      %3591 = vmatmul.mubr.f32.gmra.mrb[0].mxu0 %v3425
      %v3592 = vpop.f32.mrb[0].mxu0
      %v3593 = vadd.f32 0.0, %v3592
      %v3594 = vpop.f32.mrb[0].mxu0
      %3595 = vmatprep.mubr.f32.mxu0 0.0
      %3596 = vmatmul.mubr.f32.gmra.mrb[0].mxu0 %v3428
      %v3597 = vpop.f32.mrb[0].mxu0
      %v3598 = vadd.f32 0.0, %v3597
      %v3599 = vpop.f32.mrb[0].mxu0
      %3600 = vmatprep.mubr.f32.mxu0 0.0
      %3601 = vmatmul.mubr.f32.gmra.mrb[0].mxu0 %v3431
      %v3602 = vpop.f32.mrb[0].mxu0
      %v3603 = vadd.f32 0.0, %v3602
      %v3604 = vpop.f32.mrb[0].mxu0
      %3605 = vmatprep.mubr.f32.mxu0 0.0
      %3606 = vmatmul.mubr.f32.gmra.mrb[0].mxu0 %v3434
      %v3607 = vpop.f32.mrb[0].mxu0
      %v3608 = vadd.f32 0.0, %v3607
      %v3609 = vpop.f32.mrb[0].mxu0
      %3610 = vmatprep.mubr.f32.mxu0 0.0
      %3611 = vmatmul.mubr.f32.gmra.mrb[0].mxu0 %v3437
      %v3612 = vpop.f32.mrb[0].mxu0
      %v3613 = vadd.f32 0.0, %v3612
      %v3614 = vpop.f32.mrb[0].mxu0
      %3615 = vmatprep.mubr.f32.mxu0 0.0
      %3616 = vmatmul.mubr.f32.gmra.mrb[0].mxu0 %v3440
      %v3617 = vpop.f32.mrb[0].mxu0
      %v3618 = vadd.f32 0.0, %v3617
      %v3619 = vpop.f32.mrb[0].mxu0
      %3620 = vmatprep.mubr.f32.mxu0 0.0
      %3621 = vmatmul.mubr.f32.gmra.mrb[0].mxu0 %v3443
      %v3622 = vpop.f32.mrb[0].mxu0
      %v3623 = vadd.f32 0.0, %v3622
      %v3624 = vpop.f32.mrb[0].mxu0
      %3625 = vmatprep.mubr.f32.mxu0 0.0
      %3626 = vmatmul.mubr.f32.gmra.mrb[0].mxu0 %v3446
      %v3627 = vpop.f32.mrb[0].mxu0
      %v3628 = vadd.f32 0.0, %v3627
      %v3629 = vpop.f32.mrb[0].mxu0
      %3630 = vmatprep.mubr.f32.mxu0 0.0
      %3631 = vmatmul.mubr.f32.gmra.mrb[0].mxu0 %v3449
      %v3632 = vpop.f32.mrb[0].mxu0
      %v3633 = vadd.f32 0.0, %v3632
      %v3634 = vpop.f32.mrb[0].mxu0
      %3635 = vmatprep.mubr.f32.mxu0 0.0
      %3636 = vmatmul.mubr.f32.gmra.mrb[0].mxu0 %v3452
      %v3637 = vpop.f32.mrb[0].mxu0
      %v3638 = vadd.f32 0.0, %v3637
      %v3639 = vpop.f32.mrb[0].mxu0
      %3640 = vmatprep.mubr.f32.mxu0 0.0
      %3641 = vmatmul.mubr.f32.gmra.mrb[0].mxu0 %v3455
      %v3642 = vpop.f32.mrb[0].mxu0
      %v3643 = vadd.f32 0.0, %v3642
      %v3644 = vpop.f32.mrb[0].mxu0
      %3645 = vmatprep.mubr.f32.mxu0 0.0
      %3646 = vmatmul.mubr.f32.gmra.mrb[0].mxu0 %v3458
      %v3647 = vpop.f32.mrb[0].mxu0
      %v3648 = vadd.f32 0.0, %v3647
      %v3649 = vpop.f32.mrb[0].mxu0
      %3650 = vmatprep.mubr.f32.mxu0 0.0
      %3651 = vmatmul.mubr.f32.gmra.mrb[0].mxu0 %v3461
      %v3652 = vpop.f32.mrb[0].mxu0
      %v3653 = vadd.f32 0.0, %v3652
      %v3654 = vpop.f32.mrb[0].mxu0
      %3655 = vmatprep.mubr.f32.mxu0 0.0
      %3656 = vmatmul.mubr.f32.gmra.mrb[0].mxu0 %v3464
      %v3657 = vpop.f32.mrb[0].mxu0
      %v3658 = vadd.f32 0.0, %v3657
      %v3659 = vpop.f32.mrb[0].mxu0
      %3660 = vmatprep.mubr.f32.mxu0 0.0
      %3661 = vmatmul.mubr.f32.gmra.mrb[0].mxu0 %v3467
      %v3662 = vpop.f32.mrb[0].mxu0
      %v3663 = vadd.f32 0.0, %v3662
      %v3664 = vpop.f32.mrb[0].mxu0
      %3665 = vmatprep.mubr.f32.mxu0 0.0
      %3666 = vmatmul.mubr.f32.gmra.mrb[0].mxu0 %v3470
      %v3667 = vpop.f32.mrb[0].mxu0
      %v3668 = vadd.f32 0.0, %v3667
      %v3669 = vpop.f32.mrb[0].mxu0
      %3670 = vmatprep.mubr.f32.mxu0 0.0
      %3671 = vmatmul.mubr.f32.gmra.mrb[0].mxu0 %v3473
      %v3672 = vpop.f32.mrb[0].mxu0
      %v3673 = vadd.f32 0.0, %v3672
      %v3674 = vpop.f32.mrb[0].mxu0
      %3675 = vmatprep.mubr.f32.mxu0 0.0
      %3676 = vmatmul.mubr.f32.gmra.mrb[0].mxu0 %v3476
      %v3677 = vpop.f32.mrb[0].mxu0
      %v3678 = vadd.f32 0.0, %v3677
      %v3679 = vpop.f32.mrb[0].mxu0
      %3680 = vmatprep.mubr.f32.mxu0 0.0
      %3681 = vmatmul.mubr.f32.gmra.mrb[0].mxu0 %v3479
      %v3682 = vpop.f32.mrb[0].mxu0
      %v3683 = vadd.f32 0.0, %v3682
      %v3684 = vpop.f32.mrb[0].mxu0
      %3685 = vmatprep.mubr.f32.mxu0 0.0
      %3686 = vmatmul.mubr.f32.gmra.mrb[0].mxu0 %v3482
      %v3687 = vpop.f32.mrb[0].mxu0
      %v3688 = vadd.f32 0.0, %v3687
      %v3689 = vpop.f32.mrb[0].mxu0
      %3690 = vmatprep.mubr.f32.mxu0 0.0
      %3691 = vmatmul.mubr.f32.gmra.mrb[0].mxu0 %v3485
      %v3692 = vpop.f32.mrb[0].mxu0
      %v3693 = vadd.f32 0.0, %v3692
      %v3694 = vpop.f32.mrb[0].mxu0
      %3695 = vmatprep.mubr.f32.mxu0 0.0
      %3696 = vmatmul.mubr.f32.gmra.mrb[0].mxu0 %v3488
      %v3697 = vpop.f32.mrb[0].mxu0
      %v3698 = vadd.f32 0.0, %v3697
      %v3699 = vpop.f32.mrb[0].mxu0
      %3700 = vmatprep.mubr.f32.mxu0 0.0
      %3701 = vmatmul.mubr.f32.gmra.mrb[0].mxu0 %v3491
      %v3702 = vpop.f32.mrb[0].mxu0
      %v3703 = vadd.f32 0.0, %v3702
      %v3704 = vpop.f32.mrb[0].mxu0
      %3705 = vmatprep.mubr.f32.mxu0 0.0
      %3706 = vmatmul.mubr.f32.gmra.mrb[0].mxu0 %v3494
      %v3707 = vpop.f32.mrb[0].mxu0
      %v3708 = vadd.f32 0.0, %v3707
      %v3709 = vpop.f32.mrb[0].mxu0
      %3710 = vmatprep.mubr.f32.mxu0 0.0
      %3711 = vmatmul.mubr.f32.gmra.mrb[0].mxu0 %v3497
      %v3712 = vpop.f32.mrb[0].mxu0
      %v3713 = vadd.f32 0.0, %v3712
      %v3714 = vpop.f32.mrb[0].mxu0
      %3715 = vmatprep.mubr.f32.mxu0 0.0
      %3716 = vmatmul.mubr.f32.gmra.mrb[0].mxu0 %v3500
      %v3717 = vpop.f32.mrb[0].mxu0
      %v3718 = vadd.f32 0.0, %v3717
      %v3719 = vpop.f32.mrb[0].mxu0
      %3720 = vmatprep.mubr.f32.mxu0 0.0
      %3721 = vmatmul.mubr.f32.gmra.mrb[0].mxu0 %v3503
      %v3722 = vpop.f32.mrb[0].mxu0
      %v3723 = vadd.f32 0.0, %v3722
      %v3724 = vpop.f32.mrb[0].mxu0
      %3725 = vmatprep.mubr.f32.mxu0 0.0
      %3726 = vmatmul.mubr.f32.gmra.mrb[0].mxu0 %v3506
      %v3727 = vpop.f32.mrb[0].mxu0
      %v3728 = vadd.f32 0.0, %v3727
      %v3729 = vpop.f32.mrb[0].mxu0
      %3730 = vmatprep.mubr.f32.mxu0 0.0
      %3731 = vmatmul.mubr.f32.gmra.mrb[0].mxu0 %v3509
      %v3732 = vpop.f32.mrb[0].mxu0
      %v3733 = vadd.f32 0.0, %v3732
      %v3734 = vpop.f32.mrb[0].mxu0
      %3735 = vdwg.mxu0
      %v3736 = vadd.f32 %v3218, %v3578
      %v3737 = vadd.f32 %v3223, %v3583
      %v3738 = vadd.f32 %v3228, %v3588
      %v3739 = vadd.f32 %v3233, %v3593
      %v3740 = vadd.f32 %v3238, %v3598
      %v3741 = vadd.f32 %v3243, %v3603
      %v3742 = vadd.f32 %v3248, %v3608
      %v3743 = vadd.f32 %v3253, %v3613
      %v3744 = vadd.f32 %v3258, %v3618
      %v3745 = vadd.f32 %v3263, %v3623
      %v3746 = vadd.f32 %v3268, %v3628
      %v3747 = vadd.f32 %v3273, %v3633
      %v3748 = vadd.f32 %v3278, %v3638
      %v3749 = vadd.f32 %v3283, %v3643
      %v3750 = vadd.f32 %v3288, %v3648
      %v3751 = vadd.f32 %v3293, %v3653
      %v3752 = vadd.f32 %v3298, %v3658
      %v3753 = vadd.f32 %v3303, %v3663
      %v3754 = vadd.f32 %v3308, %v3668
      %v3755 = vadd.f32 %v3313, %v3673
      %v3756 = vadd.f32 %v3318, %v3678
      %v3757 = vadd.f32 %v3323, %v3683
      %v3758 = vadd.f32 %v3328, %v3688
      %v3759 = vadd.f32 %v3333, %v3693
      %v3760 = vadd.f32 %v3338, %v3698
      %v3761 = vadd.f32 %v3343, %v3703
      %v3762 = vadd.f32 %v3348, %v3708
      %v3763 = vadd.f32 %v3353, %v3713
      %v3764 = vadd.f32 %v3358, %v3718
      %v3765 = vadd.f32 %v3363, %v3723
      %v3766 = vadd.f32 %v3368, %v3728
      %v3767 = vadd.f32 %v3373, %v3733
      %v3768 = vld [vmem:[%s4] sm:$0x1]
      %v3770 = vlaneseq
      %v3771 = vshrl.u32 %v3770, 7
      %v3772 = vsub.s32 0, %v3771
      %v3773 = vrot.slane %v3768, %v3772
      %v3775 = vadd.f32 %v3736, %v3773
      %v3776 = vadd.f32 %v3737, %v3773
      %v3777 = vadd.f32 %v3738, %v3773
      %v3778 = vadd.f32 %v3739, %v3773
      %v3779 = vadd.f32 %v3740, %v3773
      %v3780 = vadd.f32 %v3741, %v3773
      %v3781 = vadd.f32 %v3742, %v3773
      %v3782 = vadd.f32 %v3743, %v3773
      %v3783 = vadd.f32 %v3744, %v3773
      %v3784 = vadd.f32 %v3745, %v3773
      %v3785 = vadd.f32 %v3746, %v3773
      %v3786 = vadd.f32 %v3747, %v3773
      %v3787 = vadd.f32 %v3748, %v3773
      %v3788 = vadd.f32 %v3749, %v3773
      %v3789 = vadd.f32 %v3750, %v3773
      %v3790 = vadd.f32 %v3751, %v3773
      %v3791 = vadd.f32 %v3752, %v3773
      %v3792 = vadd.f32 %v3753, %v3773
      %v3793 = vadd.f32 %v3754, %v3773
      %v3794 = vadd.f32 %v3755, %v3773
      %v3795 = vadd.f32 %v3756, %v3773
      %v3796 = vadd.f32 %v3757, %v3773
      %v3797 = vadd.f32 %v3758, %v3773
      %v3798 = vadd.f32 %v3759, %v3773
      %v3799 = vadd.f32 %v3760, %v3773
      %v3800 = vadd.f32 %v3761, %v3773
      %v3801 = vadd.f32 %v3762, %v3773
      %v3802 = vadd.f32 %v3763, %v3773
      %v3803 = vadd.f32 %v3764, %v3773
      %v3804 = vadd.f32 %v3765, %v3773
      %v3805 = vadd.f32 %v3766, %v3773
      %v3806 = vadd.f32 %v3767, %v3773
      %v3807 = vadd.f32 %v3775, %v834
      %v3808 = vadd.f32 %v3776, %v835
      %v3809 = vadd.f32 %v3777, %v836
      %v3810 = vadd.f32 %v3778, %v837
      %v3811 = vadd.f32 %v3779, %v838
      %v3812 = vadd.f32 %v3780, %v839
      %v3813 = vadd.f32 %v3781, %v840
      %v3814 = vadd.f32 %v3782, %v841
      %v3815 = vadd.f32 %v3783, %v842
      %v3816 = vadd.f32 %v3784, %v843
      %v3817 = vadd.f32 %v3785, %v844
      %v3818 = vadd.f32 %v3786, %v845
      %v3819 = vadd.f32 %v3787, %v846
      %v3820 = vadd.f32 %v3788, %v847
      %v3821 = vadd.f32 %v3789, %v848
      %v3822 = vadd.f32 %v3790, %v849
      %v3823 = vadd.f32 %v3791, %v850
      %v3824 = vadd.f32 %v3792, %v851
      %v3825 = vadd.f32 %v3793, %v852
      %v3826 = vadd.f32 %v3794, %v853
      %v3827 = vadd.f32 %v3795, %v854
      %v3828 = vadd.f32 %v3796, %v855
      %v3829 = vadd.f32 %v3797, %v856
      %v3830 = vadd.f32 %v3798, %v857
      %v3831 = vadd.f32 %v3799, %v858
      %v3832 = vadd.f32 %v3800, %v859
      %v3833 = vadd.f32 %v3801, %v860
      %v3834 = vadd.f32 %v3802, %v861
      %v3835 = vadd.f32 %v3803, %v862
      %v3836 = vadd.f32 %v3804, %v863
      %v3837 = vadd.f32 %v3805, %v864
      %v3838 = vadd.f32 %v3806, %v865
      %v3839 = vmax.f32 %v3807, 0.0
      %v3840 = vmax.f32 %v3808, 0.0
      %v3841 = vmax.f32 %v3809, 0.0
      %v3842 = vmax.f32 %v3810, 0.0
      %v3843 = vmax.f32 %v3811, 0.0
      %v3844 = vmax.f32 %v3812, 0.0
      %v3845 = vmax.f32 %v3813, 0.0
      %v3846 = vmax.f32 %v3814, 0.0
      %v3847 = vmax.f32 %v3815, 0.0
      %v3848 = vmax.f32 %v3816, 0.0
      %v3849 = vmax.f32 %v3817, 0.0
      %v3850 = vmax.f32 %v3818, 0.0
      %v3851 = vmax.f32 %v3819, 0.0
      %v3852 = vmax.f32 %v3820, 0.0
      %v3853 = vmax.f32 %v3821, 0.0
      %v3854 = vmax.f32 %v3822, 0.0
      %v3855 = vmax.f32 %v3823, 0.0
      %v3856 = vmax.f32 %v3824, 0.0
      %v3857 = vmax.f32 %v3825, 0.0
      %v3858 = vmax.f32 %v3826, 0.0
      %v3859 = vmax.f32 %v3827, 0.0
      %v3860 = vmax.f32 %v3828, 0.0
      %v3861 = vmax.f32 %v3829, 0.0
      %v3862 = vmax.f32 %v3830, 0.0
      %v3863 = vmax.f32 %v3831, 0.0
      %v3864 = vmax.f32 %v3832, 0.0
      %v3865 = vmax.f32 %v3833, 0.0
      %v3866 = vmax.f32 %v3834, 0.0
      %v3867 = vmax.f32 %v3835, 0.0
      %v3868 = vmax.f32 %v3836, 0.0
      %v3869 = vmax.f32 %v3837, 0.0
      %v3870 = vmax.f32 %v3838, 0.0
      %3871 = vst.msk [vmem:[%s224] sm:$0xff] %vm906, %v3839
      %3872 = vst.msk [vmem:[%s224 + $0x8] sm:$0xff] %vm906, %v3840
      %3873 = vst.msk [vmem:[%s224 + $0x10] sm:$0xff] %vm906, %v3841
      %3874 = vst.msk [vmem:[%s224 + $0x18] sm:$0xff] %vm906, %v3842
      %3875 = vst.msk [vmem:[%s224 + $0x20] sm:$0xff] %vm906, %v3843
      %3876 = vst.msk [vmem:[%s224 + $0x28] sm:$0xff] %vm906, %v3844
      %3877 = vst.msk [vmem:[%s224 + $0x30] sm:$0xff] %vm906, %v3845
      %3878 = vst.msk [vmem:[%s224 + $0x38] sm:$0xff] %vm906, %v3846
      %3879 = vst.msk [vmem:[%s224 + $0x40] sm:$0xff] %vm906, %v3847
      %3880 = vst.msk [vmem:[%s224 + $0x48] sm:$0xff] %vm906, %v3848
      %3881 = vst.msk [vmem:[%s224 + $0x50] sm:$0xff] %vm906, %v3849
      %3882 = vst.msk [vmem:[%s224 + $0x58] sm:$0xff] %vm906, %v3850
      %3883 = vst.msk [vmem:[%s224 + $0x60] sm:$0xff] %vm906, %v3851
      %3884 = vst.msk [vmem:[%s224 + $0x68] sm:$0xff] %vm906, %v3852
      %3885 = vst.msk [vmem:[%s224 + $0x70] sm:$0xff] %vm906, %v3853
      %3886 = vst.msk [vmem:[%s224 + $0x78] sm:$0xff] %vm906, %v3854
      %3887 = vst.msk [vmem:[%s224 + $0x80] sm:$0xff] %vm906, %v3855
      %3888 = vst.msk [vmem:[%s224 + $0x88] sm:$0xff] %vm906, %v3856
      %3889 = vst.msk [vmem:[%s224 + $0x90] sm:$0xff] %vm906, %v3857
      %3890 = vst.msk [vmem:[%s224 + $0x98] sm:$0xff] %vm906, %v3858
      %3891 = vst.msk [vmem:[%s224 + $0xa0] sm:$0xff] %vm906, %v3859
      %3892 = vst.msk [vmem:[%s224 + $0xa8] sm:$0xff] %vm906, %v3860
      %3893 = vst.msk [vmem:[%s224 + $0xb0] sm:$0xff] %vm906, %v3861
      %3894 = vst.msk [vmem:[%s224 + $0xb8] sm:$0xff] %vm906, %v3862
      %3895 = vst.msk [vmem:[%s224 + $0xc0] sm:$0xff] %vm906, %v3863
      %3896 = vst.msk [vmem:[%s224 + $0xc8] sm:$0xff] %vm906, %v3864
      %3897 = vst.msk [vmem:[%s224 + $0xd0] sm:$0xff] %vm906, %v3865
      %3898 = vst.msk [vmem:[%s224 + $0xd8] sm:$0xff] %vm906, %v3866
      %3899 = vst.msk [vmem:[%s224 + $0xe0] sm:$0xff] %vm906, %v3867
      %3900 = vst.msk [vmem:[%s224 + $0xe8] sm:$0xff] %vm906, %v3868
      %3901 = vst.msk [vmem:[%s224 + $0xf0] sm:$0xff] %vm906, %v3869
      %3902 = vst.msk [vmem:[%s224 + $0xf8] sm:$0xff] %vm906, %v3870
      %p3903 = scmp.lt.s32.totalorder %s16, 1
      %s3904 = scalar_select %p3903, %s16, 1
      %s3905 = smul.addr %s3904, 32
      %s3906 = smul.addr %s3905, 8
      %s3907 = scalar_lea.vmem %s5, %s3906
      // Predicated region
      $region41: #{tpu_custom_call.1} parent=39 // pred_check
        %p3908 = pneg %p144
      $region42: #{tpu_custom_call.1} parent=39 // pred_check_branch
        %3910 = sbr.rel (%p3908) target = $region44
      $region43: #{tpu_custom_call.1} parent=39 // pred_region
        _
      $region44: #{tpu_custom_call.1} parent=39 // pred_fallthru
        _
    $region40: #{tpu_custom_call.1} parent=5 // pred_fallthru
      _
    %p3911 = scmp.le.s32.totalorder 2, %s11
    // Predicated region
    $region45: #{tpu_custom_call.1} parent=5 // pred_check
      %p3912 = pneg %p3911
    $region46: #{tpu_custom_call.1} parent=5 // pred_check_branch
      %3914 = sbr.rel (%p3912) target = $region48
    $region47: #{tpu_custom_call.1} parent=5 // pred_region
      %s3915 = ssub.s32 %s11, 2
      // Predicated region
      $region49: #{tpu_custom_call.1} parent=47 // pred_check
        %p3916 = pneg %p150
      $region50: #{tpu_custom_call.1} parent=47 // pred_check_branch
        %3918 = sbr.rel (%p3916) target = $region52
      $region51: #{tpu_custom_call.1} parent=47 // pred_region
        %p3919 = scmp.lt.s32.totalorder %s17, 1
        %s3920 = scalar_select %p3919, %s17, 1
        %s3921 = smul.addr %s3920, 32
        %s3922 = smul.addr %s3921, 8
        %s3923 = scalar_lea.vmem %s5, %s3922
      $region52: #{tpu_custom_call.1} parent=47 // pred_fallthru
        _
    $region48: #{tpu_custom_call.1} parent=5 // pred_fallthru
      _
  $region6: #{tpu_custom_call.1} parent=0 // loop_footer
    %s15 = sadd.s32 1, %s11
  $region7: #{tpu_custom_call.1} parent=0 // loop_footer_branch
    %10 = sbr.rel target = $region3
  $region8: #{tpu_custom_call.1} parent=0 // loop_exit
    _

</llo_original>
